<compile_context>
chip_gen: v7x
topology: tpu7x:2x2x1
jax: 0.10.0
libtpu: 0.0.40
codegen_flags: <defaults>
</compile_context>

<pallas_src>
import functools

import jax
import jax.numpy as jnp
from jax.experimental import pallas as pl
from jax.experimental.pallas import tpu as pltpu


# bf16 inter-kernel stream (MXU-native, half the HBM traffic).  Set to jnp.float32 for
# strict numerical parity with the PyTorch reference (accumulation / LN stats / softmax
# are f32 inside the kernels either way).
COMPUTE_DTYPE = jnp.bfloat16

# Preferred tile sizes (rows / reduction); output lanes are weight-resident (full N).
_TM, _TK = 256, 512


def _default_vmem_limit():
    # ~75% of per-core physical VMEM (48 MiB on v7x, 96 MiB on v5e/v6e), 48 MiB fallback.
    try:
        info = pltpu.get_tpu_info()
        cap = getattr(info, "vmem_capacity_bytes", None) or getattr(info, "vmem_bytes", None)
        if cap:
            return int(min(cap * 3 // 4, 100 * 1024 * 1024))
    except Exception:
        pass
    return 48 * 1024 * 1024


_VMEM_LIMIT_BYTES = _default_vmem_limit()


def _cparams(dimension_semantics):
    return pltpu.CompilerParams(dimension_semantics=dimension_semantics,
                                vmem_limit_bytes=_VMEM_LIMIT_BYTES)


def _row_align(dtype):
    # sublane packing: 8 rows for 32-bit, 16 for bf16, 32 for 8-bit.
    itemsize = jnp.dtype(dtype).itemsize
    return 8 if itemsize >= 4 else (16 if itemsize == 2 else 32)


def _pick_tile(dim, pref, align):
    """Largest tile <= pref that is a multiple of `align` and divides `dim`.
    Falls back to the full dimension (always a legal block shape)."""
    if dim <= pref or dim % align != 0:
        return dim
    t = (min(pref, dim) // align) * align
    while t >= align:
        if dim % t == 0:
            return t
        t -= align
    return dim


def _pick_row_tile(div_dim, pref, align, total_rows=None, min_steps=2):
    """Row tile that divides `div_dim`; halved until there are >= min_steps grid steps
    over `total_rows` (keeps both v7x TensorCores busy)."""
    tm = _pick_tile(div_dim, pref, align)
    total = total_rows if total_rows is not None else div_dim
    while total // tm < min_steps and tm % (2 * align) == 0:
        tm //= 2
    return tm


# ----------------------------- Pallas kernels -----------------------------

def _patch_embed_kernel(x_ref, w_ref, b_ref, pos_ref, o_ref):
    # o = x @ w + b + pos_emb    (patch embed + positional add, fused)
    acc = jnp.dot(x_ref[...], w_ref[...], preferred_element_type=jnp.float32)
    acc = acc + b_ref[...].astype(jnp.float32) + pos_ref[...].astype(jnp.float32)
    o_ref[...] = acc.astype(o_ref.dtype)


def _ln_matmul_kernel(x_ref, g_ref, b_ref, w_ref, bias_ref, o_ref, *, eps, gelu):
    # o = act(LayerNorm(x) @ w + bias)   -- LN in the prologue (f32 stats), GELU epilogue.
    x = x_ref[...].astype(jnp.float32)
    mu = jnp.mean(x, axis=-1, keepdims=True)
    xc = x - mu
    var = jnp.mean(xc * xc, axis=-1, keepdims=True)
    h = xc * jax.lax.rsqrt(var + eps)
    h = h * g_ref[...].astype(jnp.float32) + b_ref[...].astype(jnp.float32)
    acc = jnp.dot(h.astype(x_ref.dtype), w_ref[...], preferred_element_type=jnp.float32)
    acc = acc + bias_ref[...].astype(jnp.float32)
    if gelu:
        # tanh-approx GELU fuses into the matmul epilogue (EUP slot), avoiding an HBM
        # round-trip of the (B*N, 4D) hidden activation.
        # TODO(synk): PyTorch nn.GELU default is the exact erf form; tanh approximation
        # differs by <~1e-3 (erf has no guaranteed Mosaic lowering).
        acc = 0.5 * acc * (1.0 + jnp.tanh(0.7978845608028654
                                          * (acc + 0.044715 * acc * acc * acc)))
    o_ref[...] = acc.astype(o_ref.dtype)


def _matmul_scale_res_kernel(x_ref, w_ref, b_ref, g_ref, r_ref, o_ref, acc_ref):
    # o = residual + gamma * (x @ w + b), K-tiled with an f32 VMEM accumulator.
    @pl.when(pl.program_id(1) == 0)
    def _():
        acc_ref[...] = jnp.zeros_like(acc_ref)

    acc_ref[...] += jnp.dot(x_ref[...], w_ref[...], preferred_element_type=jnp.float32)

    @pl.when(pl.program_id(1) == pl.num_programs(1) - 1)
    def _():
        y = acc_ref[...] + b_ref[...].astype(jnp.float32)
        o_ref[...] = (r_ref[...].astype(jnp.float32)
                      + g_ref[...].astype(jnp.float32) * y).astype(o_ref.dtype)


def _flash_attn_kernel(q_ref, k_ref, v_ref, o_ref, m_ref, l_ref, acc_ref, *, scale):
    # Online-softmax flash attention; grid = (B*H, q-tiles, kv-tiles) with the kv axis
    # innermost ("arbitrary"); m/l/acc are f32 VMEM scratch carried across kv tiles.
    # NOTE: the QK^T contraction dim is head_dim (e.g. 64) -> ~25% MXU utilization on
    # that matmul on v6e/v7x (256-wide); the P@V matmul contracts over the kv tile and
    # carries most of the FLOPs.
    ki = pl.program_id(2)

    @pl.when(ki == 0)
    def _():
        m_ref[...] = jnp.full_like(m_ref, -jnp.inf)
        l_ref[...] = jnp.zeros_like(l_ref)
        acc_ref[...] = jnp.zeros_like(acc_ref)

    # scale q (tq*Dh mults) instead of the (tq, tk) score matrix.
    q = (q_ref[0].astype(jnp.float32) * scale).astype(q_ref.dtype)
    k = k_ref[0]
    v = v_ref[0]
    s = jax.lax.dot_general(q, k, (((1,), (1,)), ((), ())),
                            preferred_element_type=jnp.float32)          # (tq, tk)

    m_prev = m_ref[...]
    m_new = jnp.maximum(m_prev, jnp.max(s, axis=-1, keepdims=True))
    alpha = jnp.exp(m_prev - m_new)
    p = jnp.exp(s - m_new)
    l_ref[...] = alpha * l_ref[...] + jnp.sum(p, axis=-1, keepdims=True)
    acc_ref[...] = alpha * acc_ref[...] + jnp.dot(p.astype(v.dtype), v,
                                                  preferred_element_type=jnp.float32)
    m_ref[...] = m_new

    @pl.when(ki == pl.num_programs(2) - 1)
    def _():
        inv = pl.reciprocal(l_ref[...], approx=True)
        o_ref[0] = (acc_ref[...] * inv).astype(o_ref.dtype)


# ----------------------------- Pallas wrappers -----------------------------

def pallas_patch_embed(x2d, w, b, pos, seq_len):
    M, K = x2d.shape
    N = w.shape[1]
    # row tile divides seq_len so the pos-embedding table can be indexed per block
    # (M = B * seq_len, so tm also divides M and never straddles a batch boundary).
    tm = _pick_row_tile(seq_len, _TM, _row_align(x2d.dtype), total_rows=M)
    n_pos = seq_len // tm
    return pl.pallas_call(
        _patch_embed_kernel,
        out_shape=jax.ShapeDtypeStruct((M, N), x2d.dtype),
        grid=(M // tm,),
        in_specs=[pl.BlockSpec((tm, K), lambda i: (i, 0)),
                  pl.BlockSpec((K, N), lambda i: (0, 0)),      # weight resident in VMEM
                  pl.BlockSpec((1, N), lambda i: (0, 0)),
                  pl.BlockSpec((tm, N), lambda i: (i % n_pos, 0))],
        out_specs=pl.BlockSpec((tm, N), lambda i: (i, 0)),
        compiler_params=_cparams(("parallel",)),
    )(x2d, w, b.reshape(1, N), pos)


def pallas_ln_matmul(x2d, ln_g, ln_b, w, bias, *, gelu=False, eps=1e-5):
    # LayerNorm needs the full feature row, so K stays un-tiled (K = D, small).
    # The weight is VMEM-resident (constant index_map -> DMA'd once); the grid only
    # tiles rows.  N is padded to a 128-lane multiple so the output stores stay dense.
    # TODO(synk): for very large N (weight > a few MiB) reintroduce a column grid axis.
    M, K = x2d.shape
    N = w.shape[1]
    n_pad = (-N) % 128
    if n_pad:
        w = jnp.pad(w, ((0, 0), (0, n_pad)))
        bias = jnp.pad(bias, (0, n_pad))
    Np = N + n_pad
    tm = _pick_row_tile(M, _TM, _row_align(x2d.dtype))
    out = pl.pallas_call(
        functools.partial(_ln_matmul_kernel, eps=eps, gelu=gelu),
        out_shape=jax.ShapeDtypeStruct((M, Np), x2d.dtype),
        grid=(M // tm,),
        in_specs=[pl.BlockSpec((tm, K), lambda i: (i, 0)),
                  pl.BlockSpec((1, K), lambda i: (0, 0)),
                  pl.BlockSpec((1, K), lambda i: (0, 0)),
                  pl.BlockSpec((K, Np), lambda i: (0, 0)),     # weight resident in VMEM
                  pl.BlockSpec((1, Np), lambda i: (0, 0))],
        out_specs=pl.BlockSpec((tm, Np), lambda i: (i, 0)),
        compiler_params=_cparams(("parallel",)),
    )(x2d, ln_g.reshape(1, K), ln_b.reshape(1, K), w, bias.reshape(1, Np))
    return out[:, :N] if n_pad else out


def pallas_matmul_scale_res(x2d, w, bias, gamma, res):
    # o = res + gamma * (x @ w + b); K-tiled accumulator, N weight-resident, residual
    # buffer aliased to the output.
    M, K = x2d.shape
    N = w.shape[1]
    tm = _pick_row_tile(M, _TM, _row_align(x2d.dtype))
    tk = _pick_tile(K, _TK, 128)
    return pl.pallas_call(
        _matmul_scale_res_kernel,
        out_shape=jax.ShapeDtypeStruct((M, N), res.dtype),
        grid=(M // tm, K // tk),
        in_specs=[pl.BlockSpec((tm, tk), lambda i, k: (i, k)),
                  pl.BlockSpec((tk, N), lambda i, k: (k, 0)),
                  pl.BlockSpec((1, N), lambda i, k: (0, 0)),
                  pl.BlockSpec((1, N), lambda i, k: (0, 0)),
                  pl.BlockSpec((tm, N), lambda i, k: (i, 0))],
        out_specs=pl.BlockSpec((tm, N), lambda i, k: (i, 0)),
        scratch_shapes=[pltpu.VMEM((tm, N), jnp.float32)],
        input_output_aliases={4: 0},   # residual buffer is reused for the output
        compiler_params=_cparams(("parallel", "arbitrary")),
    )(x2d, w, bias.reshape(1, N), gamma.reshape(1, N), res)


def pallas_flash_attention(q, k, v, scale):
    # q/k/v: (B*H, N, Dh).  Per-head tiles come in lane-dense via the BlockSpec DMA; the
    # online-softmax accumulators keep the (tq, tk) score tiles in VMEM even for long N,
    # and the (B*H, q-tiles) parallel axes shard across TensorCores.
    BH, N, Dh = q.shape
    align = _row_align(q.dtype)
    tq = _pick_tile(N, 128, align)
    tk = _pick_tile(N, 128, align)
    return pl.pallas_call(
        functools.partial(_flash_attn_kernel, scale=scale),
        out_shape=jax.ShapeDtypeStruct((BH, N, Dh), q.dtype),
        grid=(BH, N // tq, N // tk),
        in_specs=[pl.BlockSpec((1, tq, Dh), lambda b, qi, ki: (b, qi, 0)),
                  pl.BlockSpec((1, tk, Dh), lambda b, qi, ki: (b, ki, 0)),
                  pl.BlockSpec((1, tk, Dh), lambda b, qi, ki: (b, ki, 0))],
        out_specs=pl.BlockSpec((1, tq, Dh), lambda b, qi, ki: (b, qi, 0)),
        scratch_shapes=[pltpu.VMEM((tq, 1), jnp.float32),
                        pltpu.VMEM((tq, 1), jnp.float32),
                        pltpu.VMEM((tq, Dh), jnp.float32)],
        compiler_params=_cparams(("parallel", "parallel", "arbitrary")),
    )(q, k, v)


# ----------------------------- model (params + glue) -----------------------------

def sincos_pos_embed(n, d):
    pos = jnp.arange(n, dtype=jnp.float32)[:, None]
    i = jnp.arange(d, dtype=jnp.float32)[None, :]
    angle = pos / jnp.power(10000.0, 2.0 * jnp.floor(i / 2.0) / d)
    even = (jnp.arange(d) % 2 == 0)[None, :]
    return jnp.where(even, jnp.sin(angle), jnp.cos(angle)).astype(jnp.float32)


def xavier_uniform(key, fan_in, fan_out):
    bound = (6.0 / (fan_in + fan_out)) ** 0.5
    return jax.random.uniform(key, (fan_in, fan_out), jnp.float32, -bound, bound)


def init_params(key, cfg):
    D = cfg["embed_dim"]
    Cenc = cfg["encoder_embed_dim"]
    hidden = int(D * cfg["mlp_ratio"])
    out_dim = cfg["output_dim"]
    N = cfg["seq_len"]
    keys = jax.random.split(key, 4 + cfg["depth"] * 4)
    params = {
        "pe_w": xavier_uniform(keys[0], Cenc, D),          # decoder_patch_embed
        "pe_b": jnp.zeros((D,), jnp.float32),
        "pos_emb": sincos_pos_embed(N, D),                 # SinCosPositionalEmbedding (dropout=0)
        "norm_g": jnp.ones((D,), jnp.float32),
        "norm_b": jnp.zeros((D,), jnp.float32),
        "head_w": xavier_uniform(keys[1], D, out_dim),
        "head_b": jnp.zeros((out_dim,), jnp.float32),
        "blocks": [],
    }
    for i in range(cfg["depth"]):
        k0, k1, k2, k3 = keys[4 + 4 * i: 8 + 4 * i]
        params["blocks"].append({
            "ln1_g": jnp.ones((D,), jnp.float32), "ln1_b": jnp.zeros((D,), jnp.float32),
            "qkv_w": xavier_uniform(k0, D, 3 * D),
            "qkv_b": jnp.zeros((3 * D,), jnp.float32),     # qkv_bias=False -> zero bias
            "proj_w": xavier_uniform(k1, D, D),
            "proj_b": jnp.zeros((D,), jnp.float32),
            "gamma1": jnp.full((D,), cfg["init_values"], jnp.float32),
            "ln2_g": jnp.ones((D,), jnp.float32), "ln2_b": jnp.zeros((D,), jnp.float32),
            "fc1_w": xavier_uniform(k2, D, hidden),
            "fc1_b": jnp.zeros((hidden,), jnp.float32),
            "fc2_w": xavier_uniform(k3, hidden, D),
            "fc2_b": jnp.zeros((D,), jnp.float32),
            "gamma2": jnp.full((D,), cfg["init_values"], jnp.float32),
        })
    # bf16 weight/activation stream (f32 accumulation inside the kernels).
    return jax.tree_util.tree_map(lambda a: a.astype(COMPUTE_DTYPE), params)


def visual_decoder_forward(params, x, cfg):
    """x: (B, N, encoder_embed_dim) -> (B, N, 3*tubelet*patch*patch)"""
    B, N, Cenc = x.shape
    D = cfg["embed_dim"]
    H = cfg["num_heads"]
    Dh = D // H
    scale = cfg.get("qk_scale") or Dh ** -0.5

    x2 = x.reshape(B * N, Cenc).astype(COMPUTE_DTYPE)
    # decoder_patch_embed + sin-cos positional-embedding add, fused in one tiled kernel.
    x2 = pallas_patch_embed(x2, params["pe_w"], params["pe_b"], params["pos_emb"], N)

    for blk in params["blocks"]:
        # --- attention branch: LN1 fused into the QKV matmul; q/k/v re-laid out to
        #     (B*H, N, Dh) (cheap XLA layout plumbing that buys lane-dense per-head
        #     flash tiles); proj fused with gamma1*() + residual (residual aliased).
        qkv = pallas_ln_matmul(x2, blk["ln1_g"], blk["ln1_b"], blk["qkv_w"], blk["qkv_b"])
        qkv = qkv.reshape(B, N, 3, H, Dh)
        q = jnp.transpose(qkv[:, :, 0], (0, 2, 1, 3)).reshape(B * H, N, Dh)
        k = jnp.transpose(qkv[:, :, 1], (0, 2, 1, 3)).reshape(B * H, N, Dh)
        v = jnp.transpose(qkv[:, :, 2], (0, 2, 1, 3)).reshape(B * H, N, Dh)
        attn = pallas_flash_attention(q, k, v, scale)
        attn = jnp.transpose(attn.reshape(B, H, N, Dh), (0, 2, 1, 3)).reshape(B * N, D)
        x2 = pallas_matmul_scale_res(attn, blk["proj_w"], blk["proj_b"], blk["gamma1"], x2)

        # --- MLP branch: LN2 + fc1 + GELU fused; fc2 fused with gamma2*() + residual
        #     (K-tiled accumulator over the 4D hidden dimension).
        h = pallas_ln_matmul(x2, blk["ln2_g"], blk["ln2_b"], blk["fc1_w"], blk["fc1_b"],
                             gelu=True)
        x2 = pallas_matmul_scale_res(h, blk["fc2_w"], blk["fc2_b"], blk["gamma2"], x2)

    # final LayerNorm fused into the head projection (output padded to 128 lanes inside
    # the wrapper for dense stores, sliced back afterwards).
    out = pallas_ln_matmul(x2, params["norm_g"], params["norm_b"],
                           params["head_w"], params["head_b"])
    return out.reshape(B, N, -1)


# ----------------------------- main -----------------------------

if __name__ == "__main__":
    # Small, shape-consistent configuration of VisualDecoder (embed_dim kept
    # lane-aligned at 128 so matmul/attention tiles are lane-dense):
    img_size, patch_size, n_frames, tubelet_size = 16, 4, 4, 2
    cfg = dict(
        embed_dim=128,
        depth=2,
        num_heads=2,            # head_dim = 64
        mlp_ratio=4.0,
        encoder_embed_dim=256,
        init_values=1.0,
        qk_scale=None,
        output_dim=3 * tubelet_size * patch_size * patch_size,                  # 96
        seq_len=(img_size // patch_size) ** 2 * (n_frames // tubelet_size),     # 32
    )

    key = jax.random.PRNGKey(0)
    pkey, xkey = jax.random.split(key)
    params = init_params(pkey, cfg)

    B = 2
    x = jax.random.normal(xkey, (B, cfg["seq_len"], cfg["encoder_embed_dim"]), jnp.float32)

    forward = jax.jit(functools.partial(visual_decoder_forward, cfg=cfg))
    out = jax.block_until_ready(forward(params, x))
    assert out.shape == (B, cfg["seq_len"], cfg["output_dim"]), out.shape
    assert bool(jnp.all(jnp.isfinite(out.astype(jnp.float32))))
    print("KERNEL_OK")
</pallas_src>

<mosaic_0001>
module attributes {stable_mosaic.version = 11 : i64} {
  func.func @_ln_matmul_kernel(%arg0: i32, %arg1: memref<32x128xbf16, #tpu.memory_space<vmem>>, %arg2: memref<1x128xbf16, #tpu.memory_space<vmem>>, %arg3: memref<1x128xbf16, #tpu.memory_space<vmem>>, %arg4: memref<128x384xbf16, #tpu.memory_space<vmem>>, %arg5: memref<1x384xbf16, #tpu.memory_space<vmem>>, %arg6: memref<32x384xbf16, #tpu.memory_space<vmem>>) attributes {dimension_semantics = [#tpu.dimension_semantics<parallel>], iteration_bounds = array<i64: 2>, scalar_prefetch = 0 : i64, scratch_operands = 0 : i64, tpu.core_type = #tpu.core_type<tc>, window_params = [{transform_indices = @transform_0, window_bounds = array<i64: 32, 128>}, {pipeline_mode = #tpu.pipeline_mode<synchronous>, transform_indices = @transform_1, window_bounds = array<i64: 1, 128>}, {pipeline_mode = #tpu.pipeline_mode<synchronous>, transform_indices = @transform_2, window_bounds = array<i64: 1, 128>}, {pipeline_mode = #tpu.pipeline_mode<synchronous>, transform_indices = @transform_3, window_bounds = array<i64: 128, 384>}, {pipeline_mode = #tpu.pipeline_mode<synchronous>, transform_indices = @transform_4, window_bounds = array<i64: 1, 384>}, {transform_indices = @transform_5, window_bounds = array<i64: 32, 384>}]} {
    %c0 = arith.constant 0 : index
    %c0_0 = arith.constant 0 : index
    %0 = vector.load %arg1[%c0, %c0_0] : memref<32x128xbf16, #tpu.memory_space<vmem>>, vector<32x128xbf16>
    %1 = arith.extf %0 : vector<32x128xbf16> to vector<32x128xf32>
    %cst = arith.constant dense<0.000000e+00> : vector<32xf32>
    %2 = vector.multi_reduction <add>, %1, %cst [1] : vector<32x128xf32> to vector<32xf32>
    %3 = vector.shape_cast %2 : vector<32xf32> to vector<32x1xf32>
    %cst_1 = arith.constant 1.280000e+02 : f32
    %4 = vector.broadcast %cst_1 : f32 to vector<32x1xf32>
    %5 = arith.divf %3, %4 : vector<32x1xf32>
    %6 = vector.broadcast %5 : vector<32x1xf32> to vector<32x128xf32>
    %7 = arith.subf %1, %6 : vector<32x128xf32>
    %8 = arith.mulf %7, %7 : vector<32x128xf32>
    %cst_2 = arith.constant dense<0.000000e+00> : vector<32xf32>
    %9 = vector.multi_reduction <add>, %8, %cst_2 [1] : vector<32x128xf32> to vector<32xf32>
    %10 = vector.shape_cast %9 : vector<32xf32> to vector<32x1xf32>
    %cst_3 = arith.constant 1.280000e+02 : f32
    %11 = vector.broadcast %cst_3 : f32 to vector<32x1xf32>
    %12 = arith.divf %10, %11 : vector<32x1xf32>
    %cst_4 = arith.constant 9.99999974E-6 : f32
    %13 = vector.broadcast %cst_4 : f32 to vector<32x1xf32>
    %14 = arith.addf %12, %13 : vector<32x1xf32>
    %15 = math.rsqrt %14 : vector<32x1xf32>
    %16 = vector.broadcast %15 : vector<32x1xf32> to vector<32x128xf32>
    %17 = arith.mulf %7, %16 : vector<32x128xf32>
    %c0_5 = arith.constant 0 : index
    %c0_6 = arith.constant 0 : index
    %18 = vector.load %arg2[%c0_5, %c0_6] : memref<1x128xbf16, #tpu.memory_space<vmem>>, vector<1x128xbf16>
    %19 = arith.extf %18 : vector<1x128xbf16> to vector<1x128xf32>
    %20 = vector.broadcast %19 : vector<1x128xf32> to vector<32x128xf32>
    %21 = arith.mulf %17, %20 : vector<32x128xf32>
    %c0_7 = arith.constant 0 : index
    %c0_8 = arith.constant 0 : index
    %22 = vector.load %arg3[%c0_7, %c0_8] : memref<1x128xbf16, #tpu.memory_space<vmem>>, vector<1x128xbf16>
    %23 = arith.extf %22 : vector<1x128xbf16> to vector<1x128xf32>
    %24 = vector.broadcast %23 : vector<1x128xf32> to vector<32x128xf32>
    %25 = arith.addf %21, %24 : vector<32x128xf32>
    %26 = arith.truncf %25 : vector<32x128xf32> to vector<32x128xbf16>
    %c0_9 = arith.constant 0 : index
    %c0_10 = arith.constant 0 : index
    %27 = vector.load %arg4[%c0_9, %c0_10] : memref<128x384xbf16, #tpu.memory_space<vmem>>, vector<128x384xbf16>
    %cst_11 = arith.constant dense<0.000000e+00> : vector<32x384xf32>
    %28 = tpu.matmul %26, %27, %cst_11 {dimension_numbers = #tpu.dot_dimension_numbers<[1], [0], [0], [1], [0, 0, 1, 1], [], []>} : vector<32x128xbf16>, vector<128x384xbf16>, vector<32x384xf32> -> vector<32x384xf32>
    %c0_12 = arith.constant 0 : index
    %c0_13 = arith.constant 0 : index
    %29 = vector.load %arg5[%c0_12, %c0_13] : memref<1x384xbf16, #tpu.memory_space<vmem>>, vector<1x384xbf16>
    %30 = arith.extf %29 : vector<1x384xbf16> to vector<1x384xf32>
    %31 = vector.broadcast %30 : vector<1x384xf32> to vector<32x384xf32>
    %32 = arith.addf %28, %31 : vector<32x384xf32>
    %33 = arith.truncf %32 : vector<32x384xf32> to vector<32x384xbf16>
    %c0_14 = arith.constant 0 : index
    %c0_15 = arith.constant 0 : index
    %34 = vector.load %arg6[%c0_14, %c0_15] : memref<32x384xbf16, #tpu.memory_space<vmem>>, vector<32x384xbf16>
    tpu.vector_store %arg6[%c0_14, %c0_15], %33 {strides = array<i32>} : memref<32x384xbf16, #tpu.memory_space<vmem>>, vector<32x384xbf16>,
    return
  }
  func.func @transform_0(%arg0: i32) -> (i32, i32) {
    %c0_i32 = arith.constant 0 : i32
    %c0_i32_0 = arith.constant 0 : i32
    return %arg0, %c0_i32 : i32, i32
  }
  func.func @transform_1(%arg0: i32) -> (i32, i32) {
    %c0_i32 = arith.constant 0 : i32
    %c0_i32_0 = arith.constant 0 : i32
    %c0_i32_1 = arith.constant 0 : i32
    return %c0_i32, %c0_i32_0 : i32, i32
  }
  func.func @transform_2(%arg0: i32) -> (i32, i32) {
    %c0_i32 = arith.constant 0 : i32
    %c0_i32_0 = arith.constant 0 : i32
    %c0_i32_1 = arith.constant 0 : i32
    return %c0_i32, %c0_i32_0 : i32, i32
  }
  func.func @transform_3(%arg0: i32) -> (i32, i32) {
    %c0_i32 = arith.constant 0 : i32
    %c0_i32_0 = arith.constant 0 : i32
    %c0_i32_1 = arith.constant 0 : i32
    return %c0_i32, %c0_i32_0 : i32, i32
  }
  func.func @transform_4(%arg0: i32) -> (i32, i32) {
    %c0_i32 = arith.constant 0 : i32
    %c0_i32_0 = arith.constant 0 : i32
    %c0_i32_1 = arith.constant 0 : i32
    return %c0_i32, %c0_i32_0 : i32, i32
  }
  func.func @transform_5(%arg0: i32) -> (i32, i32) {
    %c0_i32 = arith.constant 0 : i32
    %c0_i32_0 = arith.constant 0 : i32
    return %arg0, %c0_i32 : i32, i32
  }
}

module attributes {stable_mosaic.version = 11 : i64} {
  func.func @_patch_embed_kernel(%arg0: i32, %arg1: memref<32x256xbf16, #tpu.memory_space<vmem>>, %arg2: memref<256x128xbf16, #tpu.memory_space<vmem>>, %arg3: memref<1x128xbf16, #tpu.memory_space<vmem>>, %arg4: memref<32x128xbf16, #tpu.memory_space<vmem>>, %arg5: memref<32x128xbf16, #tpu.memory_space<vmem>>) attributes {dimension_semantics = [#tpu.dimension_semantics<parallel>], iteration_bounds = array<i64: 2>, scalar_prefetch = 0 : i64, scratch_operands = 0 : i64, tpu.core_type = #tpu.core_type<tc>, window_params = [{transform_indices = @transform_0, window_bounds = array<i64: 32, 256>}, {pipeline_mode = #tpu.pipeline_mode<synchronous>, transform_indices = @transform_1, window_bounds = array<i64: 256, 128>}, {pipeline_mode = #tpu.pipeline_mode<synchronous>, transform_indices = @transform_2, window_bounds = array<i64: 1, 128>}, {transform_indices = @transform_3, window_bounds = array<i64: 32, 128>}, {transform_indices = @transform_4, window_bounds = array<i64: 32, 128>}]} {
    %c0 = arith.constant 0 : index
    %c0_0 = arith.constant 0 : index
    %0 = vector.load %arg1[%c0, %c0_0] : memref<32x256xbf16, #tpu.memory_space<vmem>>, vector<32x256xbf16>
    %c0_1 = arith.constant 0 : index
    %c0_2 = arith.constant 0 : index
    %1 = vector.load %arg2[%c0_1, %c0_2] : memref<256x128xbf16, #tpu.memory_space<vmem>>, vector<256x128xbf16>
    %cst = arith.constant dense<0.000000e+00> : vector<32x128xf32>
    %2 = tpu.matmul %0, %1, %cst {dimension_numbers = #tpu.dot_dimension_numbers<[1], [0], [0], [1], [0, 0, 1, 1], [], []>} : vector<32x256xbf16>, vector<256x128xbf16>, vector<32x128xf32> -> vector<32x128xf32>
    %c0_3 = arith.constant 0 : index
    %c0_4 = arith.constant 0 : index
    %3 = vector.load %arg3[%c0_3, %c0_4] : memref<1x128xbf16, #tpu.memory_space<vmem>>, vector<1x128xbf16>
    %4 = arith.extf %3 : vector<1x128xbf16> to vector<1x128xf32>
    %5 = vector.broadcast %4 : vector<1x128xf32> to vector<32x128xf32>
    %6 = arith.addf %2, %5 : vector<32x128xf32>
    %c0_5 = arith.constant 0 : index
    %c0_6 = arith.constant 0 : index
    %7 = vector.load %arg4[%c0_5, %c0_6] : memref<32x128xbf16, #tpu.memory_space<vmem>>, vector<32x128xbf16>
    %8 = arith.extf %7 : vector<32x128xbf16> to vector<32x128xf32>
    %9 = arith.addf %6, %8 : vector<32x128xf32>
    %10 = arith.truncf %9 : vector<32x128xf32> to vector<32x128xbf16>
    %c0_7 = arith.constant 0 : index
    %c0_8 = arith.constant 0 : index
    %11 = vector.load %arg5[%c0_7, %c0_8] : memref<32x128xbf16, #tpu.memory_space<vmem>>, vector<32x128xbf16>
    tpu.vector_store %arg5[%c0_7, %c0_8], %10 {strides = array<i32>} : memref<32x128xbf16, #tpu.memory_space<vmem>>, vector<32x128xbf16>,
    return
  }
  func.func @transform_0(%arg0: i32) -> (i32, i32) {
    %c0_i32 = arith.constant 0 : i32
    %c0_i32_0 = arith.constant 0 : i32
    return %arg0, %c0_i32 : i32, i32
  }
  func.func @transform_1(%arg0: i32) -> (i32, i32) {
    %c0_i32 = arith.constant 0 : i32
    %c0_i32_0 = arith.constant 0 : i32
    %c0_i32_1 = arith.constant 0 : i32
    return %c0_i32, %c0_i32_0 : i32, i32
  }
  func.func @transform_2(%arg0: i32) -> (i32, i32) {
    %c0_i32 = arith.constant 0 : i32
    %c0_i32_0 = arith.constant 0 : i32
    %c0_i32_1 = arith.constant 0 : i32
    return %c0_i32, %c0_i32_0 : i32, i32
  }
  func.func @transform_3(%arg0: i32) -> (i32, i32) {
    %c1_i32 = arith.constant 1 : i32
    %c0_i32 = arith.constant 0 : i32
    %0 = arith.cmpi eq, %c1_i32, %c0_i32 : i32
    %c1_i32_0 = arith.constant 1 : i32
    %1 = arith.select %0, %c1_i32_0, %c1_i32 : i32
    %2 = arith.remsi %arg0, %1 : i32
    %c0_i32_1 = arith.constant 0 : i32
    %3 = arith.cmpi ne, %2, %c0_i32_1 : i32
    %c0_i32_2 = arith.constant 0 : i32
    %4 = arith.cmpi slt, %2, %c0_i32_2 : i32
    %c0_i32_3 = arith.constant 0 : i32
    %5 = arith.cmpi slt, %1, %c0_i32_3 : i32
    %6 = arith.xori %4, %5 : i1
    %7 = arith.andi %6, %3 : i1
    %8 = arith.addi %2, %1 : i32
    %9 = arith.select %7, %8, %2 : i32
    %c0_i32_4 = arith.constant 0 : i32
    %c0_i32_5 = arith.constant 0 : i32
    return %9, %c0_i32_4 : i32, i32
  }
  func.func @transform_4(%arg0: i32) -> (i32, i32) {
    %c0_i32 = arith.constant 0 : i32
    %c0_i32_0 = arith.constant 0 : i32
    return %arg0, %c0_i32 : i32, i32
  }
}

module attributes {stable_mosaic.version = 11 : i64} {
  func.func @_flash_attn_kernel(%arg0: i32, %arg1: i32, %arg2: i32, %arg3: memref<1x32x64xbf16, #tpu.memory_space<vmem>>, %arg4: memref<1x32x64xbf16, #tpu.memory_space<vmem>>, %arg5: memref<1x32x64xbf16, #tpu.memory_space<vmem>>, %arg6: memref<1x32x64xbf16, #tpu.memory_space<vmem>>, %arg7: memref<32x1xf32, #tpu.memory_space<vmem>>, %arg8: memref<32x1xf32, #tpu.memory_space<vmem>>, %arg9: memref<32x64xf32, #tpu.memory_space<vmem>>) attributes {dimension_semantics = [#tpu.dimension_semantics<parallel>, #tpu.dimension_semantics<parallel>, #tpu.dimension_semantics<arbitrary>], iteration_bounds = array<i64: 4, 1, 1>, scalar_prefetch = 0 : i64, scratch_operands = 3 : i64, tpu.core_type = #tpu.core_type<tc>, window_params = [{transform_indices = @transform_0, window_bounds = array<i64: 1, 32, 64>}, {transform_indices = @transform_1, window_bounds = array<i64: 1, 32, 64>}, {transform_indices = @transform_2, window_bounds = array<i64: 1, 32, 64>}, {transform_indices = @transform_3, window_bounds = array<i64: 1, 32, 64>}]} {
    %c0_i32 = arith.constant 0 : i32
    %0 = arith.cmpi eq, %arg2, %c0_i32 : i32
    %1 = arith.extui %0 : i1 to i32
    %c0_i32_0 = arith.constant 0 : i32
    %2 = arith.cmpi ne, %1, %c0_i32_0 : i32
    scf.if %2 {
      %cst_27 = arith.constant 0xFF800000 : f32
      %40 = vector.broadcast %cst_27 : f32 to vector<32x1xf32>
      %c0_28 = arith.constant 0 : index
      %c0_29 = arith.constant 0 : index
      %41 = vector.load %arg7[%c0_28, %c0_29] : memref<32x1xf32, #tpu.memory_space<vmem>>, vector<32x1xf32>
      tpu.vector_store %arg7[%c0_28, %c0_29], %40 {strides = array<i32>} : memref<32x1xf32, #tpu.memory_space<vmem>>, vector<32x1xf32>,
      %cst_30 = arith.constant 0.000000e+00 : f32
      %42 = vector.broadcast %cst_30 : f32 to vector<32x1xf32>
      %c0_31 = arith.constant 0 : index
      %c0_32 = arith.constant 0 : index
      %43 = vector.load %arg8[%c0_31, %c0_32] : memref<32x1xf32, #tpu.memory_space<vmem>>, vector<32x1xf32>
      tpu.vector_store %arg8[%c0_31, %c0_32], %42 {strides = array<i32>} : memref<32x1xf32, #tpu.memory_space<vmem>>, vector<32x1xf32>,
      %cst_33 = arith.constant 0.000000e+00 : f32
      %44 = vector.broadcast %cst_33 : f32 to vector<32x64xf32>
      %c0_34 = arith.constant 0 : index
      %c0_35 = arith.constant 0 : index
      %45 = vector.load %arg9[%c0_34, %c0_35] : memref<32x64xf32, #tpu.memory_space<vmem>>, vector<32x64xf32>
      tpu.vector_store %arg9[%c0_34, %c0_35], %44 {strides = array<i32>} : memref<32x64xf32, #tpu.memory_space<vmem>>, vector<32x64xf32>,
    } else {
    }
    %c0 = arith.constant 0 : index
    %c0_1 = arith.constant 0 : index
    %c0_2 = arith.constant 0 : index
    %3 = vector.load %arg3[%c0, %c0_1, %c0_2] : memref<1x32x64xbf16, #tpu.memory_space<vmem>>, vector<1x32x64xbf16>
    %4 = vector.shape_cast %3 : vector<1x32x64xbf16> to vector<32x64xbf16>
    %5 = arith.extf %4 : vector<32x64xbf16> to vector<32x64xf32>
    %cst = arith.constant 1.250000e-01 : f32
    %6 = vector.broadcast %cst : f32 to vector<32x64xf32>
    %7 = arith.mulf %5, %6 : vector<32x64xf32>
    %8 = arith.truncf %7 : vector<32x64xf32> to vector<32x64xbf16>
    %c0_3 = arith.constant 0 : index
    %c0_4 = arith.constant 0 : index
    %c0_5 = arith.constant 0 : index
    %9 = vector.load %arg4[%c0_3, %c0_4, %c0_5] : memref<1x32x64xbf16, #tpu.memory_space<vmem>>, vector<1x32x64xbf16>
    %10 = vector.shape_cast %9 : vector<1x32x64xbf16> to vector<32x64xbf16>
    %c0_6 = arith.constant 0 : index
    %c0_7 = arith.constant 0 : index
    %c0_8 = arith.constant 0 : index
    %11 = vector.load %arg5[%c0_6, %c0_7, %c0_8] : memref<1x32x64xbf16, #tpu.memory_space<vmem>>, vector<1x32x64xbf16>
    %12 = vector.shape_cast %11 : vector<1x32x64xbf16> to vector<32x64xbf16>
    %cst_9 = arith.constant dense<0.000000e+00> : vector<32x32xf32>
    %13 = tpu.matmul %8, %10, %cst_9 {dimension_numbers = #tpu.dot_dimension_numbers<[1], [1], [0], [0], [0, 0, 1, 0], [], []>} : vector<32x64xbf16>, vector<32x64xbf16>, vector<32x32xf32> -> vector<32x32xf32>
    %c0_10 = arith.constant 0 : index
    %c0_11 = arith.constant 0 : index
    %14 = vector.load %arg7[%c0_10, %c0_11] : memref<32x1xf32, #tpu.memory_space<vmem>>, vector<32x1xf32>
    %cst_12 = arith.constant dense<0xFF800000> : vector<32xf32>
    %15 = vector.multi_reduction <maximumf>, %13, %cst_12 [1] : vector<32x32xf32> to vector<32xf32>
    %16 = vector.shape_cast %15 : vector<32xf32> to vector<32x1xf32>
    %17 = arith.maximumf %14, %16 : vector<32x1xf32>
    %18 = arith.subf %14, %17 : vector<32x1xf32>
    %19 = math.exp %18 : vector<32x1xf32>
    %20 = vector.broadcast %17 : vector<32x1xf32> to vector<32x32xf32>
    %21 = arith.subf %13, %20 : vector<32x32xf32>
    %22 = math.exp %21 : vector<32x32xf32>
    %c0_13 = arith.constant 0 : index
    %c0_14 = arith.constant 0 : index
    %23 = vector.load %arg8[%c0_13, %c0_14] : memref<32x1xf32, #tpu.memory_space<vmem>>, vector<32x1xf32>
    %24 = arith.mulf %19, %23 : vector<32x1xf32>
    %cst_15 = arith.constant dense<0.000000e+00> : vector<32xf32>
    %25 = vector.multi_reduction <add>, %22, %cst_15 [1] : vector<32x32xf32> to vector<32xf32>
    %26 = vector.shape_cast %25 : vector<32xf32> to vector<32x1xf32>
    %27 = arith.addf %24, %26 : vector<32x1xf32>
    %c0_16 = arith.constant 0 : index
    %c0_17 = arith.constant 0 : index
    %28 = vector.load %arg8[%c0_16, %c0_17] : memref<32x1xf32, #tpu.memory_space<vmem>>, vector<32x1xf32>
    tpu.vector_store %arg8[%c0_16, %c0_17], %27 {strides = array<i32>} : memref<32x1xf32, #tpu.memory_space<vmem>>, vector<32x1xf32>,
    %c0_18 = arith.constant 0 : index
    %c0_19 = arith.constant 0 : index
    %29 = vector.load %arg9[%c0_18, %c0_19] : memref<32x64xf32, #tpu.memory_space<vmem>>, vector<32x64xf32>
    %30 = vector.broadcast %19 : vector<32x1xf32> to vector<32x64xf32>
    %31 = arith.mulf %30, %29 : vector<32x64xf32>
    %32 = arith.truncf %22 : vector<32x32xf32> to vector<32x32xbf16>
    %cst_20 = arith.constant dense<0.000000e+00> : vector<32x64xf32>
    %33 = tpu.matmul %32, %12, %cst_20 {dimension_numbers = #tpu.dot_dimension_numbers<[1], [0], [0], [1], [0, 0, 1, 1], [], []>} : vector<32x32xbf16>, vector<32x64xbf16>, vector<32x64xf32> -> vector<32x64xf32>
    %34 = arith.addf %31, %33 : vector<32x64xf32>
    %c0_21 = arith.constant 0 : index
    %c0_22 = arith.constant 0 : index
    %35 = vector.load %arg9[%c0_21, %c0_22] : memref<32x64xf32, #tpu.memory_space<vmem>>, vector<32x64xf32>
    tpu.vector_store %arg9[%c0_21, %c0_22], %34 {strides = array<i32>} : memref<32x64xf32, #tpu.memory_space<vmem>>, vector<32x64xf32>,
    %c0_23 = arith.constant 0 : index
    %c0_24 = arith.constant 0 : index
    %36 = vector.load %arg7[%c0_23, %c0_24] : memref<32x1xf32, #tpu.memory_space<vmem>>, vector<32x1xf32>
    tpu.vector_store %arg7[%c0_23, %c0_24], %17 {strides = array<i32>} : memref<32x1xf32, #tpu.memory_space<vmem>>, vector<32x1xf32>,
    %c0_i32_25 = arith.constant 0 : i32
    %37 = arith.cmpi eq, %arg2, %c0_i32_25 : i32
    %38 = arith.extui %37 : i1 to i32
    %c0_i32_26 = arith.constant 0 : i32
    %39 = arith.cmpi ne, %38, %c0_i32_26 : i32
    scf.if %39 {
      %c0_27 = arith.constant 0 : index
      %c0_28 = arith.constant 0 : index
      %40 = vector.load %arg8[%c0_27, %c0_28] : memref<32x1xf32, #tpu.memory_space<vmem>>, vector<32x1xf32>
      %41 = tpu.reciprocal %40 {approx = true} : vector<32x1xf32> -> vector<32x1xf32>
      %c0_29 = arith.constant 0 : index
      %c0_30 = arith.constant 0 : index
      %42 = vector.load %arg9[%c0_29, %c0_30] : memref<32x64xf32, #tpu.memory_space<vmem>>, vector<32x64xf32>
      %43 = vector.broadcast %41 : vector<32x1xf32> to vector<32x64xf32>
      %44 = arith.mulf %42, %43 : vector<32x64xf32>
      %45 = arith.truncf %44 : vector<32x64xf32> to vector<32x64xbf16>
      %c0_31 = arith.constant 0 : index
      %c0_32 = arith.constant 0 : index
      %c0_33 = arith.constant 0 : index
      %46 = vector.load %arg6[%c0_31, %c0_32, %c0_33] : memref<1x32x64xbf16, #tpu.memory_space<vmem>>, vector<1x32x64xbf16>
      %47 = vector.shape_cast %46 : vector<1x32x64xbf16> to vector<32x64xbf16>
      %48 = vector.shape_cast %45 : vector<32x64xbf16> to vector<1x32x64xbf16>
      tpu.vector_store %arg6[%c0_31, %c0_32, %c0_33], %48 {strides = array<i32>} : memref<1x32x64xbf16, #tpu.memory_space<vmem>>, vector<1x32x64xbf16>,
    } else {
    }
    return
  }
  func.func @transform_0(%arg0: i32, %arg1: i32, %arg2: i32) -> (i32, i32, i32) {
    %c0_i32 = arith.constant 0 : i32
    %c0_i32_0 = arith.constant 0 : i32
    return %arg0, %arg1, %c0_i32 : i32, i32, i32
  }
  func.func @transform_1(%arg0: i32, %arg1: i32, %arg2: i32) -> (i32, i32, i32) {
    %c0_i32 = arith.constant 0 : i32
    %c0_i32_0 = arith.constant 0 : i32
    return %arg0, %arg2, %c0_i32 : i32, i32, i32
  }
  func.func @transform_2(%arg0: i32, %arg1: i32, %arg2: i32) -> (i32, i32, i32) {
    %c0_i32 = arith.constant 0 : i32
    %c0_i32_0 = arith.constant 0 : i32
    return %arg0, %arg2, %c0_i32 : i32, i32, i32
  }
  func.func @transform_3(%arg0: i32, %arg1: i32, %arg2: i32) -> (i32, i32, i32) {
    %c0_i32 = arith.constant 0 : i32
    %c0_i32_0 = arith.constant 0 : i32
    return %arg0, %arg1, %c0_i32 : i32, i32, i32
  }
}

module attributes {stable_mosaic.version = 11 : i64} {
  func.func @_matmul_scale_res_kernel(%arg0: i32, %arg1: i32, %arg2: memref<32x128xbf16, #tpu.memory_space<vmem>>, %arg3: memref<128x128xbf16, #tpu.memory_space<vmem>>, %arg4: memref<1x128xbf16, #tpu.memory_space<vmem>>, %arg5: memref<1x128xbf16, #tpu.memory_space<vmem>>, %arg6: memref<32x128xbf16, #tpu.memory_space<vmem>>, %arg7: memref<32x128xbf16, #tpu.memory_space<vmem>>, %arg8: memref<32x128xf32, #tpu.memory_space<vmem>>) attributes {dimension_semantics = [#tpu.dimension_semantics<parallel>, #tpu.dimension_semantics<arbitrary>], iteration_bounds = array<i64: 2, 1>, scalar_prefetch = 0 : i64, scratch_operands = 1 : i64, tpu.core_type = #tpu.core_type<tc>, window_params = [{transform_indices = @transform_0, window_bounds = array<i64: 32, 128>}, {transform_indices = @transform_1, window_bounds = array<i64: 128, 128>}, {pipeline_mode = #tpu.pipeline_mode<synchronous>, transform_indices = @transform_2, window_bounds = array<i64: 1, 128>}, {pipeline_mode = #tpu.pipeline_mode<synchronous>, transform_indices = @transform_3, window_bounds = array<i64: 1, 128>}, {transform_indices = @transform_4, window_bounds = array<i64: 32, 128>}, {transform_indices = @transform_5, window_bounds = array<i64: 32, 128>}]} {
    %c0_i32 = arith.constant 0 : i32
    %0 = arith.cmpi eq, %arg1, %c0_i32 : i32
    %1 = arith.extui %0 : i1 to i32
    %c0_i32_0 = arith.constant 0 : i32
    %2 = arith.cmpi ne, %1, %c0_i32_0 : i32
    scf.if %2 {
      %cst_10 = arith.constant 0.000000e+00 : f32
      %12 = vector.broadcast %cst_10 : f32 to vector<32x128xf32>
      %c0_11 = arith.constant 0 : index
      %c0_12 = arith.constant 0 : index
      %13 = vector.load %arg8[%c0_11, %c0_12] : memref<32x128xf32, #tpu.memory_space<vmem>>, vector<32x128xf32>
      tpu.vector_store %arg8[%c0_11, %c0_12], %12 {strides = array<i32>} : memref<32x128xf32, #tpu.memory_space<vmem>>, vector<32x128xf32>,
    } else {
    }
    %c0 = arith.constant 0 : index
    %c0_1 = arith.constant 0 : index
    %3 = vector.load %arg8[%c0, %c0_1] : memref<32x128xf32, #tpu.memory_space<vmem>>, vector<32x128xf32>
    %c0_2 = arith.constant 0 : index
    %c0_3 = arith.constant 0 : index
    %4 = vector.load %arg2[%c0_2, %c0_3] : memref<32x128xbf16, #tpu.memory_space<vmem>>, vector<32x128xbf16>
    %c0_4 = arith.constant 0 : index
    %c0_5 = arith.constant 0 : index
    %5 = vector.load %arg3[%c0_4, %c0_5] : memref<128x128xbf16, #tpu.memory_space<vmem>>, vector<128x128xbf16>
    %cst = arith.constant dense<0.000000e+00> : vector<32x128xf32>
    %6 = tpu.matmul %4, %5, %cst {dimension_numbers = #tpu.dot_dimension_numbers<[1], [0], [0], [1], [0, 0, 1, 1], [], []>} : vector<32x128xbf16>, vector<128x128xbf16>, vector<32x128xf32> -> vector<32x128xf32>
    %7 = arith.addf %3, %6 : vector<32x128xf32>
    %c0_6 = arith.constant 0 : index
    %c0_7 = arith.constant 0 : index
    %8 = vector.load %arg8[%c0_6, %c0_7] : memref<32x128xf32, #tpu.memory_space<vmem>>, vector<32x128xf32>
    tpu.vector_store %arg8[%c0_6, %c0_7], %7 {strides = array<i32>} : memref<32x128xf32, #tpu.memory_space<vmem>>, vector<32x128xf32>,
    %c0_i32_8 = arith.constant 0 : i32
    %9 = arith.cmpi eq, %arg1, %c0_i32_8 : i32
    %10 = arith.extui %9 : i1 to i32
    %c0_i32_9 = arith.constant 0 : i32
    %11 = arith.cmpi ne, %10, %c0_i32_9 : i32
    scf.if %11 {
      %c0_10 = arith.constant 0 : index
      %c0_11 = arith.constant 0 : index
      %12 = vector.load %arg8[%c0_10, %c0_11] : memref<32x128xf32, #tpu.memory_space<vmem>>, vector<32x128xf32>
      %c0_12 = arith.constant 0 : index
      %c0_13 = arith.constant 0 : index
      %13 = vector.load %arg4[%c0_12, %c0_13] : memref<1x128xbf16, #tpu.memory_space<vmem>>, vector<1x128xbf16>
      %14 = arith.extf %13 : vector<1x128xbf16> to vector<1x128xf32>
      %15 = vector.broadcast %14 : vector<1x128xf32> to vector<32x128xf32>
      %16 = arith.addf %12, %15 : vector<32x128xf32>
      %c0_14 = arith.constant 0 : index
      %c0_15 = arith.constant 0 : index
      %17 = vector.load %arg6[%c0_14, %c0_15] : memref<32x128xbf16, #tpu.memory_space<vmem>>, vector<32x128xbf16>
      %18 = arith.extf %17 : vector<32x128xbf16> to vector<32x128xf32>
      %c0_16 = arith.constant 0 : index
      %c0_17 = arith.constant 0 : index
      %19 = vector.load %arg5[%c0_16, %c0_17] : memref<1x128xbf16, #tpu.memory_space<vmem>>, vector<1x128xbf16>
      %20 = arith.extf %19 : vector<1x128xbf16> to vector<1x128xf32>
      %21 = vector.broadcast %20 : vector<1x128xf32> to vector<32x128xf32>
      %22 = arith.mulf %21, %16 : vector<32x128xf32>
      %23 = arith.addf %18, %22 : vector<32x128xf32>
      %24 = arith.truncf %23 : vector<32x128xf32> to vector<32x128xbf16>
      %c0_18 = arith.constant 0 : index
      %c0_19 = arith.constant 0 : index
      %25 = vector.load %arg7[%c0_18, %c0_19] : memref<32x128xbf16, #tpu.memory_space<vmem>>, vector<32x128xbf16>
      tpu.vector_store %arg7[%c0_18, %c0_19], %24 {strides = array<i32>} : memref<32x128xbf16, #tpu.memory_space<vmem>>, vector<32x128xbf16>,
    } else {
    }
    return
  }
  func.func @transform_0(%arg0: i32, %arg1: i32) -> (i32, i32) {
    %c0_i32 = arith.constant 0 : i32
    return %arg0, %arg1 : i32, i32
  }
  func.func @transform_1(%arg0: i32, %arg1: i32) -> (i32, i32) {
    %c0_i32 = arith.constant 0 : i32
    %c0_i32_0 = arith.constant 0 : i32
    return %arg1, %c0_i32 : i32, i32
  }
  func.func @transform_2(%arg0: i32, %arg1: i32) -> (i32, i32) {
    %c0_i32 = arith.constant 0 : i32
    %c0_i32_0 = arith.constant 0 : i32
    %c0_i32_1 = arith.constant 0 : i32
    return %c0_i32, %c0_i32_0 : i32, i32
  }
  func.func @transform_3(%arg0: i32, %arg1: i32) -> (i32, i32) {
    %c0_i32 = arith.constant 0 : i32
    %c0_i32_0 = arith.constant 0 : i32
    %c0_i32_1 = arith.constant 0 : i32
    return %c0_i32, %c0_i32_0 : i32, i32
  }
  func.func @transform_4(%arg0: i32, %arg1: i32) -> (i32, i32) {
    %c0_i32 = arith.constant 0 : i32
    %c0_i32_0 = arith.constant 0 : i32
    return %arg0, %c0_i32 : i32, i32
  }
  func.func @transform_5(%arg0: i32, %arg1: i32) -> (i32, i32) {
    %c0_i32 = arith.constant 0 : i32
    %c0_i32_0 = arith.constant 0 : i32
    return %arg0, %c0_i32 : i32, i32
  }
}

module attributes {stable_mosaic.version = 11 : i64} {
  func.func @_matmul_scale_res_kernel(%arg0: i32, %arg1: i32, %arg2: memref<32x512xbf16, #tpu.memory_space<vmem>>, %arg3: memref<512x128xbf16, #tpu.memory_space<vmem>>, %arg4: memref<1x128xbf16, #tpu.memory_space<vmem>>, %arg5: memref<1x128xbf16, #tpu.memory_space<vmem>>, %arg6: memref<32x128xbf16, #tpu.memory_space<vmem>>, %arg7: memref<32x128xbf16, #tpu.memory_space<vmem>>, %arg8: memref<32x128xf32, #tpu.memory_space<vmem>>) attributes {dimension_semantics = [#tpu.dimension_semantics<parallel>, #tpu.dimension_semantics<arbitrary>], iteration_bounds = array<i64: 2, 1>, scalar_prefetch = 0 : i64, scratch_operands = 1 : i64, tpu.core_type = #tpu.core_type<tc>, window_params = [{transform_indices = @transform_0, window_bounds = array<i64: 32, 512>}, {transform_indices = @transform_1, window_bounds = array<i64: 512, 128>}, {pipeline_mode = #tpu.pipeline_mode<synchronous>, transform_indices = @transform_2, window_bounds = array<i64: 1, 128>}, {pipeline_mode = #tpu.pipeline_mode<synchronous>, transform_indices = @transform_3, window_bounds = array<i64: 1, 128>}, {transform_indices = @transform_4, window_bounds = array<i64: 32, 128>}, {transform_indices = @transform_5, window_bounds = array<i64: 32, 128>}]} {
    %c0_i32 = arith.constant 0 : i32
    %0 = arith.cmpi eq, %arg1, %c0_i32 : i32
    %1 = arith.extui %0 : i1 to i32
    %c0_i32_0 = arith.constant 0 : i32
    %2 = arith.cmpi ne, %1, %c0_i32_0 : i32
    scf.if %2 {
      %cst_10 = arith.constant 0.000000e+00 : f32
      %12 = vector.broadcast %cst_10 : f32 to vector<32x128xf32>
      %c0_11 = arith.constant 0 : index
      %c0_12 = arith.constant 0 : index
      %13 = vector.load %arg8[%c0_11, %c0_12] : memref<32x128xf32, #tpu.memory_space<vmem>>, vector<32x128xf32>
      tpu.vector_store %arg8[%c0_11, %c0_12], %12 {strides = array<i32>} : memref<32x128xf32, #tpu.memory_space<vmem>>, vector<32x128xf32>,
    } else {
    }
    %c0 = arith.constant 0 : index
    %c0_1 = arith.constant 0 : index
    %3 = vector.load %arg8[%c0, %c0_1] : memref<32x128xf32, #tpu.memory_space<vmem>>, vector<32x128xf32>
    %c0_2 = arith.constant 0 : index
    %c0_3 = arith.constant 0 : index
    %4 = vector.load %arg2[%c0_2, %c0_3] : memref<32x512xbf16, #tpu.memory_space<vmem>>, vector<32x512xbf16>
    %c0_4 = arith.constant 0 : index
    %c0_5 = arith.constant 0 : index
    %5 = vector.load %arg3[%c0_4, %c0_5] : memref<512x128xbf16, #tpu.memory_space<vmem>>, vector<512x128xbf16>
    %cst = arith.constant dense<0.000000e+00> : vector<32x128xf32>
    %6 = tpu.matmul %4, %5, %cst {dimension_numbers = #tpu.dot_dimension_numbers<[1], [0], [0], [1], [0, 0, 1, 1], [], []>} : vector<32x512xbf16>, vector<512x128xbf16>, vector<32x128xf32> -> vector<32x128xf32>
    %7 = arith.addf %3, %6 : vector<32x128xf32>
    %c0_6 = arith.constant 0 : index
    %c0_7 = arith.constant 0 : index
    %8 = vector.load %arg8[%c0_6, %c0_7] : memref<32x128xf32, #tpu.memory_space<vmem>>, vector<32x128xf32>
    tpu.vector_store %arg8[%c0_6, %c0_7], %7 {strides = array<i32>} : memref<32x128xf32, #tpu.memory_space<vmem>>, vector<32x128xf32>,
    %c0_i32_8 = arith.constant 0 : i32
    %9 = arith.cmpi eq, %arg1, %c0_i32_8 : i32
    %10 = arith.extui %9 : i1 to i32
    %c0_i32_9 = arith.constant 0 : i32
    %11 = arith.cmpi ne, %10, %c0_i32_9 : i32
    scf.if %11 {
      %c0_10 = arith.constant 0 : index
      %c0_11 = arith.constant 0 : index
      %12 = vector.load %arg8[%c0_10, %c0_11] : memref<32x128xf32, #tpu.memory_space<vmem>>, vector<32x128xf32>
      %c0_12 = arith.constant 0 : index
      %c0_13 = arith.constant 0 : index
      %13 = vector.load %arg4[%c0_12, %c0_13] : memref<1x128xbf16, #tpu.memory_space<vmem>>, vector<1x128xbf16>
      %14 = arith.extf %13 : vector<1x128xbf16> to vector<1x128xf32>
      %15 = vector.broadcast %14 : vector<1x128xf32> to vector<32x128xf32>
      %16 = arith.addf %12, %15 : vector<32x128xf32>
      %c0_14 = arith.constant 0 : index
      %c0_15 = arith.constant 0 : index
      %17 = vector.load %arg6[%c0_14, %c0_15] : memref<32x128xbf16, #tpu.memory_space<vmem>>, vector<32x128xbf16>
      %18 = arith.extf %17 : vector<32x128xbf16> to vector<32x128xf32>
      %c0_16 = arith.constant 0 : index
      %c0_17 = arith.constant 0 : index
      %19 = vector.load %arg5[%c0_16, %c0_17] : memref<1x128xbf16, #tpu.memory_space<vmem>>, vector<1x128xbf16>
      %20 = arith.extf %19 : vector<1x128xbf16> to vector<1x128xf32>
      %21 = vector.broadcast %20 : vector<1x128xf32> to vector<32x128xf32>
      %22 = arith.mulf %21, %16 : vector<32x128xf32>
      %23 = arith.addf %18, %22 : vector<32x128xf32>
      %24 = arith.truncf %23 : vector<32x128xf32> to vector<32x128xbf16>
      %c0_18 = arith.constant 0 : index
      %c0_19 = arith.constant 0 : index
      %25 = vector.load %arg7[%c0_18, %c0_19] : memref<32x128xbf16, #tpu.memory_space<vmem>>, vector<32x128xbf16>
      tpu.vector_store %arg7[%c0_18, %c0_19], %24 {strides = array<i32>} : memref<32x128xbf16, #tpu.memory_space<vmem>>, vector<32x128xbf16>,
    } else {
    }
    return
  }
  func.func @transform_0(%arg0: i32, %arg1: i32) -> (i32, i32) {
    %c0_i32 = arith.constant 0 : i32
    return %arg0, %arg1 : i32, i32
  }
  func.func @transform_1(%arg0: i32, %arg1: i32) -> (i32, i32) {
    %c0_i32 = arith.constant 0 : i32
    %c0_i32_0 = arith.constant 0 : i32
    return %arg1, %c0_i32 : i32, i32
  }
  func.func @transform_2(%arg0: i32, %arg1: i32) -> (i32, i32) {
    %c0_i32 = arith.constant 0 : i32
    %c0_i32_0 = arith.constant 0 : i32
    %c0_i32_1 = arith.constant 0 : i32
    return %c0_i32, %c0_i32_0 : i32, i32
  }
  func.func @transform_3(%arg0: i32, %arg1: i32) -> (i32, i32) {
    %c0_i32 = arith.constant 0 : i32
    %c0_i32_0 = arith.constant 0 : i32
    %c0_i32_1 = arith.constant 0 : i32
    return %c0_i32, %c0_i32_0 : i32, i32
  }
  func.func @transform_4(%arg0: i32, %arg1: i32) -> (i32, i32) {
    %c0_i32 = arith.constant 0 : i32
    %c0_i32_0 = arith.constant 0 : i32
    return %arg0, %c0_i32 : i32, i32
  }
  func.func @transform_5(%arg0: i32, %arg1: i32) -> (i32, i32) {
    %c0_i32 = arith.constant 0 : i32
    %c0_i32_0 = arith.constant 0 : i32
    return %arg0, %c0_i32 : i32, i32
  }
}

module attributes {stable_mosaic.version = 11 : i64} {
  func.func @_ln_matmul_kernel(%arg0: i32, %arg1: memref<32x128xbf16, #tpu.memory_space<vmem>>, %arg2: memref<1x128xbf16, #tpu.memory_space<vmem>>, %arg3: memref<1x128xbf16, #tpu.memory_space<vmem>>, %arg4: memref<128x512xbf16, #tpu.memory_space<vmem>>, %arg5: memref<1x512xbf16, #tpu.memory_space<vmem>>, %arg6: memref<32x512xbf16, #tpu.memory_space<vmem>>) attributes {dimension_semantics = [#tpu.dimension_semantics<parallel>], iteration_bounds = array<i64: 2>, scalar_prefetch = 0 : i64, scratch_operands = 0 : i64, tpu.core_type = #tpu.core_type<tc>, window_params = [{transform_indices = @transform_0, window_bounds = array<i64: 32, 128>}, {pipeline_mode = #tpu.pipeline_mode<synchronous>, transform_indices = @transform_1, window_bounds = array<i64: 1, 128>}, {pipeline_mode = #tpu.pipeline_mode<synchronous>, transform_indices = @transform_2, window_bounds = array<i64: 1, 128>}, {pipeline_mode = #tpu.pipeline_mode<synchronous>, transform_indices = @transform_3, window_bounds = array<i64: 128, 512>}, {pipeline_mode = #tpu.pipeline_mode<synchronous>, transform_indices = @transform_4, window_bounds = array<i64: 1, 512>}, {transform_indices = @transform_5, window_bounds = array<i64: 32, 512>}]} {
    %c0 = arith.constant 0 : index
    %c0_0 = arith.constant 0 : index
    %0 = vector.load %arg1[%c0, %c0_0] : memref<32x128xbf16, #tpu.memory_space<vmem>>, vector<32x128xbf16>
    %1 = arith.extf %0 : vector<32x128xbf16> to vector<32x128xf32>
    %cst = arith.constant dense<0.000000e+00> : vector<32xf32>
    %2 = vector.multi_reduction <add>, %1, %cst [1] : vector<32x128xf32> to vector<32xf32>
    %3 = vector.shape_cast %2 : vector<32xf32> to vector<32x1xf32>
    %cst_1 = arith.constant 1.280000e+02 : f32
    %4 = vector.broadcast %cst_1 : f32 to vector<32x1xf32>
    %5 = arith.divf %3, %4 : vector<32x1xf32>
    %6 = vector.broadcast %5 : vector<32x1xf32> to vector<32x128xf32>
    %7 = arith.subf %1, %6 : vector<32x128xf32>
    %8 = arith.mulf %7, %7 : vector<32x128xf32>
    %cst_2 = arith.constant dense<0.000000e+00> : vector<32xf32>
    %9 = vector.multi_reduction <add>, %8, %cst_2 [1] : vector<32x128xf32> to vector<32xf32>
    %10 = vector.shape_cast %9 : vector<32xf32> to vector<32x1xf32>
    %cst_3 = arith.constant 1.280000e+02 : f32
    %11 = vector.broadcast %cst_3 : f32 to vector<32x1xf32>
    %12 = arith.divf %10, %11 : vector<32x1xf32>
    %cst_4 = arith.constant 9.99999974E-6 : f32
    %13 = vector.broadcast %cst_4 : f32 to vector<32x1xf32>
    %14 = arith.addf %12, %13 : vector<32x1xf32>
    %15 = math.rsqrt %14 : vector<32x1xf32>
    %16 = vector.broadcast %15 : vector<32x1xf32> to vector<32x128xf32>
    %17 = arith.mulf %7, %16 : vector<32x128xf32>
    %c0_5 = arith.constant 0 : index
    %c0_6 = arith.constant 0 : index
    %18 = vector.load %arg2[%c0_5, %c0_6] : memref<1x128xbf16, #tpu.memory_space<vmem>>, vector<1x128xbf16>
    %19 = arith.extf %18 : vector<1x128xbf16> to vector<1x128xf32>
    %20 = vector.broadcast %19 : vector<1x128xf32> to vector<32x128xf32>
    %21 = arith.mulf %17, %20 : vector<32x128xf32>
    %c0_7 = arith.constant 0 : index
    %c0_8 = arith.constant 0 : index
    %22 = vector.load %arg3[%c0_7, %c0_8] : memref<1x128xbf16, #tpu.memory_space<vmem>>, vector<1x128xbf16>
    %23 = arith.extf %22 : vector<1x128xbf16> to vector<1x128xf32>
    %24 = vector.broadcast %23 : vector<1x128xf32> to vector<32x128xf32>
    %25 = arith.addf %21, %24 : vector<32x128xf32>
    %26 = arith.truncf %25 : vector<32x128xf32> to vector<32x128xbf16>
    %c0_9 = arith.constant 0 : index
    %c0_10 = arith.constant 0 : index
    %27 = vector.load %arg4[%c0_9, %c0_10] : memref<128x512xbf16, #tpu.memory_space<vmem>>, vector<128x512xbf16>
    %cst_11 = arith.constant dense<0.000000e+00> : vector<32x512xf32>
    %28 = tpu.matmul %26, %27, %cst_11 {dimension_numbers = #tpu.dot_dimension_numbers<[1], [0], [0], [1], [0, 0, 1, 1], [], []>} : vector<32x128xbf16>, vector<128x512xbf16>, vector<32x512xf32> -> vector<32x512xf32>
    %c0_12 = arith.constant 0 : index
    %c0_13 = arith.constant 0 : index
    %29 = vector.load %arg5[%c0_12, %c0_13] : memref<1x512xbf16, #tpu.memory_space<vmem>>, vector<1x512xbf16>
    %30 = arith.extf %29 : vector<1x512xbf16> to vector<1x512xf32>
    %31 = vector.broadcast %30 : vector<1x512xf32> to vector<32x512xf32>
    %32 = arith.addf %28, %31 : vector<32x512xf32>
    %cst_14 = arith.constant 5.000000e-01 : f32
    %33 = vector.broadcast %cst_14 : f32 to vector<32x512xf32>
    %34 = arith.mulf %33, %32 : vector<32x512xf32>
    %cst_15 = arith.constant 4.471500e-02 : f32
    %35 = vector.broadcast %cst_15 : f32 to vector<32x512xf32>
    %36 = arith.mulf %35, %32 : vector<32x512xf32>
    %37 = arith.mulf %36, %32 : vector<32x512xf32>
    %38 = arith.mulf %37, %32 : vector<32x512xf32>
    %39 = arith.addf %32, %38 : vector<32x512xf32>
    %cst_16 = arith.constant 0.797884583 : f32
    %40 = vector.broadcast %cst_16 : f32 to vector<32x512xf32>
    %41 = arith.mulf %40, %39 : vector<32x512xf32>
    %42 = math.tanh %41 : vector<32x512xf32>
    %cst_17 = arith.constant 1.000000e+00 : f32
    %43 = vector.broadcast %cst_17 : f32 to vector<32x512xf32>
    %44 = arith.addf %43, %42 : vector<32x512xf32>
    %45 = arith.mulf %34, %44 : vector<32x512xf32>
    %46 = arith.truncf %45 : vector<32x512xf32> to vector<32x512xbf16>
    %c0_18 = arith.constant 0 : index
    %c0_19 = arith.constant 0 : index
    %47 = vector.load %arg6[%c0_18, %c0_19] : memref<32x512xbf16, #tpu.memory_space<vmem>>, vector<32x512xbf16>
    tpu.vector_store %arg6[%c0_18, %c0_19], %46 {strides = array<i32>} : memref<32x512xbf16, #tpu.memory_space<vmem>>, vector<32x512xbf16>,
    return
  }
  func.func @transform_0(%arg0: i32) -> (i32, i32) {
    %c0_i32 = arith.constant 0 : i32
    %c0_i32_0 = arith.constant 0 : i32
    return %arg0, %c0_i32 : i32, i32
  }
  func.func @transform_1(%arg0: i32) -> (i32, i32) {
    %c0_i32 = arith.constant 0 : i32
    %c0_i32_0 = arith.constant 0 : i32
    %c0_i32_1 = arith.constant 0 : i32
    return %c0_i32, %c0_i32_0 : i32, i32
  }
  func.func @transform_2(%arg0: i32) -> (i32, i32) {
    %c0_i32 = arith.constant 0 : i32
    %c0_i32_0 = arith.constant 0 : i32
    %c0_i32_1 = arith.constant 0 : i32
    return %c0_i32, %c0_i32_0 : i32, i32
  }
  func.func @transform_3(%arg0: i32) -> (i32, i32) {
    %c0_i32 = arith.constant 0 : i32
    %c0_i32_0 = arith.constant 0 : i32
    %c0_i32_1 = arith.constant 0 : i32
    return %c0_i32, %c0_i32_0 : i32, i32
  }
  func.func @transform_4(%arg0: i32) -> (i32, i32) {
    %c0_i32 = arith.constant 0 : i32
    %c0_i32_0 = arith.constant 0 : i32
    %c0_i32_1 = arith.constant 0 : i32
    return %c0_i32, %c0_i32_0 : i32, i32
  }
  func.func @transform_5(%arg0: i32) -> (i32, i32) {
    %c0_i32 = arith.constant 0 : i32
    %c0_i32_0 = arith.constant 0 : i32
    return %arg0, %c0_i32 : i32, i32
  }
}

module attributes {stable_mosaic.version = 11 : i64} {
  func.func @_ln_matmul_kernel(%arg0: i32, %arg1: memref<32x128xbf16, #tpu.memory_space<vmem>>, %arg2: memref<1x128xbf16, #tpu.memory_space<vmem>>, %arg3: memref<1x128xbf16, #tpu.memory_space<vmem>>, %arg4: memref<128x128xbf16, #tpu.memory_space<vmem>>, %arg5: memref<1x128xbf16, #tpu.memory_space<vmem>>, %arg6: memref<32x128xbf16, #tpu.memory_space<vmem>>) attributes {dimension_semantics = [#tpu.dimension_semantics<parallel>], iteration_bounds = array<i64: 2>, scalar_prefetch = 0 : i64, scratch_operands = 0 : i64, tpu.core_type = #tpu.core_type<tc>, window_params = [{transform_indices = @transform_0, window_bounds = array<i64: 32, 128>}, {pipeline_mode = #tpu.pipeline_mode<synchronous>, transform_indices = @transform_1, window_bounds = array<i64: 1, 128>}, {pipeline_mode = #tpu.pipeline_mode<synchronous>, transform_indices = @transform_2, window_bounds = array<i64: 1, 128>}, {pipeline_mode = #tpu.pipeline_mode<synchronous>, transform_indices = @transform_3, window_bounds = array<i64: 128, 128>}, {pipeline_mode = #tpu.pipeline_mode<synchronous>, transform_indices = @transform_4, window_bounds = array<i64: 1, 128>}, {transform_indices = @transform_5, window_bounds = array<i64: 32, 128>}]} {
    %c0 = arith.constant 0 : index
    %c0_0 = arith.constant 0 : index
    %0 = vector.load %arg1[%c0, %c0_0] : memref<32x128xbf16, #tpu.memory_space<vmem>>, vector<32x128xbf16>
    %1 = arith.extf %0 : vector<32x128xbf16> to vector<32x128xf32>
    %cst = arith.constant dense<0.000000e+00> : vector<32xf32>
    %2 = vector.multi_reduction <add>, %1, %cst [1] : vector<32x128xf32> to vector<32xf32>
    %3 = vector.shape_cast %2 : vector<32xf32> to vector<32x1xf32>
    %cst_1 = arith.constant 1.280000e+02 : f32
    %4 = vector.broadcast %cst_1 : f32 to vector<32x1xf32>
    %5 = arith.divf %3, %4 : vector<32x1xf32>
    %6 = vector.broadcast %5 : vector<32x1xf32> to vector<32x128xf32>
    %7 = arith.subf %1, %6 : vector<32x128xf32>
    %8 = arith.mulf %7, %7 : vector<32x128xf32>
    %cst_2 = arith.constant dense<0.000000e+00> : vector<32xf32>
    %9 = vector.multi_reduction <add>, %8, %cst_2 [1] : vector<32x128xf32> to vector<32xf32>
    %10 = vector.shape_cast %9 : vector<32xf32> to vector<32x1xf32>
    %cst_3 = arith.constant 1.280000e+02 : f32
    %11 = vector.broadcast %cst_3 : f32 to vector<32x1xf32>
    %12 = arith.divf %10, %11 : vector<32x1xf32>
    %cst_4 = arith.constant 9.99999974E-6 : f32
    %13 = vector.broadcast %cst_4 : f32 to vector<32x1xf32>
    %14 = arith.addf %12, %13 : vector<32x1xf32>
    %15 = math.rsqrt %14 : vector<32x1xf32>
    %16 = vector.broadcast %15 : vector<32x1xf32> to vector<32x128xf32>
    %17 = arith.mulf %7, %16 : vector<32x128xf32>
    %c0_5 = arith.constant 0 : index
    %c0_6 = arith.constant 0 : index
    %18 = vector.load %arg2[%c0_5, %c0_6] : memref<1x128xbf16, #tpu.memory_space<vmem>>, vector<1x128xbf16>
    %19 = arith.extf %18 : vector<1x128xbf16> to vector<1x128xf32>
    %20 = vector.broadcast %19 : vector<1x128xf32> to vector<32x128xf32>
    %21 = arith.mulf %17, %20 : vector<32x128xf32>
    %c0_7 = arith.constant 0 : index
    %c0_8 = arith.constant 0 : index
    %22 = vector.load %arg3[%c0_7, %c0_8] : memref<1x128xbf16, #tpu.memory_space<vmem>>, vector<1x128xbf16>
    %23 = arith.extf %22 : vector<1x128xbf16> to vector<1x128xf32>
    %24 = vector.broadcast %23 : vector<1x128xf32> to vector<32x128xf32>
    %25 = arith.addf %21, %24 : vector<32x128xf32>
    %26 = arith.truncf %25 : vector<32x128xf32> to vector<32x128xbf16>
    %c0_9 = arith.constant 0 : index
    %c0_10 = arith.constant 0 : index
    %27 = vector.load %arg4[%c0_9, %c0_10] : memref<128x128xbf16, #tpu.memory_space<vmem>>, vector<128x128xbf16>
    %cst_11 = arith.constant dense<0.000000e+00> : vector<32x128xf32>
    %28 = tpu.matmul %26, %27, %cst_11 {dimension_numbers = #tpu.dot_dimension_numbers<[1], [0], [0], [1], [0, 0, 1, 1], [], []>} : vector<32x128xbf16>, vector<128x128xbf16>, vector<32x128xf32> -> vector<32x128xf32>
    %c0_12 = arith.constant 0 : index
    %c0_13 = arith.constant 0 : index
    %29 = vector.load %arg5[%c0_12, %c0_13] : memref<1x128xbf16, #tpu.memory_space<vmem>>, vector<1x128xbf16>
    %30 = arith.extf %29 : vector<1x128xbf16> to vector<1x128xf32>
    %31 = vector.broadcast %30 : vector<1x128xf32> to vector<32x128xf32>
    %32 = arith.addf %28, %31 : vector<32x128xf32>
    %33 = arith.truncf %32 : vector<32x128xf32> to vector<32x128xbf16>
    %c0_14 = arith.constant 0 : index
    %c0_15 = arith.constant 0 : index
    %34 = vector.load %arg6[%c0_14, %c0_15] : memref<32x128xbf16, #tpu.memory_space<vmem>>, vector<32x128xbf16>
    tpu.vector_store %arg6[%c0_14, %c0_15], %33 {strides = array<i32>} : memref<32x128xbf16, #tpu.memory_space<vmem>>, vector<32x128xbf16>,
    return
  }
  func.func @transform_0(%arg0: i32) -> (i32, i32) {
    %c0_i32 = arith.constant 0 : i32
    %c0_i32_0 = arith.constant 0 : i32
    return %arg0, %c0_i32 : i32, i32
  }
  func.func @transform_1(%arg0: i32) -> (i32, i32) {
    %c0_i32 = arith.constant 0 : i32
    %c0_i32_0 = arith.constant 0 : i32
    %c0_i32_1 = arith.constant 0 : i32
    return %c0_i32, %c0_i32_0 : i32, i32
  }
  func.func @transform_2(%arg0: i32) -> (i32, i32) {
    %c0_i32 = arith.constant 0 : i32
    %c0_i32_0 = arith.constant 0 : i32
    %c0_i32_1 = arith.constant 0 : i32
    return %c0_i32, %c0_i32_0 : i32, i32
  }
  func.func @transform_3(%arg0: i32) -> (i32, i32) {
    %c0_i32 = arith.constant 0 : i32
    %c0_i32_0 = arith.constant 0 : i32
    %c0_i32_1 = arith.constant 0 : i32
    return %c0_i32, %c0_i32_0 : i32, i32
  }
  func.func @transform_4(%arg0: i32) -> (i32, i32) {
    %c0_i32 = arith.constant 0 : i32
    %c0_i32_0 = arith.constant 0 : i32
    %c0_i32_1 = arith.constant 0 : i32
    return %c0_i32, %c0_i32_0 : i32, i32
  }
  func.func @transform_5(%arg0: i32) -> (i32, i32) {
    %c0_i32 = arith.constant 0 : i32
    %c0_i32_0 = arith.constant 0 : i32
    return %arg0, %c0_i32 : i32, i32
  }
}

</mosaic_0001>

<llo_original>
// kernel: visual_decoder_forward.13
$region0: #{visual_decoder_forward.13}
  #allocation0 [shape = 'u32[]', space=smem, size = 0x4, offset = 0x4, fixed_abs, tag = 'smem constant byte address 0x4 - core index']
  #allocation1 [shape = 'u32[144,128]{1,0:T(1,128)}', space=vmem, size = 0x12000, scoped, tag = 'internal scratch']
  %s0 = inlined_call_operand.vmem [shape: bf16[64,128], index: 0, kind: input, shape index: {}]
  %s1 = inlined_call_operand.vmem [shape: bf16[1,128], index: 1, kind: input, shape index: {}]
  %s2 = inlined_call_operand.vmem [shape: bf16[1,128], index: 2, kind: input, shape index: {}]
  %s3 = inlined_call_operand.vmem [shape: bf16[128,384], index: 3, kind: input, shape index: {}]
  %s4 = inlined_call_operand.vmem [shape: bf16[1,384], index: 4, kind: input, shape index: {}]
  %s5 = inlined_call_operand.vmem [shape: bf16[64,384], index: 5, kind: output, shape index: {}]
  %s6 = sld [smem:[#allocation0]]
  $region53: #{visual_decoder_forward.13} parent=0
    _
  %s8 = ssub.s32 1, %s6
  %s9 = scalar_select 0, %s8, %s6
  loop: start=0, step=1, limit=4
  $region2: #{visual_decoder_forward.13} parent=0 // loop_pre_header
    _
  $region3: #{visual_decoder_forward.13} parent=0 // loop_header
    %s11 = sphi 0, %s15
    %p12 = scmp.ge.s32.totalorder %s11, 4
    %s21 = sphi 0, %s23
    %s24 = sphi 0, %s21
    %s25 = sphi 0, %s24
    %s41 = sphi 0, %s25
    %s45 = sphi 0, %s45
    %s47 = sphi 0, %s45
    %s48 = sphi 0, %s47
    %s62 = sphi 0, %s48
    %s66 = sphi 0, %s66
    %s68 = sphi 0, %s66
    %s69 = sphi 0, %s68
    %s83 = sphi 0, %s69
    %s87 = sphi 0, %s87
    %s89 = sphi 0, %s87
    %s90 = sphi 0, %s89
    %s104 = sphi 0, %s90
    %s108 = sphi 0, %s108
    %s110 = sphi 0, %s108
    %s111 = sphi 0, %s110
    %s125 = sphi 0, %s111
    %s131 = sphi 0, %s133
    %s134 = sphi 0, %s131
    %s135 = sphi 0, %s134
    %s151 = sphi 0, %s135
  $region4: #{visual_decoder_forward.13} parent=0 // loop_header_branch
    %14 = sbr.rel (%p12) target = $region8
  $region5: #{visual_decoder_forward.13} parent=0 // loop_body
    %s16 = ssub.s32 %s11, 1
    %s17 = ssub.s32 %s11, 2
    %s18 = sadd.s32 %s11, 1
    %s19 = ssub.s32 %s11, %s18
    %p20 = scmp.eq.s32.totalorder %s19, 0
    %s22 = sadd.s32 %s21, 1
    %s23 = scalar_select %p20, %s21, %s22
    %p26 = pneg %p20
    %p27 = scmp.eq.s32.totalorder %s11, 1
    %p28 = por %p26, %p27
    %p29 = scmp.ne.s32.totalorder %s21, %s24
    %p30 = scmp.eq.s32.totalorder %s11, 0
    %p31 = por %p29, %p30
    %p32 = scmp.ne.s32.totalorder %s21, %s24
    %p33 = scmp.eq.s32.totalorder %s16, 1
    %p34 = por %p32, %p33
    %p35 = scmp.ne.s32.totalorder %s24, %s25
    %p36 = scmp.eq.s32.totalorder %s16, 0
    %p37 = por %p35, %p36
    %p38 = scmp.ne.s32.totalorder %s24, %s25
    %p39 = scmp.eq.s32.totalorder %s17, 1
    %p40 = por %p38, %p39
    %p42 = scmp.ne.s32.totalorder %s25, %s41
    %p43 = scmp.eq.s32.totalorder %s17, 0
    %p44 = por %p42, %p43
    %s46 = sadd.s32 %s45, 1
    %p49 = scmp.eq.s32.totalorder %s11, 1
    %p50 = scmp.ne.s32.totalorder %s45, %s47
    %p51 = scmp.eq.s32.totalorder %s11, 0
    %p52 = por %p50, %p51
    %p53 = scmp.ne.s32.totalorder %s45, %s47
    %p54 = scmp.eq.s32.totalorder %s16, 1
    %p55 = por %p53, %p54
    %p56 = scmp.ne.s32.totalorder %s47, %s48
    %p57 = scmp.eq.s32.totalorder %s16, 0
    %p58 = por %p56, %p57
    %p59 = scmp.ne.s32.totalorder %s47, %s48
    %p60 = scmp.eq.s32.totalorder %s17, 1
    %p61 = por %p59, %p60
    %p63 = scmp.ne.s32.totalorder %s48, %s62
    %p64 = scmp.eq.s32.totalorder %s17, 0
    %p65 = por %p63, %p64
    %s67 = sadd.s32 %s66, 1
    %p70 = scmp.eq.s32.totalorder %s11, 1
    %p71 = scmp.ne.s32.totalorder %s66, %s68
    %p72 = scmp.eq.s32.totalorder %s11, 0
    %p73 = por %p71, %p72
    %p74 = scmp.ne.s32.totalorder %s66, %s68
    %p75 = scmp.eq.s32.totalorder %s16, 1
    %p76 = por %p74, %p75
    %p77 = scmp.ne.s32.totalorder %s68, %s69
    %p78 = scmp.eq.s32.totalorder %s16, 0
    %p79 = por %p77, %p78
    %p80 = scmp.ne.s32.totalorder %s68, %s69
    %p81 = scmp.eq.s32.totalorder %s17, 1
    %p82 = por %p80, %p81
    %p84 = scmp.ne.s32.totalorder %s69, %s83
    %p85 = scmp.eq.s32.totalorder %s17, 0
    %p86 = por %p84, %p85
    %s88 = sadd.s32 %s87, 1
    %p91 = scmp.eq.s32.totalorder %s11, 1
    %p92 = scmp.ne.s32.totalorder %s87, %s89
    %p93 = scmp.eq.s32.totalorder %s11, 0
    %p94 = por %p92, %p93
    %p95 = scmp.ne.s32.totalorder %s87, %s89
    %p96 = scmp.eq.s32.totalorder %s16, 1
    %p97 = por %p95, %p96
    %p98 = scmp.ne.s32.totalorder %s89, %s90
    %p99 = scmp.eq.s32.totalorder %s16, 0
    %p100 = por %p98, %p99
    %p101 = scmp.ne.s32.totalorder %s89, %s90
    %p102 = scmp.eq.s32.totalorder %s17, 1
    %p103 = por %p101, %p102
    %p105 = scmp.ne.s32.totalorder %s90, %s104
    %p106 = scmp.eq.s32.totalorder %s17, 0
    %p107 = por %p105, %p106
    %s109 = sadd.s32 %s108, 1
    %p112 = scmp.eq.s32.totalorder %s11, 1
    %p113 = scmp.ne.s32.totalorder %s108, %s110
    %p114 = scmp.eq.s32.totalorder %s11, 0
    %p115 = por %p113, %p114
    %p116 = scmp.ne.s32.totalorder %s108, %s110
    %p117 = scmp.eq.s32.totalorder %s16, 1
    %p118 = por %p116, %p117
    %p119 = scmp.ne.s32.totalorder %s110, %s111
    %p120 = scmp.eq.s32.totalorder %s16, 0
    %p121 = por %p119, %p120
    %p122 = scmp.ne.s32.totalorder %s110, %s111
    %p123 = scmp.eq.s32.totalorder %s17, 1
    %p124 = por %p122, %p123
    %p126 = scmp.ne.s32.totalorder %s111, %s125
    %p127 = scmp.eq.s32.totalorder %s17, 0
    %p128 = por %p126, %p127
    %s129 = ssub.s32 %s11, %s18
    %p130 = scmp.eq.s32.totalorder %s129, 0
    %s132 = sadd.s32 %s131, 1
    %s133 = scalar_select %p130, %s131, %s132
    %p136 = pneg %p130
    %p137 = scmp.eq.s32.totalorder %s11, 1
    %p138 = por %p136, %p137
    %p139 = scmp.ne.s32.totalorder %s131, %s134
    %p140 = scmp.eq.s32.totalorder %s11, 0
    %p141 = por %p139, %p140
    %p142 = scmp.ne.s32.totalorder %s131, %s134
    %p143 = scmp.eq.s32.totalorder %s16, 1
    %p144 = por %p142, %p143
    %p145 = scmp.ne.s32.totalorder %s134, %s135
    %p146 = scmp.eq.s32.totalorder %s16, 0
    %p147 = por %p145, %p146
    %p148 = scmp.ne.s32.totalorder %s134, %s135
    %p149 = scmp.eq.s32.totalorder %s17, 1
    %p150 = por %p148, %p149
    %p152 = scmp.ne.s32.totalorder %s135, %s151
    %p153 = scmp.eq.s32.totalorder %s17, 0
    %p154 = por %p152, %p153
    %p155 = scmp.le.s32.totalorder 1, %s11
    %p156 = scmp.lt.s32.totalorder %s11, 3
    %p157 = pnand %p155, %p156
    %p158 = pneg %p157
    // Predicated region
    $region9: #{visual_decoder_forward.13} parent=5 // pred_check
      _
    $region10: #{visual_decoder_forward.13} parent=5 // pred_check_branch
      %160 = sbr.rel (%p157) target = $region12
    $region11: #{visual_decoder_forward.13} parent=5 // pred_region
      %s161 = ssub.s32 %s11, 1
      // Predicated region
      $region13: #{visual_decoder_forward.13} parent=11 // pred_check
        %p162 = pneg %p58
      $region14: #{visual_decoder_forward.13} parent=11 // pred_check_branch
        %164 = sbr.rel (%p162) target = $region16
      $region15: #{visual_decoder_forward.13} parent=11 // pred_region
        _
      $region16: #{visual_decoder_forward.13} parent=11 // pred_fallthru
        _
      // Predicated region
      $region17: #{visual_decoder_forward.13} parent=11 // pred_check
        %p165 = pneg %p79
      $region18: #{visual_decoder_forward.13} parent=11 // pred_check_branch
        %167 = sbr.rel (%p165) target = $region20
      $region19: #{visual_decoder_forward.13} parent=11 // pred_region
        _
      $region20: #{visual_decoder_forward.13} parent=11 // pred_fallthru
        _
      // Predicated region
      $region21: #{visual_decoder_forward.13} parent=11 // pred_check
        %p168 = pneg %p100
      $region22: #{visual_decoder_forward.13} parent=11 // pred_check_branch
        %170 = sbr.rel (%p168) target = $region24
      $region23: #{visual_decoder_forward.13} parent=11 // pred_region
        _
      $region24: #{visual_decoder_forward.13} parent=11 // pred_fallthru
        _
      // Predicated region
      $region25: #{visual_decoder_forward.13} parent=11 // pred_check
        %p171 = pneg %p121
      $region26: #{visual_decoder_forward.13} parent=11 // pred_check_branch
        %173 = sbr.rel (%p171) target = $region28
      $region27: #{visual_decoder_forward.13} parent=11 // pred_region
        _
      $region28: #{visual_decoder_forward.13} parent=11 // pred_fallthru
        _
    $region12: #{visual_decoder_forward.13} parent=5 // pred_fallthru
      _
    %p174 = scmp.lt.s32.totalorder %s11, 2
    // Predicated region
    $region29: #{visual_decoder_forward.13} parent=5 // pred_check
      %p175 = pneg %p174
    $region30: #{visual_decoder_forward.13} parent=5 // pred_check_branch
      %177 = sbr.rel (%p175) target = $region32
    $region31: #{visual_decoder_forward.13} parent=5 // pred_region
      // Predicated region
      $region33: #{visual_decoder_forward.13} parent=31 // pred_check
        %p178 = pneg %p31
      $region34: #{visual_decoder_forward.13} parent=31 // pred_check_branch
        %180 = sbr.rel (%p178) target = $region36
      $region35: #{visual_decoder_forward.13} parent=31 // pred_region
        %s181 = smul.u32 4, %s11
        %p182 = scmp.lt.s32.totalorder %s181, 7
        %s183 = scalar_select %p182, %s181, 7
        %s184 = smul.addr %s183, 4
        %s185 = scalar_lea.vmem %s0, %s184
        %s186 = smul.u32 4, %s11
      $region36: #{visual_decoder_forward.13} parent=31 // pred_fallthru
        _
    $region32: #{visual_decoder_forward.13} parent=5 // pred_fallthru
      _
    %p187 = scmp.le.s32.totalorder 1, %s11
    %p188 = scmp.lt.s32.totalorder %s11, 3
    %p189 = pnand %p187, %p188
    %p190 = pneg %p189
    // Predicated region
    $region37: #{visual_decoder_forward.13} parent=5 // pred_check
      _
    $region38: #{visual_decoder_forward.13} parent=5 // pred_check_branch
      %192 = sbr.rel (%p189) target = $region40
    $region39: #{visual_decoder_forward.13} parent=5 // pred_region
      %s193 = ssub.s32 %s11, 1
      %s194 = smul.u32 4, %s16
      %p195 = scmp.lt.s32.totalorder %s194, 7
      %s196 = scalar_select %p195, %s194, 7
      %s197 = smul.addr %s196, 4
      %s198 = scalar_lea.vmem %s0, %s197
      %p199 = pneg %p37
      %p200 = pneg %p34
      %p201 = pneg %p58
      %p202 = pneg %p55
      %p203 = pneg %p79
      %p204 = pneg %p76
      %p205 = pneg %p100
      %p206 = pneg %p97
      %p207 = pneg %p121
      %p208 = pneg %p118
      %p209 = pneg %p147
      %p210 = pneg %p144
      %s211 = smul.u32 4, %s16
      %p212 = scmp.lt.s32.totalorder %s211, 7
      %s213 = scalar_select %p212, %s211, 7
      %s214 = smul.addr %s213, 3
      %s215 = smul.addr %s214, 4
      %s216 = scalar_lea.vmem %s5, %s215
      %s217 = smul.u32 4, %s16
      %p218 = scmp.lt.s32.totalorder %s217, 7
      %s219 = scalar_select %p218, %s217, 7
      %s220 = smul.addr %s219, 4
      %s221 = scalar_lea.vmem %s0, %s220
      %s222 = smul.u32 4, %s16
      %s223 = smul.u32 4, %s16
      %p224 = scmp.lt.s32.totalorder %s223, 7
      %s225 = scalar_select %p224, %s223, 7
      %s226 = smul.addr %s225, 3
      %s227 = smul.addr %s226, 4
      %s228 = scalar_lea.vmem %s5, %s227
      %s229 = smul.u32 4, %s16
      %v231 = vld [vmem:[%s221] sm:$0xf]
      %v232 = vld [vmem:[%s221 + $0x4] sm:$0xf]
      %v233 = vld [vmem:[%s221 + $0x8] sm:$0xf]
      %v234 = vld [vmem:[%s221 + $0xc] sm:$0xf]
      %v235 = vunpack.c.l.bf16 %v231
      %v236 = vunpack.c.l.bf16 %v232
      %v237 = vunpack.c.l.bf16 %v233
      %v238 = vunpack.c.l.bf16 %v234
      %239 = vadd.xlane.f32.xlu0 %v235
      %v240 = vpop.xlane.xlu0 %239
      %241 = vadd.xlane.f32.xlu0 %v236
      %v242 = vpop.xlane.xlu0 %241
      %243 = vadd.xlane.f32.xlu0 %v237
      %v244 = vpop.xlane.xlu0 %243
      %245 = vadd.xlane.f32.xlu0 %v238
      %v246 = vpop.xlane.xlu0 %245
      %v247 = vrcp.pop 128.0
      %v248 = vmul.f32 %v240, %v247
      %v249 = vmul.f32 %v242, %v247
      %v250 = vmul.f32 %v244, %v247
      %v251 = vmul.f32 %v246, %v247
      %v252 = vsub.f32 %v235, %v248
      %v253 = vsub.f32 %v236, %v249
      %v254 = vsub.f32 %v237, %v250
      %v255 = vsub.f32 %v238, %v251
      %v256 = vmul.f32 %v252, %v252
      %v257 = vmul.f32 %v253, %v253
      %v258 = vmul.f32 %v254, %v254
      %v259 = vmul.f32 %v255, %v255
      %260 = vadd.xlane.f32.xlu0 %v256
      %v261 = vpop.xlane.xlu0 %260
      %262 = vadd.xlane.f32.xlu0 %v257
      %v263 = vpop.xlane.xlu0 %262
      %264 = vadd.xlane.f32.xlu0 %v258
      %v265 = vpop.xlane.xlu0 %264
      %266 = vadd.xlane.f32.xlu0 %v259
      %v267 = vpop.xlane.xlu0 %266
      %v268 = vmul.f32 %v261, %v247
      %v269 = vmul.f32 %v263, %v247
      %v270 = vmul.f32 %v265, %v247
      %v271 = vmul.f32 %v267, %v247
      %v272 = vadd.f32 %v268, 1e-05
      %v273 = vadd.f32 %v269, 1e-05
      %v274 = vadd.f32 %v270, 1e-05
      %v275 = vadd.f32 %v271, 1e-05
      %v276 = vrsqrt.pop %v272
      %v277 = vrsqrt.pop %v273
      %v278 = vrsqrt.pop %v274
      %v279 = vrsqrt.pop %v275
      %v280 = vmul.f32 %v252, %v276
      %v281 = vmul.f32 %v253, %v277
      %v282 = vmul.f32 %v254, %v278
      %v283 = vmul.f32 %v255, %v279
      %v284 = vld [vmem:[%s1] sm:$0x1]
      %v285 = vunpack.c.l.bf16 %v284
      %v286 = vlaneseq
      %v287 = vshrl.u32 %v286, 7
      %v288 = vsub.s32 0, %v287
      %v289 = vrot.slane %v285, %v288
      %v290 = vmul.f32 %v280, %v289
      %v291 = vmul.f32 %v281, %v289
      %v292 = vmul.f32 %v282, %v289
      %v293 = vmul.f32 %v283, %v289
      %v294 = vld [vmem:[%s2] sm:$0x1]
      %v295 = vunpack.c.l.bf16 %v294
      %v296 = vlaneseq
      %v297 = vshrl.u32 %v296, 7
      %v298 = vsub.s32 0, %v297
      %v299 = vrot.slane %v295, %v298
      %v300 = vadd.f32 %v290, %v299
      %v301 = vadd.f32 %v291, %v299
      %v302 = vadd.f32 %v292, %v299
      %v303 = vadd.f32 %v293, %v299
      %v304 = vpack.c.bf16 %v301, %v300
      %v305 = vpack.c.bf16 %v303, %v302
      %v306 = vld [vmem:[%s3] sm:$0xff]
      %v307 = vld [vmem:[%s3 + $0x8] sm:$0xf]
      %v308 = vld [vmem:[%s3 + $0xc] sm:$0xff]
      %v309 = vld [vmem:[%s3 + $0x14] sm:$0xf]
      %v310 = vld [vmem:[%s3 + $0x18] sm:$0xff]
      %v311 = vld [vmem:[%s3 + $0x20] sm:$0xf]
      %v312 = vld [vmem:[%s3 + $0x24] sm:$0xff]
      %v313 = vld [vmem:[%s3 + $0x2c] sm:$0xf]
      %v314 = vld [vmem:[%s3 + $0x30] sm:$0xff]
      %v315 = vld [vmem:[%s3 + $0x38] sm:$0xf]
      %v316 = vld [vmem:[%s3 + $0x3c] sm:$0xff]
      %v317 = vld [vmem:[%s3 + $0x44] sm:$0xf]
      %v318 = vld [vmem:[%s3 + $0x48] sm:$0xff]
      %v319 = vld [vmem:[%s3 + $0x50] sm:$0xf]
      %v320 = vld [vmem:[%s3 + $0x54] sm:$0xff]
      %v321 = vld [vmem:[%s3 + $0x5c] sm:$0xf]
      %v322 = vld [vmem:[%s3 + $0x60] sm:$0xff]
      %v323 = vld [vmem:[%s3 + $0x68] sm:$0xf]
      %v324 = vld [vmem:[%s3 + $0x6c] sm:$0xff]
      %v325 = vld [vmem:[%s3 + $0x74] sm:$0xf]
      %v326 = vld [vmem:[%s3 + $0x78] sm:$0xff]
      %v327 = vld [vmem:[%s3 + $0x80] sm:$0xf]
      %v328 = vld [vmem:[%s3 + $0x84] sm:$0xff]
      %v329 = vld [vmem:[%s3 + $0x8c] sm:$0xf]
      %v330 = vld [vmem:[%s3 + $0x90] sm:$0xff]
      %v331 = vld [vmem:[%s3 + $0x98] sm:$0xf]
      %v332 = vld [vmem:[%s3 + $0x9c] sm:$0xff]
      %v333 = vld [vmem:[%s3 + $0xa4] sm:$0xf]
      %v334 = vld [vmem:[%s3 + $0xa8] sm:$0xff]
      %v335 = vld [vmem:[%s3 + $0xb0] sm:$0xf]
      %v336 = vld [vmem:[%s3 + $0xb4] sm:$0xff]
      %v337 = vld [vmem:[%s3 + $0xbc] sm:$0xf]
      %v338 = vld [vmem:[%s4] sm:$0x7]
      %v339 = vunpack.c.l.bf16 %v338
      %v341 = vlaneseq
      %v342 = vshrl.u32 %v341, 7
      %v343 = vsub.s32 0, %v342
      %v344 = vrot.slane %v339, %v343
      %v345 = vlaneseq
      %v346 = vshrl.u32 %v345, 7
      %v347 = vsub.s32 2, %v346
      %v348 = vrot.slane %v339, %v347
      %v349 = vlaneseq
      %v350 = vshrl.u32 %v349, 7
      %v351 = vsub.s32 4, %v350
      %v352 = vrot.slane %v339, %v351
      %v356 = vlaneseq
      %v357 = vshrl.u32 %v356, 7
      %v358 = vsub.s32 0, %v357
      %v359 = vrot.slane %v344, %v358
      %v360 = vlaneseq
      %v361 = vshrl.u32 %v360, 7
      %v362 = vsub.s32 0, %v361
      %v363 = vrot.slane %v348, %v362
      %v364 = vlaneseq
      %v365 = vshrl.u32 %v364, 7
      %v366 = vsub.s32 0, %v365
      %v367 = vrot.slane %v352, %v366
      %v400 = vunpack.c.l.b16 %v306
      %v401 = vunpack.c.h.b16 %v306
      %v402 = vunpack.c.l.b16 %v307
      %v403 = vunpack.c.l.b16 %v308
      %v404 = vunpack.c.h.b16 %v308
      %v405 = vunpack.c.l.b16 %v309
      %v406 = vunpack.c.l.b16 %v310
      %v407 = vunpack.c.h.b16 %v310
      %v408 = vunpack.c.l.b16 %v311
      %v409 = vunpack.c.l.b16 %v312
      %v410 = vunpack.c.h.b16 %v312
      %v411 = vunpack.c.l.b16 %v313
      %v412 = vunpack.c.l.b16 %v314
      %v413 = vunpack.c.h.b16 %v314
      %v414 = vunpack.c.l.b16 %v315
      %v415 = vunpack.c.l.b16 %v316
      %v416 = vunpack.c.h.b16 %v316
      %v417 = vunpack.c.l.b16 %v317
      %v418 = vunpack.c.l.b16 %v318
      %v419 = vunpack.c.h.b16 %v318
      %v420 = vunpack.c.l.b16 %v319
      %v421 = vunpack.c.l.b16 %v320
      %v422 = vunpack.c.h.b16 %v320
      %v423 = vunpack.c.l.b16 %v321
      %v424 = vunpack.c.l.b16 %v322
      %v425 = vunpack.c.h.b16 %v322
      %v426 = vunpack.c.l.b16 %v323
      %v427 = vunpack.c.l.b16 %v324
      %v428 = vunpack.c.h.b16 %v324
      %v429 = vunpack.c.l.b16 %v325
      %v430 = vunpack.c.l.b16 %v326
      %v431 = vunpack.c.h.b16 %v326
      %v432 = vunpack.c.l.b16 %v327
      %v433 = vunpack.c.l.b16 %v328
      %v434 = vunpack.c.h.b16 %v328
      %v435 = vunpack.c.l.b16 %v329
      %v436 = vunpack.c.l.b16 %v330
      %v437 = vunpack.c.h.b16 %v330
      %v438 = vunpack.c.l.b16 %v331
      %v439 = vunpack.c.l.b16 %v332
      %v440 = vunpack.c.h.b16 %v332
      %v441 = vunpack.c.l.b16 %v333
      %v442 = vunpack.c.l.b16 %v334
      %v443 = vunpack.c.h.b16 %v334
      %v444 = vunpack.c.l.b16 %v335
      %v445 = vunpack.c.l.b16 %v336
      %v446 = vunpack.c.h.b16 %v336
      %v447 = vunpack.c.l.b16 %v337
      %v448 = vpack.c.b16 %v403, %v400
      %v449 = vpack.c.b16 %v404, %v401
      %v450 = vpack.c.b16 %v405, %v402
      %v451 = vpack.c.b16 %v409, %v406
      %v452 = vpack.c.b16 %v410, %v407
      %v453 = vpack.c.b16 %v411, %v408
      %v454 = vpack.c.b16 %v415, %v412
      %v455 = vpack.c.b16 %v416, %v413
      %v456 = vpack.c.b16 %v417, %v414
      %v457 = vpack.c.b16 %v421, %v418
      %v458 = vpack.c.b16 %v422, %v419
      %v459 = vpack.c.b16 %v423, %v420
      %v460 = vpack.c.b16 %v427, %v424
      %v461 = vpack.c.b16 %v428, %v425
      %v462 = vpack.c.b16 %v429, %v426
      %v463 = vpack.c.b16 %v433, %v430
      %v464 = vpack.c.b16 %v434, %v431
      %v465 = vpack.c.b16 %v435, %v432
      %v466 = vpack.c.b16 %v439, %v436
      %v467 = vpack.c.b16 %v440, %v437
      %v468 = vpack.c.b16 %v441, %v438
      %v469 = vpack.c.b16 %v445, %v442
      %v470 = vpack.c.b16 %v446, %v443
      %v471 = vpack.c.b16 %v447, %v444
      %496 = vmatprep.subr.bf16.mxu0 %v449
      %497 = vmatpush1.bf16.msra.mxu0 %v448
      %498 = vmatprep.subr.bf16.mxu0 %v452
      %499 = vmatpush1.bf16.msra.mxu0 %v451
      %500 = vmatprep.subr.bf16.mxu0 %v455
      %501 = vmatpush1.bf16.msra.mxu0 %v454
      %502 = vmatprep.subr.bf16.mxu0 %v458
      %503 = vmatpush1.bf16.msra.mxu0 %v457
      %504 = vmatprep.subr.bf16.mxu0 %v461
      %505 = vmatpush1.bf16.msra.mxu0 %v460
      %506 = vmatprep.subr.bf16.mxu0 %v464
      %507 = vmatpush1.bf16.msra.mxu0 %v463
      %508 = vmatprep.subr.bf16.mxu0 %v467
      %509 = vmatpush1.bf16.msra.mxu0 %v466
      %510 = vmatprep.subr.bf16.mxu0 %v470
      %511 = vmatpush1.bf16.msra.mxu0 %v469
      %512 = vmatprep.subr.bf16.mxu0 0
      %513 = vmatpush1.bf16.msra.mxu0 0
      %514 = vmatprep.subr.bf16.mxu0 0
      %515 = vmatpush1.bf16.msra.mxu0 0
      %516 = vmatprep.subr.bf16.mxu0 0
      %517 = vmatpush1.bf16.msra.mxu0 0
      %518 = vmatprep.subr.bf16.mxu0 0
      %519 = vmatpush1.bf16.msra.mxu0 0
      %520 = vmatprep.subr.bf16.mxu0 0
      %521 = vmatpush1.bf16.msra.mxu0 0
      %522 = vmatprep.subr.bf16.mxu0 0
      %523 = vmatpush1.bf16.msra.mxu0 0
      %524 = vmatprep.subr.bf16.mxu0 0
      %525 = vmatpush1.bf16.msra.mxu0 0
      %526 = vmatprep.subr.bf16.mxu0 0
      %527 = vmatpush1.bf16.msra.mxu0 0
      %528 = vmatprep.mubr.bf16.mxu0 0
      %529 = vmatmul.mubr.bf16.gmra.mrb[0].mxu0 %v304
      %v530 = vpop.f32.mrb[0].mxu0
      %v531 = vadd.f32 %v359, %v530
      %v532 = vpop.f32.mrb[0].mxu0
      %v533 = vadd.f32 %v363, %v532
      %v534 = vpop.f32.mrb[0].mxu0
      %v535 = vadd.f32 %v359, %v534
      %v536 = vpop.f32.mrb[0].mxu0
      %v537 = vadd.f32 %v363, %v536
      %538 = vmatprep.mubr.bf16.mxu0 0
      %539 = vmatmul.mubr.bf16.gmra.mrb[0].mxu0 %v305
      %v540 = vpop.f32.mrb[0].mxu0
      %v541 = vadd.f32 %v359, %v540
      %v542 = vpop.f32.mrb[0].mxu0
      %v543 = vadd.f32 %v363, %v542
      %v544 = vpop.f32.mrb[0].mxu0
      %v545 = vadd.f32 %v359, %v544
      %v546 = vpop.f32.mrb[0].mxu0
      %v547 = vadd.f32 %v363, %v546
      %548 = vdwg.mxu0
      %549 = vmatprep.subr.bf16.mxu0 0
      %550 = vmatpush1.bf16.msra.mxu0 %v450
      %551 = vmatprep.subr.bf16.mxu0 0
      %552 = vmatpush1.bf16.msra.mxu0 %v453
      %553 = vmatprep.subr.bf16.mxu0 0
      %554 = vmatpush1.bf16.msra.mxu0 %v456
      %555 = vmatprep.subr.bf16.mxu0 0
      %556 = vmatpush1.bf16.msra.mxu0 %v459
      %557 = vmatprep.subr.bf16.mxu0 0
      %558 = vmatpush1.bf16.msra.mxu0 %v462
      %559 = vmatprep.subr.bf16.mxu0 0
      %560 = vmatpush1.bf16.msra.mxu0 %v465
      %561 = vmatprep.subr.bf16.mxu0 0
      %562 = vmatpush1.bf16.msra.mxu0 %v468
      %563 = vmatprep.subr.bf16.mxu0 0
      %564 = vmatpush1.bf16.msra.mxu0 %v471
      %565 = vmatprep.subr.bf16.mxu0 0
      %566 = vmatpush1.bf16.msra.mxu0 0
      %567 = vmatprep.subr.bf16.mxu0 0
      %568 = vmatpush1.bf16.msra.mxu0 0
      %569 = vmatprep.subr.bf16.mxu0 0
      %570 = vmatpush1.bf16.msra.mxu0 0
      %571 = vmatprep.subr.bf16.mxu0 0
      %572 = vmatpush1.bf16.msra.mxu0 0
      %573 = vmatprep.subr.bf16.mxu0 0
      %574 = vmatpush1.bf16.msra.mxu0 0
      %575 = vmatprep.subr.bf16.mxu0 0
      %576 = vmatpush1.bf16.msra.mxu0 0
      %577 = vmatprep.subr.bf16.mxu0 0
      %578 = vmatpush1.bf16.msra.mxu0 0
      %579 = vmatprep.subr.bf16.mxu0 0
      %580 = vmatpush1.bf16.msra.mxu0 0
      %581 = vmatprep.mubr.bf16.mxu0 0
      %582 = vmatmul.mubr.bf16.gmra.mrb[0].mxu0 %v304
      %v583 = vpop.f32.mrb[0].mxu0
      %v584 = vadd.f32 %v367, %v583
      %v585 = vpop.f32.mrb[0].mxu0
      %v586 = vpop.f32.mrb[0].mxu0
      %v587 = vadd.f32 %v367, %v586
      %v588 = vpop.f32.mrb[0].mxu0
      %589 = vmatprep.mubr.bf16.mxu0 0
      %590 = vmatmul.mubr.bf16.gmra.mrb[0].mxu0 %v305
      %v591 = vpop.f32.mrb[0].mxu0
      %v592 = vadd.f32 %v367, %v591
      %v593 = vpop.f32.mrb[0].mxu0
      %v594 = vpop.f32.mrb[0].mxu0
      %v595 = vadd.f32 %v367, %v594
      %v596 = vpop.f32.mrb[0].mxu0
      %597 = vdwg.mxu0
      %v598 = vpack.c.bf16 %v535, %v531
      %v599 = vpack.c.bf16 %v537, %v533
      %v600 = vpack.c.bf16 %v587, %v584
      %v601 = vpack.c.bf16 %v545, %v541
      %v602 = vpack.c.bf16 %v547, %v543
      %v603 = vpack.c.bf16 %v595, %v592
      %v610 = vunpack.c.l.b16 %v598
      %v611 = vunpack.c.l.b16 %v599
      %v612 = vunpack.c.l.b16 %v600
      %v613 = vunpack.c.h.b16 %v598
      %v614 = vunpack.c.h.b16 %v599
      %v615 = vunpack.c.h.b16 %v600
      %v616 = vunpack.c.l.b16 %v601
      %v617 = vunpack.c.l.b16 %v602
      %v618 = vunpack.c.l.b16 %v603
      %v619 = vunpack.c.h.b16 %v601
      %v620 = vunpack.c.h.b16 %v602
      %v621 = vunpack.c.h.b16 %v603
      %v622 = vpack.c.b16 %v611, %v610
      %v623 = vpack.c.b16 %v612, %v612
      %v624 = vpack.c.b16 %v614, %v613
      %v625 = vpack.c.b16 %v615, %v615
      %v626 = vpack.c.b16 %v617, %v616
      %v627 = vpack.c.b16 %v618, %v618
      %v628 = vpack.c.b16 %v620, %v619
      %v629 = vpack.c.b16 %v621, %v621
      %638 = vst [vmem:[%s228] sm:$0xff] %v622
      %639 = vst [vmem:[%s228 + $0x8] sm:$0xf] %v623
      %640 = vst [vmem:[%s228 + $0xc] sm:$0xff] %v624
      %641 = vst [vmem:[%s228 + $0x14] sm:$0xf] %v625
      %642 = vst [vmem:[%s228 + $0x18] sm:$0xff] %v626
      %643 = vst [vmem:[%s228 + $0x20] sm:$0xf] %v627
      %644 = vst [vmem:[%s228 + $0x24] sm:$0xff] %v628
      %645 = vst [vmem:[%s228 + $0x2c] sm:$0xf] %v629
      %s646 = smul.u32 4, %s16
      %p647 = scmp.lt.s32.totalorder %s646, 7
      %s648 = scalar_select %p647, %s646, 7
      %s649 = smul.addr %s648, 3
      %s650 = smul.addr %s649, 4
      %s651 = scalar_lea.vmem %s5, %s650
      // Predicated region
      $region41: #{visual_decoder_forward.13} parent=39 // pred_check
        %p652 = pneg %p144
      $region42: #{visual_decoder_forward.13} parent=39 // pred_check_branch
        %654 = sbr.rel (%p652) target = $region44
      $region43: #{visual_decoder_forward.13} parent=39 // pred_region
        %s655 = smul.u32 4, %s16
      $region44: #{visual_decoder_forward.13} parent=39 // pred_fallthru
        _
    $region40: #{visual_decoder_forward.13} parent=5 // pred_fallthru
      _
    %p656 = scmp.le.s32.totalorder 2, %s11
    // Predicated region
    $region45: #{visual_decoder_forward.13} parent=5 // pred_check
      %p657 = pneg %p656
    $region46: #{visual_decoder_forward.13} parent=5 // pred_check_branch
      %659 = sbr.rel (%p657) target = $region48
    $region47: #{visual_decoder_forward.13} parent=5 // pred_region
      %s660 = ssub.s32 %s11, 2
      // Predicated region
      $region49: #{visual_decoder_forward.13} parent=47 // pred_check
        %p661 = pneg %p150
      $region50: #{visual_decoder_forward.13} parent=47 // pred_check_branch
        %663 = sbr.rel (%p661) target = $region52
      $region51: #{visual_decoder_forward.13} parent=47 // pred_region
        %s664 = smul.u32 4, %s17
        %p665 = scmp.lt.s32.totalorder %s664, 7
        %s666 = scalar_select %p665, %s664, 7
        %s667 = smul.addr %s666, 3
        %s668 = smul.addr %s667, 4
        %s669 = scalar_lea.vmem %s5, %s668
      $region52: #{visual_decoder_forward.13} parent=47 // pred_fallthru
        _
    $region48: #{visual_decoder_forward.13} parent=5 // pred_fallthru
      _
  $region6: #{visual_decoder_forward.13} parent=0 // loop_footer
    %s15 = sadd.s32 1, %s11
  $region7: #{visual_decoder_forward.13} parent=0 // loop_footer_branch
    %10 = sbr.rel target = $region3
  $region8: #{visual_decoder_forward.13} parent=0 // loop_exit
    _

// kernel: visual_decoder_forward.12
$region0: #{visual_decoder_forward.12}
  #allocation0 [shape = 'u32[]', space=smem, size = 0x4, offset = 0x4, fixed_abs, tag = 'smem constant byte address 0x4 - core index']
  #allocation1 [shape = 'u32[144,128]{1,0:T(1,128)}', space=vmem, size = 0x12000, scoped, tag = 'internal scratch']
  %s0 = inlined_call_operand.vmem [shape: bf16[64,256], index: 0, kind: input, shape index: {}]
  %s1 = inlined_call_operand.vmem [shape: bf16[256,128], index: 1, kind: input, shape index: {}]
  %s2 = inlined_call_operand.vmem [shape: bf16[1,128], index: 2, kind: input, shape index: {}]
  %s3 = inlined_call_operand.vmem [shape: bf16[32,128], index: 3, kind: input, shape index: {}]
  %s4 = inlined_call_operand.vmem [shape: bf16[64,128], index: 4, kind: output, shape index: {}]
  %s5 = sld [smem:[#allocation0]]
  $region49: #{visual_decoder_forward.12} parent=0
    _
  %s7 = ssub.s32 1, %s5
  %s8 = scalar_select 0, %s7, %s5
  loop: start=0, step=1, limit=4
  $region2: #{visual_decoder_forward.12} parent=0 // loop_pre_header
    _
  $region3: #{visual_decoder_forward.12} parent=0 // loop_header
    %s10 = sphi 0, %s14
    %p11 = scmp.ge.s32.totalorder %s10, 4
    %s20 = sphi 0, %s22
    %s23 = sphi 0, %s20
    %s24 = sphi 0, %s23
    %s40 = sphi 0, %s24
    %s44 = sphi 0, %s44
    %s46 = sphi 0, %s44
    %s47 = sphi 0, %s46
    %s61 = sphi 0, %s47
    %s65 = sphi 0, %s65
    %s67 = sphi 0, %s65
    %s68 = sphi 0, %s67
    %s82 = sphi 0, %s68
    %s86 = sphi 0, %s86
    %s88 = sphi 0, %s86
    %s89 = sphi 0, %s88
    %s103 = sphi 0, %s89
    %s109 = sphi 0, %s111
    %s112 = sphi 0, %s109
    %s113 = sphi 0, %s112
    %s129 = sphi 0, %s113
  $region4: #{visual_decoder_forward.12} parent=0 // loop_header_branch
    %13 = sbr.rel (%p11) target = $region8
  $region5: #{visual_decoder_forward.12} parent=0 // loop_body
    %s15 = ssub.s32 %s10, 1
    %s16 = ssub.s32 %s10, 2
    %s17 = sadd.s32 %s10, 1
    %s18 = ssub.s32 %s10, %s17
    %p19 = scmp.eq.s32.totalorder %s18, 0
    %s21 = sadd.s32 %s20, 1
    %s22 = scalar_select %p19, %s20, %s21
    %p25 = pneg %p19
    %p26 = scmp.eq.s32.totalorder %s10, 1
    %p27 = por %p25, %p26
    %p28 = scmp.ne.s32.totalorder %s20, %s23
    %p29 = scmp.eq.s32.totalorder %s10, 0
    %p30 = por %p28, %p29
    %p31 = scmp.ne.s32.totalorder %s20, %s23
    %p32 = scmp.eq.s32.totalorder %s15, 1
    %p33 = por %p31, %p32
    %p34 = scmp.ne.s32.totalorder %s23, %s24
    %p35 = scmp.eq.s32.totalorder %s15, 0
    %p36 = por %p34, %p35
    %p37 = scmp.ne.s32.totalorder %s23, %s24
    %p38 = scmp.eq.s32.totalorder %s16, 1
    %p39 = por %p37, %p38
    %p41 = scmp.ne.s32.totalorder %s24, %s40
    %p42 = scmp.eq.s32.totalorder %s16, 0
    %p43 = por %p41, %p42
    %s45 = sadd.s32 %s44, 1
    %p48 = scmp.eq.s32.totalorder %s10, 1
    %p49 = scmp.ne.s32.totalorder %s44, %s46
    %p50 = scmp.eq.s32.totalorder %s10, 0
    %p51 = por %p49, %p50
    %p52 = scmp.ne.s32.totalorder %s44, %s46
    %p53 = scmp.eq.s32.totalorder %s15, 1
    %p54 = por %p52, %p53
    %p55 = scmp.ne.s32.totalorder %s46, %s47
    %p56 = scmp.eq.s32.totalorder %s15, 0
    %p57 = por %p55, %p56
    %p58 = scmp.ne.s32.totalorder %s46, %s47
    %p59 = scmp.eq.s32.totalorder %s16, 1
    %p60 = por %p58, %p59
    %p62 = scmp.ne.s32.totalorder %s47, %s61
    %p63 = scmp.eq.s32.totalorder %s16, 0
    %p64 = por %p62, %p63
    %s66 = sadd.s32 %s65, 1
    %p69 = scmp.eq.s32.totalorder %s10, 1
    %p70 = scmp.ne.s32.totalorder %s65, %s67
    %p71 = scmp.eq.s32.totalorder %s10, 0
    %p72 = por %p70, %p71
    %p73 = scmp.ne.s32.totalorder %s65, %s67
    %p74 = scmp.eq.s32.totalorder %s15, 1
    %p75 = por %p73, %p74
    %p76 = scmp.ne.s32.totalorder %s67, %s68
    %p77 = scmp.eq.s32.totalorder %s15, 0
    %p78 = por %p76, %p77
    %p79 = scmp.ne.s32.totalorder %s67, %s68
    %p80 = scmp.eq.s32.totalorder %s16, 1
    %p81 = por %p79, %p80
    %p83 = scmp.ne.s32.totalorder %s68, %s82
    %p84 = scmp.eq.s32.totalorder %s16, 0
    %p85 = por %p83, %p84
    %s87 = sadd.s32 %s86, 1
    %p90 = scmp.eq.s32.totalorder %s10, 1
    %p91 = scmp.ne.s32.totalorder %s86, %s88
    %p92 = scmp.eq.s32.totalorder %s10, 0
    %p93 = por %p91, %p92
    %p94 = scmp.ne.s32.totalorder %s86, %s88
    %p95 = scmp.eq.s32.totalorder %s15, 1
    %p96 = por %p94, %p95
    %p97 = scmp.ne.s32.totalorder %s88, %s89
    %p98 = scmp.eq.s32.totalorder %s15, 0
    %p99 = por %p97, %p98
    %p100 = scmp.ne.s32.totalorder %s88, %s89
    %p101 = scmp.eq.s32.totalorder %s16, 1
    %p102 = por %p100, %p101
    %p104 = scmp.ne.s32.totalorder %s89, %s103
    %p105 = scmp.eq.s32.totalorder %s16, 0
    %p106 = por %p104, %p105
    %s107 = ssub.s32 %s10, %s17
    %p108 = scmp.eq.s32.totalorder %s107, 0
    %s110 = sadd.s32 %s109, 1
    %s111 = scalar_select %p108, %s109, %s110
    %p114 = pneg %p108
    %p115 = scmp.eq.s32.totalorder %s10, 1
    %p116 = por %p114, %p115
    %p117 = scmp.ne.s32.totalorder %s109, %s112
    %p118 = scmp.eq.s32.totalorder %s10, 0
    %p119 = por %p117, %p118
    %p120 = scmp.ne.s32.totalorder %s109, %s112
    %p121 = scmp.eq.s32.totalorder %s15, 1
    %p122 = por %p120, %p121
    %p123 = scmp.ne.s32.totalorder %s112, %s113
    %p124 = scmp.eq.s32.totalorder %s15, 0
    %p125 = por %p123, %p124
    %p126 = scmp.ne.s32.totalorder %s112, %s113
    %p127 = scmp.eq.s32.totalorder %s16, 1
    %p128 = por %p126, %p127
    %p130 = scmp.ne.s32.totalorder %s113, %s129
    %p131 = scmp.eq.s32.totalorder %s16, 0
    %p132 = por %p130, %p131
    %p133 = scmp.le.s32.totalorder 1, %s10
    %p134 = scmp.lt.s32.totalorder %s10, 3
    %p135 = pnand %p133, %p134
    %p136 = pneg %p135
    // Predicated region
    $region9: #{visual_decoder_forward.12} parent=5 // pred_check
      _
    $region10: #{visual_decoder_forward.12} parent=5 // pred_check_branch
      %138 = sbr.rel (%p135) target = $region12
    $region11: #{visual_decoder_forward.12} parent=5 // pred_region
      %s139 = ssub.s32 %s10, 1
      // Predicated region
      $region13: #{visual_decoder_forward.12} parent=11 // pred_check
        %p140 = pneg %p57
      $region14: #{visual_decoder_forward.12} parent=11 // pred_check_branch
        %142 = sbr.rel (%p140) target = $region16
      $region15: #{visual_decoder_forward.12} parent=11 // pred_region
        _
      $region16: #{visual_decoder_forward.12} parent=11 // pred_fallthru
        _
      // Predicated region
      $region17: #{visual_decoder_forward.12} parent=11 // pred_check
        %p143 = pneg %p78
      $region18: #{visual_decoder_forward.12} parent=11 // pred_check_branch
        %145 = sbr.rel (%p143) target = $region20
      $region19: #{visual_decoder_forward.12} parent=11 // pred_region
        _
      $region20: #{visual_decoder_forward.12} parent=11 // pred_fallthru
        _
      // Predicated region
      $region21: #{visual_decoder_forward.12} parent=11 // pred_check
        %p146 = pneg %p99
      $region22: #{visual_decoder_forward.12} parent=11 // pred_check_branch
        %148 = sbr.rel (%p146) target = $region24
      $region23: #{visual_decoder_forward.12} parent=11 // pred_region
        _
      $region24: #{visual_decoder_forward.12} parent=11 // pred_fallthru
        _
    $region12: #{visual_decoder_forward.12} parent=5 // pred_fallthru
      _
    %p149 = scmp.lt.s32.totalorder %s10, 2
    // Predicated region
    $region25: #{visual_decoder_forward.12} parent=5 // pred_check
      %p150 = pneg %p149
    $region26: #{visual_decoder_forward.12} parent=5 // pred_check_branch
      %152 = sbr.rel (%p150) target = $region28
    $region27: #{visual_decoder_forward.12} parent=5 // pred_region
      // Predicated region
      $region29: #{visual_decoder_forward.12} parent=27 // pred_check
        %p153 = pneg %p30
      $region30: #{visual_decoder_forward.12} parent=27 // pred_check_branch
        %155 = sbr.rel (%p153) target = $region32
      $region31: #{visual_decoder_forward.12} parent=27 // pred_region
        %s156 = smul.u32 4, %s10
        %p157 = scmp.lt.s32.totalorder %s156, 7
        %s158 = scalar_select %p157, %s156, 7
        %s159 = smul.addr %s158, 2
        %s160 = smul.addr %s159, 4
        %s161 = scalar_lea.vmem %s0, %s160
        %s162 = smul.u32 4, %s10
      $region32: #{visual_decoder_forward.12} parent=27 // pred_fallthru
        _
    $region28: #{visual_decoder_forward.12} parent=5 // pred_fallthru
      _
    %p163 = scmp.le.s32.totalorder 1, %s10
    %p164 = scmp.lt.s32.totalorder %s10, 3
    %p165 = pnand %p163, %p164
    %p166 = pneg %p165
    // Predicated region
    $region33: #{visual_decoder_forward.12} parent=5 // pred_check
      _
    $region34: #{visual_decoder_forward.12} parent=5 // pred_check_branch
      %168 = sbr.rel (%p165) target = $region36
    $region35: #{visual_decoder_forward.12} parent=5 // pred_region
      %s169 = ssub.s32 %s10, 1
      %s170 = smul.u32 4, %s15
      %p171 = scmp.lt.s32.totalorder %s170, 7
      %s172 = scalar_select %p171, %s170, 7
      %s173 = smul.addr %s172, 2
      %s174 = smul.addr %s173, 4
      %s175 = scalar_lea.vmem %s0, %s174
      %p176 = pneg %p36
      %p177 = pneg %p33
      %p178 = pneg %p57
      %p179 = pneg %p54
      %p180 = pneg %p78
      %p181 = pneg %p75
      %p182 = pneg %p99
      %p183 = pneg %p96
      %p184 = pneg %p125
      %p185 = pneg %p122
      %s186 = smul.u32 4, %s15
      %p187 = scmp.lt.s32.totalorder %s186, 7
      %s188 = scalar_select %p187, %s186, 7
      %s189 = smul.addr %s188, 4
      %s190 = scalar_lea.vmem %s4, %s189
      %s191 = smul.u32 4, %s15
      %p192 = scmp.lt.s32.totalorder %s191, 7
      %s193 = scalar_select %p192, %s191, 7
      %s194 = smul.addr %s193, 2
      %s195 = smul.addr %s194, 4
      %s196 = scalar_lea.vmem %s0, %s195
      %s197 = smul.u32 4, %s15
      %s198 = smul.u32 4, %s15
      %p199 = scmp.lt.s32.totalorder %s198, 7
      %s200 = scalar_select %p199, %s198, 7
      %s201 = smul.addr %s200, 4
      %s202 = scalar_lea.vmem %s4, %s201
      %s203 = smul.u32 4, %s15
      %v205 = vld [vmem:[%s196] sm:$0xff]
      %v206 = vld [vmem:[%s196 + $0x8] sm:$0xff]
      %v207 = vld [vmem:[%s196 + $0x10] sm:$0xff]
      %v208 = vld [vmem:[%s196 + $0x18] sm:$0xff]
      %v209 = vld [vmem:[%s1] sm:$0xf]
      %v210 = vld [vmem:[%s1 + $0x4] sm:$0xf]
      %v211 = vld [vmem:[%s1 + $0x8] sm:$0xf]
      %v212 = vld [vmem:[%s1 + $0xc] sm:$0xf]
      %v213 = vld [vmem:[%s1 + $0x10] sm:$0xf]
      %v214 = vld [vmem:[%s1 + $0x14] sm:$0xf]
      %v215 = vld [vmem:[%s1 + $0x18] sm:$0xf]
      %v216 = vld [vmem:[%s1 + $0x1c] sm:$0xf]
      %v217 = vld [vmem:[%s1 + $0x20] sm:$0xf]
      %v218 = vld [vmem:[%s1 + $0x24] sm:$0xf]
      %v219 = vld [vmem:[%s1 + $0x28] sm:$0xf]
      %v220 = vld [vmem:[%s1 + $0x2c] sm:$0xf]
      %v221 = vld [vmem:[%s1 + $0x30] sm:$0xf]
      %v222 = vld [vmem:[%s1 + $0x34] sm:$0xf]
      %v223 = vld [vmem:[%s1 + $0x38] sm:$0xf]
      %v224 = vld [vmem:[%s1 + $0x3c] sm:$0xf]
      %v225 = vld [vmem:[%s1 + $0x40] sm:$0xf]
      %v226 = vld [vmem:[%s1 + $0x44] sm:$0xf]
      %v227 = vld [vmem:[%s1 + $0x48] sm:$0xf]
      %v228 = vld [vmem:[%s1 + $0x4c] sm:$0xf]
      %v229 = vld [vmem:[%s1 + $0x50] sm:$0xf]
      %v230 = vld [vmem:[%s1 + $0x54] sm:$0xf]
      %v231 = vld [vmem:[%s1 + $0x58] sm:$0xf]
      %v232 = vld [vmem:[%s1 + $0x5c] sm:$0xf]
      %v233 = vld [vmem:[%s1 + $0x60] sm:$0xf]
      %v234 = vld [vmem:[%s1 + $0x64] sm:$0xf]
      %v235 = vld [vmem:[%s1 + $0x68] sm:$0xf]
      %v236 = vld [vmem:[%s1 + $0x6c] sm:$0xf]
      %v237 = vld [vmem:[%s1 + $0x70] sm:$0xf]
      %v238 = vld [vmem:[%s1 + $0x74] sm:$0xf]
      %v239 = vld [vmem:[%s1 + $0x78] sm:$0xf]
      %v240 = vld [vmem:[%s1 + $0x7c] sm:$0xf]
      %v241 = vld [vmem:[%s2] sm:$0x1]
      %v242 = vunpack.c.l.bf16 %v241
      %v243 = vlaneseq
      %v244 = vshrl.u32 %v243, 7
      %v245 = vsub.s32 0, %v244
      %v246 = vrot.slane %v242, %v245
      %v251 = vunpack.c.l.b16 %v205
      %v252 = vunpack.c.h.b16 %v205
      %v253 = vunpack.c.l.b16 %v206
      %v254 = vunpack.c.h.b16 %v206
      %v255 = vunpack.c.l.b16 %v207
      %v256 = vunpack.c.h.b16 %v207
      %v257 = vunpack.c.l.b16 %v208
      %v258 = vunpack.c.h.b16 %v208
      %v259 = vpack.c.b16 %v253, %v251
      %v260 = vpack.c.b16 %v254, %v252
      %v261 = vpack.c.b16 %v257, %v255
      %v262 = vpack.c.b16 %v258, %v256
      %v299 = vunpack.c.l.b16 %v209
      %v300 = vunpack.c.l.b16 %v210
      %v301 = vunpack.c.l.b16 %v211
      %v302 = vunpack.c.l.b16 %v212
      %v303 = vunpack.c.l.b16 %v213
      %v304 = vunpack.c.l.b16 %v214
      %v305 = vunpack.c.l.b16 %v215
      %v306 = vunpack.c.l.b16 %v216
      %v307 = vunpack.c.l.b16 %v217
      %v308 = vunpack.c.l.b16 %v218
      %v309 = vunpack.c.l.b16 %v219
      %v310 = vunpack.c.l.b16 %v220
      %v311 = vunpack.c.l.b16 %v221
      %v312 = vunpack.c.l.b16 %v222
      %v313 = vunpack.c.l.b16 %v223
      %v314 = vunpack.c.l.b16 %v224
      %v315 = vunpack.c.l.b16 %v225
      %v316 = vunpack.c.l.b16 %v226
      %v317 = vunpack.c.l.b16 %v227
      %v318 = vunpack.c.l.b16 %v228
      %v319 = vunpack.c.l.b16 %v229
      %v320 = vunpack.c.l.b16 %v230
      %v321 = vunpack.c.l.b16 %v231
      %v322 = vunpack.c.l.b16 %v232
      %v323 = vunpack.c.l.b16 %v233
      %v324 = vunpack.c.l.b16 %v234
      %v325 = vunpack.c.l.b16 %v235
      %v326 = vunpack.c.l.b16 %v236
      %v327 = vunpack.c.l.b16 %v237
      %v328 = vunpack.c.l.b16 %v238
      %v329 = vunpack.c.l.b16 %v239
      %v330 = vunpack.c.l.b16 %v240
      %v331 = vpack.c.b16 %v300, %v299
      %v332 = vpack.c.b16 %v302, %v301
      %v333 = vpack.c.b16 %v304, %v303
      %v334 = vpack.c.b16 %v306, %v305
      %v335 = vpack.c.b16 %v308, %v307
      %v336 = vpack.c.b16 %v310, %v309
      %v337 = vpack.c.b16 %v312, %v311
      %v338 = vpack.c.b16 %v314, %v313
      %v339 = vpack.c.b16 %v316, %v315
      %v340 = vpack.c.b16 %v318, %v317
      %v341 = vpack.c.b16 %v320, %v319
      %v342 = vpack.c.b16 %v322, %v321
      %v343 = vpack.c.b16 %v324, %v323
      %v344 = vpack.c.b16 %v326, %v325
      %v345 = vpack.c.b16 %v328, %v327
      %v346 = vpack.c.b16 %v330, %v329
      %363 = vmatprep.subr.bf16.mxu0 0
      %364 = vmatpush1.bf16.msra.mxu0 %v331
      %365 = vmatprep.subr.bf16.mxu0 0
      %366 = vmatpush1.bf16.msra.mxu0 %v332
      %367 = vmatprep.subr.bf16.mxu0 0
      %368 = vmatpush1.bf16.msra.mxu0 %v333
      %369 = vmatprep.subr.bf16.mxu0 0
      %370 = vmatpush1.bf16.msra.mxu0 %v334
      %371 = vmatprep.subr.bf16.mxu0 0
      %372 = vmatpush1.bf16.msra.mxu0 %v335
      %373 = vmatprep.subr.bf16.mxu0 0
      %374 = vmatpush1.bf16.msra.mxu0 %v336
      %375 = vmatprep.subr.bf16.mxu0 0
      %376 = vmatpush1.bf16.msra.mxu0 %v337
      %377 = vmatprep.subr.bf16.mxu0 0
      %378 = vmatpush1.bf16.msra.mxu0 %v338
      %379 = vmatprep.subr.bf16.mxu0 0
      %380 = vmatpush1.bf16.msra.mxu0 %v339
      %381 = vmatprep.subr.bf16.mxu0 0
      %382 = vmatpush1.bf16.msra.mxu0 %v340
      %383 = vmatprep.subr.bf16.mxu0 0
      %384 = vmatpush1.bf16.msra.mxu0 %v341
      %385 = vmatprep.subr.bf16.mxu0 0
      %386 = vmatpush1.bf16.msra.mxu0 %v342
      %387 = vmatprep.subr.bf16.mxu0 0
      %388 = vmatpush1.bf16.msra.mxu0 %v343
      %389 = vmatprep.subr.bf16.mxu0 0
      %390 = vmatpush1.bf16.msra.mxu0 %v344
      %391 = vmatprep.subr.bf16.mxu0 0
      %392 = vmatpush1.bf16.msra.mxu0 %v345
      %393 = vmatprep.subr.bf16.mxu0 0
      %394 = vmatpush1.bf16.msra.mxu0 %v346
      %395 = vmatprep.mubr.bf16.mxu0 %v260
      %396 = vmatmul.mubr.bf16.gmra.mrb[0].mxu0 %v259
      %v397 = vpop.f32.mrb[0].mxu0
      %v398 = vadd.f32 %v246, %v397
      %v399 = vpop.f32.mrb[0].mxu0
      %v400 = vpop.f32.mrb[0].mxu0
      %v401 = vadd.f32 %v246, %v400
      %v402 = vpop.f32.mrb[0].mxu0
      %403 = vmatprep.mubr.bf16.mxu0 %v262
      %404 = vmatmul.mubr.bf16.gmra.mrb[0].mxu0 %v261
      %v405 = vpop.f32.mrb[0].mxu0
      %v406 = vadd.f32 %v246, %v405
      %v407 = vpop.f32.mrb[0].mxu0
      %v408 = vpop.f32.mrb[0].mxu0
      %v409 = vadd.f32 %v246, %v408
      %v410 = vpop.f32.mrb[0].mxu0
      %411 = vdwg.mxu0
      %v412 = vld [vmem:[%s3] sm:$0xf]
      %v413 = vld [vmem:[%s3 + $0x4] sm:$0xf]
      %v414 = vld [vmem:[%s3 + $0x8] sm:$0xf]
      %v415 = vld [vmem:[%s3 + $0xc] sm:$0xf]
      %v416 = vunpack.c.l.bf16 %v412
      %v417 = vunpack.c.l.bf16 %v413
      %v418 = vunpack.c.l.bf16 %v414
      %v419 = vunpack.c.l.bf16 %v415
      %v420 = vadd.f32 %v398, %v416
      %v421 = vadd.f32 %v401, %v417
      %v422 = vadd.f32 %v406, %v418
      %v423 = vadd.f32 %v409, %v419
      %v424 = vpack.c.bf16 %v421, %v420
      %v425 = vpack.c.bf16 %v423, %v422
      %v428 = vunpack.c.l.b16 %v424
      %v429 = vunpack.c.h.b16 %v424
      %v430 = vunpack.c.l.b16 %v425
      %v431 = vunpack.c.h.b16 %v425
      %v432 = vpack.c.b16 %v428, %v428
      %v433 = vpack.c.b16 %v429, %v429
      %v434 = vpack.c.b16 %v430, %v430
      %v435 = vpack.c.b16 %v431, %v431
      %440 = vst [vmem:[%s202] sm:$0xf] %v432
      %441 = vst [vmem:[%s202 + $0x4] sm:$0xf] %v433
      %442 = vst [vmem:[%s202 + $0x8] sm:$0xf] %v434
      %443 = vst [vmem:[%s202 + $0xc] sm:$0xf] %v435
      %s444 = smul.u32 4, %s15
      %p445 = scmp.lt.s32.totalorder %s444, 7
      %s446 = scalar_select %p445, %s444, 7
      %s447 = smul.addr %s446, 4
      %s448 = scalar_lea.vmem %s4, %s447
      // Predicated region
      $region37: #{visual_decoder_forward.12} parent=35 // pred_check
        %p449 = pneg %p122
      $region38: #{visual_decoder_forward.12} parent=35 // pred_check_branch
        %451 = sbr.rel (%p449) target = $region40
      $region39: #{visual_decoder_forward.12} parent=35 // pred_region
        %s452 = smul.u32 4, %s15
      $region40: #{visual_decoder_forward.12} parent=35 // pred_fallthru
        _
    $region36: #{visual_decoder_forward.12} parent=5 // pred_fallthru
      _
    %p453 = scmp.le.s32.totalorder 2, %s10
    // Predicated region
    $region41: #{visual_decoder_forward.12} parent=5 // pred_check
      %p454 = pneg %p453
    $region42: #{visual_decoder_forward.12} parent=5 // pred_check_branch
      %456 = sbr.rel (%p454) target = $region44
    $region43: #{visual_decoder_forward.12} parent=5 // pred_region
      %s457 = ssub.s32 %s10, 2
      // Predicated region
      $region45: #{visual_decoder_forward.12} parent=43 // pred_check
        %p458 = pneg %p128
      $region46: #{visual_decoder_forward.12} parent=43 // pred_check_branch
        %460 = sbr.rel (%p458) target = $region48
      $region47: #{visual_decoder_forward.12} parent=43 // pred_region
        %s461 = smul.u32 4, %s16
        %p462 = scmp.lt.s32.totalorder %s461, 7
        %s463 = scalar_select %p462, %s461, 7
        %s464 = smul.addr %s463, 4
        %s465 = scalar_lea.vmem %s4, %s464
      $region48: #{visual_decoder_forward.12} parent=43 // pred_fallthru
        _
    $region44: #{visual_decoder_forward.12} parent=5 // pred_fallthru
      _
  $region6: #{visual_decoder_forward.12} parent=0 // loop_footer
    %s14 = sadd.s32 1, %s10
  $region7: #{visual_decoder_forward.12} parent=0 // loop_footer_branch
    %9 = sbr.rel target = $region3
  $region8: #{visual_decoder_forward.12} parent=0 // loop_exit
    _

// kernel: visual_decoder_forward.14
$region0: #{visual_decoder_forward.14}
  #allocation0 [shape = 'u32[]', space=smem, size = 0x4, offset = 0x4, fixed_abs, tag = 'smem constant byte address 0x4 - core index']
  #allocation1 [shape = 'u32[144,128]{1,0:T(1,128)}', space=vmem, size = 0x12000, scoped, tag = 'internal scratch']
  #allocation2 [shape = 'f32[32,1]{1,0:T(8,128)}', space=vmem, size = 0x4000, scoped, tag = 'scratch operand']
  #allocation3 [shape = 'f32[32,1]{1,0:T(8,128)}', space=vmem, size = 0x4000, scoped, tag = 'scratch operand']
  #allocation4 [shape = 'f32[32,64]{1,0:T(8,128)}', space=vmem, size = 0x4000, scoped, tag = 'scratch operand']
  %s0 = inlined_call_operand.vmem [shape: bf16[4,32,64], index: 0, kind: input, shape index: {}]
  %s1 = inlined_call_operand.vmem [shape: bf16[4,32,64], index: 1, kind: input, shape index: {}]
  %s2 = inlined_call_operand.vmem [shape: bf16[4,32,64], index: 2, kind: input, shape index: {}]
  %s3 = inlined_call_operand.vmem [shape: bf16[4,32,64], index: 3, kind: output, shape index: {}]
  %s4 = sld [smem:[#allocation0]]
  $region53: #{visual_decoder_forward.14} parent=0
    _
  %s6 = ssub.s32 1, %s4
  %s7 = scalar_select 0, %s6, %s4
  loop: start=0, step=1, limit=6
  $region2: #{visual_decoder_forward.14} parent=0 // loop_pre_header
    _
  $region3: #{visual_decoder_forward.14} parent=0 // loop_header
    %s9 = sphi 0, %s13
    %p10 = scmp.ge.s32.totalorder %s9, 6
    %s16 = sphi 0, %s35
    %s17 = sphi 0, %s31
    %s18 = sphi 0, %s27
    %s19 = sphi 0, %s16
    %s20 = sphi 0, %s17
    %s21 = sphi 0, %s18
    %s22 = sphi 0, %s19
    %s23 = sphi 0, %s20
    %s24 = sphi 0, %s21
    %s40 = sphi 0, %s42
    %s43 = sphi 0, %s40
    %s44 = sphi 0, %s43
    %s60 = sphi 0, %s44
    %s68 = sphi 0, %s70
    %s71 = sphi 0, %s68
    %s72 = sphi 0, %s71
    %s88 = sphi 0, %s72
    %s96 = sphi 0, %s98
    %s99 = sphi 0, %s96
    %s100 = sphi 0, %s99
    %s116 = sphi 0, %s100
    %s124 = sphi 0, %s126
    %s127 = sphi 0, %s124
    %s128 = sphi 0, %s127
    %s144 = sphi 0, %s128
  $region4: #{visual_decoder_forward.14} parent=0 // loop_header_branch
    %12 = sbr.rel (%p10) target = $region8
  $region5: #{visual_decoder_forward.14} parent=0 // loop_body
    %s14 = ssub.s32 %s9, 1
    %s15 = ssub.s32 %s9, 2
    %s25 = sadd.s32 1, %s18
    %p26 = scmp.ge.s32.totalorder %s25, 1
    %s27 = scalar_select %p26, 0, %s25
    %s28 = sadd.s32 1, %s17
    %s29 = scalar_select %p26, %s28, %s17
    %p30 = scmp.ge.s32.totalorder %s29, 1
    %s31 = scalar_select %p30, 0, %s29
    %s32 = sadd.s32 1, %s16
    %s33 = scalar_select %p30, %s32, %s16
    %p34 = scmp.ge.s32.totalorder %s33, 4
    %s35 = scalar_select %p34, 0, %s33
    %s36 = ssub.s32 %s16, %s35
    %s37 = ssub.s32 %s17, %s31
    %s38 = sor.u32 %s36, %s37
    %p39 = scmp.eq.s32.totalorder %s38, 0
    %s41 = sadd.s32 %s40, 1
    %s42 = scalar_select %p39, %s40, %s41
    %p45 = pneg %p39
    %p46 = scmp.eq.s32.totalorder %s9, 3
    %p47 = por %p45, %p46
    %p48 = scmp.ne.s32.totalorder %s40, %s43
    %p49 = scmp.eq.s32.totalorder %s9, 0
    %p50 = por %p48, %p49
    %p51 = scmp.ne.s32.totalorder %s40, %s43
    %p52 = scmp.eq.s32.totalorder %s14, 3
    %p53 = por %p51, %p52
    %p54 = scmp.ne.s32.totalorder %s43, %s44
    %p55 = scmp.eq.s32.totalorder %s14, 0
    %p56 = por %p54, %p55
    %p57 = scmp.ne.s32.totalorder %s43, %s44
    %p58 = scmp.eq.s32.totalorder %s15, 3
    %p59 = por %p57, %p58
    %p61 = scmp.ne.s32.totalorder %s44, %s60
    %p62 = scmp.eq.s32.totalorder %s15, 0
    %p63 = por %p61, %p62
    %s64 = ssub.s32 %s16, %s35
    %s65 = ssub.s32 %s18, %s27
    %s66 = sor.u32 %s64, %s65
    %p67 = scmp.eq.s32.totalorder %s66, 0
    %s69 = sadd.s32 %s68, 1
    %s70 = scalar_select %p67, %s68, %s69
    %p73 = pneg %p67
    %p74 = scmp.eq.s32.totalorder %s9, 3
    %p75 = por %p73, %p74
    %p76 = scmp.ne.s32.totalorder %s68, %s71
    %p77 = scmp.eq.s32.totalorder %s9, 0
    %p78 = por %p76, %p77
    %p79 = scmp.ne.s32.totalorder %s68, %s71
    %p80 = scmp.eq.s32.totalorder %s14, 3
    %p81 = por %p79, %p80
    %p82 = scmp.ne.s32.totalorder %s71, %s72
    %p83 = scmp.eq.s32.totalorder %s14, 0
    %p84 = por %p82, %p83
    %p85 = scmp.ne.s32.totalorder %s71, %s72
    %p86 = scmp.eq.s32.totalorder %s15, 3
    %p87 = por %p85, %p86
    %p89 = scmp.ne.s32.totalorder %s72, %s88
    %p90 = scmp.eq.s32.totalorder %s15, 0
    %p91 = por %p89, %p90
    %s92 = ssub.s32 %s16, %s35
    %s93 = ssub.s32 %s18, %s27
    %s94 = sor.u32 %s92, %s93
    %p95 = scmp.eq.s32.totalorder %s94, 0
    %s97 = sadd.s32 %s96, 1
    %s98 = scalar_select %p95, %s96, %s97
    %p101 = pneg %p95
    %p102 = scmp.eq.s32.totalorder %s9, 3
    %p103 = por %p101, %p102
    %p104 = scmp.ne.s32.totalorder %s96, %s99
    %p105 = scmp.eq.s32.totalorder %s9, 0
    %p106 = por %p104, %p105
    %p107 = scmp.ne.s32.totalorder %s96, %s99
    %p108 = scmp.eq.s32.totalorder %s14, 3
    %p109 = por %p107, %p108
    %p110 = scmp.ne.s32.totalorder %s99, %s100
    %p111 = scmp.eq.s32.totalorder %s14, 0
    %p112 = por %p110, %p111
    %p113 = scmp.ne.s32.totalorder %s99, %s100
    %p114 = scmp.eq.s32.totalorder %s15, 3
    %p115 = por %p113, %p114
    %p117 = scmp.ne.s32.totalorder %s100, %s116
    %p118 = scmp.eq.s32.totalorder %s15, 0
    %p119 = por %p117, %p118
    %s120 = ssub.s32 %s16, %s35
    %s121 = ssub.s32 %s17, %s31
    %s122 = sor.u32 %s120, %s121
    %p123 = scmp.eq.s32.totalorder %s122, 0
    %s125 = sadd.s32 %s124, 1
    %s126 = scalar_select %p123, %s124, %s125
    %p129 = pneg %p123
    %p130 = scmp.eq.s32.totalorder %s9, 3
    %p131 = por %p129, %p130
    %p132 = scmp.ne.s32.totalorder %s124, %s127
    %p133 = scmp.eq.s32.totalorder %s9, 0
    %p134 = por %p132, %p133
    %p135 = scmp.ne.s32.totalorder %s124, %s127
    %p136 = scmp.eq.s32.totalorder %s14, 3
    %p137 = por %p135, %p136
    %p138 = scmp.ne.s32.totalorder %s127, %s128
    %p139 = scmp.eq.s32.totalorder %s14, 0
    %p140 = por %p138, %p139
    %p141 = scmp.ne.s32.totalorder %s127, %s128
    %p142 = scmp.eq.s32.totalorder %s15, 3
    %p143 = por %p141, %p142
    %p145 = scmp.ne.s32.totalorder %s128, %s144
    %p146 = scmp.eq.s32.totalorder %s15, 0
    %p147 = por %p145, %p146
    %p148 = scmp.le.s32.totalorder 1, %s9
    %p149 = scmp.lt.s32.totalorder %s9, 5
    %p150 = pnand %p148, %p149
    %p151 = pneg %p150
    // Predicated region
    $region9: #{visual_decoder_forward.14} parent=5 // pred_check
      _
    $region10: #{visual_decoder_forward.14} parent=5 // pred_check_branch
      %153 = sbr.rel (%p150) target = $region12
    $region11: #{visual_decoder_forward.14} parent=5 // pred_region
      %s154 = ssub.s32 %s9, 1
    $region12: #{visual_decoder_forward.14} parent=5 // pred_fallthru
      _
    %p155 = scmp.lt.s32.totalorder %s9, 4
    // Predicated region
    $region13: #{visual_decoder_forward.14} parent=5 // pred_check
      %p156 = pneg %p155
    $region14: #{visual_decoder_forward.14} parent=5 // pred_check_branch
      %158 = sbr.rel (%p156) target = $region16
    $region15: #{visual_decoder_forward.14} parent=5 // pred_region
      // Predicated region
      $region17: #{visual_decoder_forward.14} parent=15 // pred_check
        %p159 = pneg %p50
      $region18: #{visual_decoder_forward.14} parent=15 // pred_check_branch
        %161 = sbr.rel (%p159) target = $region20
      $region19: #{visual_decoder_forward.14} parent=15 // pred_region
        %s162 = smul.u32 4, %s17
        %p163 = scmp.lt.s32.totalorder %s16, 3
        %s164 = scalar_select %p163, %s16, 3
        %p165 = scmp.lt.s32.totalorder %s162, 3
        %s166 = scalar_select %p165, %s162, 3
        %s167 = smul.addr %s164, 4
        %s168 = sadd.s32 %s166, %s167
        %s169 = smul.addr %s168, 4
        %s170 = scalar_lea.vmem %s0, %s169
        %s171 = smul.u32 4, %s17
      $region20: #{visual_decoder_forward.14} parent=15 // pred_fallthru
        _
      // Predicated region
      $region21: #{visual_decoder_forward.14} parent=15 // pred_check
        %p172 = pneg %p78
      $region22: #{visual_decoder_forward.14} parent=15 // pred_check_branch
        %174 = sbr.rel (%p172) target = $region24
      $region23: #{visual_decoder_forward.14} parent=15 // pred_region
        %s175 = smul.u32 4, %s18
        %p176 = scmp.lt.s32.totalorder %s16, 3
        %s177 = scalar_select %p176, %s16, 3
        %p178 = scmp.lt.s32.totalorder %s175, 3
        %s179 = scalar_select %p178, %s175, 3
        %s180 = smul.addr %s177, 4
        %s181 = sadd.s32 %s179, %s180
        %s182 = smul.addr %s181, 4
        %s183 = scalar_lea.vmem %s1, %s182
        %s184 = smul.u32 4, %s18
      $region24: #{visual_decoder_forward.14} parent=15 // pred_fallthru
        _
      // Predicated region
      $region25: #{visual_decoder_forward.14} parent=15 // pred_check
        %p185 = pneg %p106
      $region26: #{visual_decoder_forward.14} parent=15 // pred_check_branch
        %187 = sbr.rel (%p185) target = $region28
      $region27: #{visual_decoder_forward.14} parent=15 // pred_region
        %s188 = smul.u32 4, %s18
        %p189 = scmp.lt.s32.totalorder %s16, 3
        %s190 = scalar_select %p189, %s16, 3
        %p191 = scmp.lt.s32.totalorder %s188, 3
        %s192 = scalar_select %p191, %s188, 3
        %s193 = smul.addr %s190, 4
        %s194 = sadd.s32 %s192, %s193
        %s195 = smul.addr %s194, 4
        %s196 = scalar_lea.vmem %s2, %s195
        %s197 = smul.u32 4, %s18
      $region28: #{visual_decoder_forward.14} parent=15 // pred_fallthru
        _
    $region16: #{visual_decoder_forward.14} parent=5 // pred_fallthru
      _
    %p198 = scmp.le.s32.totalorder 1, %s9
    %p199 = scmp.lt.s32.totalorder %s9, 5
    %p200 = pnand %p198, %p199
    %p201 = pneg %p200
    // Predicated region
    $region29: #{visual_decoder_forward.14} parent=5 // pred_check
      _
    $region30: #{visual_decoder_forward.14} parent=5 // pred_check_branch
      %203 = sbr.rel (%p200) target = $region32
    $region31: #{visual_decoder_forward.14} parent=5 // pred_region
      %s204 = ssub.s32 %s9, 1
      %s205 = smul.u32 4, %s20
      %p206 = scmp.lt.s32.totalorder %s19, 3
      %s207 = scalar_select %p206, %s19, 3
      %p208 = scmp.lt.s32.totalorder %s205, 3
      %s209 = scalar_select %p208, %s205, 3
      %s210 = smul.addr %s207, 4
      %s211 = sadd.s32 %s209, %s210
      %s212 = smul.addr %s211, 4
      %s213 = scalar_lea.vmem %s0, %s212
      %p214 = pneg %p56
      %p215 = pneg %p53
      %s216 = smul.u32 4, %s21
      %p217 = scmp.lt.s32.totalorder %s19, 3
      %s218 = scalar_select %p217, %s19, 3
      %p219 = scmp.lt.s32.totalorder %s216, 3
      %s220 = scalar_select %p219, %s216, 3
      %s221 = smul.addr %s218, 4
      %s222 = sadd.s32 %s220, %s221
      %s223 = smul.addr %s222, 4
      %s224 = scalar_lea.vmem %s1, %s223
      %p225 = pneg %p84
      %p226 = pneg %p81
      %s227 = smul.u32 4, %s21
      %p228 = scmp.lt.s32.totalorder %s19, 3
      %s229 = scalar_select %p228, %s19, 3
      %p230 = scmp.lt.s32.totalorder %s227, 3
      %s231 = scalar_select %p230, %s227, 3
      %s232 = smul.addr %s229, 4
      %s233 = sadd.s32 %s231, %s232
      %s234 = smul.addr %s233, 4
      %s235 = scalar_lea.vmem %s2, %s234
      %p236 = pneg %p112
      %p237 = pneg %p109
      %p238 = pneg %p140
      %p239 = pneg %p137
      %s240 = smul.u32 4, %s20
      %p241 = scmp.lt.s32.totalorder %s19, 3
      %s242 = scalar_select %p241, %s19, 3
      %p243 = scmp.lt.s32.totalorder %s240, 3
      %s244 = scalar_select %p243, %s240, 3
      %s245 = smul.addr %s242, 4
      %s246 = sadd.s32 %s244, %s245
      %s247 = smul.addr %s246, 4
      %s248 = scalar_lea.vmem %s3, %s247
      %s249 = smul.u32 4, %s20
      %p250 = scmp.lt.s32.totalorder %s19, 3
      %s251 = scalar_select %p250, %s19, 3
      %p252 = scmp.lt.s32.totalorder %s249, 3
      %s253 = scalar_select %p252, %s249, 3
      %s254 = smul.addr %s251, 4
      %s255 = sadd.s32 %s253, %s254
      %s256 = smul.addr %s255, 4
      %s257 = scalar_lea.vmem %s0, %s256
      %s258 = smul.u32 4, %s20
      %s259 = smul.u32 4, %s21
      %p260 = scmp.lt.s32.totalorder %s19, 3
      %s261 = scalar_select %p260, %s19, 3
      %p262 = scmp.lt.s32.totalorder %s259, 3
      %s263 = scalar_select %p262, %s259, 3
      %s264 = smul.addr %s261, 4
      %s265 = sadd.s32 %s263, %s264
      %s266 = smul.addr %s265, 4
      %s267 = scalar_lea.vmem %s1, %s266
      %s268 = smul.u32 4, %s21
      %s269 = smul.u32 4, %s21
      %p270 = scmp.lt.s32.totalorder %s19, 3
      %s271 = scalar_select %p270, %s19, 3
      %p272 = scmp.lt.s32.totalorder %s269, 3
      %s273 = scalar_select %p272, %s269, 3
      %s274 = smul.addr %s271, 4
      %s275 = sadd.s32 %s273, %s274
      %s276 = smul.addr %s275, 4
      %s277 = scalar_lea.vmem %s2, %s276
      %s278 = smul.u32 4, %s21
      %s279 = smul.u32 4, %s20
      %p280 = scmp.lt.s32.totalorder %s19, 3
      %s281 = scalar_select %p280, %s19, 3
      %p282 = scmp.lt.s32.totalorder %s279, 3
      %s283 = scalar_select %p282, %s279, 3
      %s284 = smul.addr %s281, 4
      %s285 = sadd.s32 %s283, %s284
      %s286 = smul.addr %s285, 4
      %s287 = scalar_lea.vmem %s3, %s286
      %s288 = smul.u32 4, %s20
      %p290 = scmp.eq.s32.totalorder %s21, 0
      // Predicated region
      $region33: #{visual_decoder_forward.14} parent=31 // pred_check
        %p291 = pneg %p290
      $region34: #{visual_decoder_forward.14} parent=31 // pred_check_branch
        %293 = sbr.rel (%p291) target = $region36
      $region35: #{visual_decoder_forward.14} parent=31 // pred_region
        %vm294 = vcmask 7168
        %295 = vst.msk [vmem:[#allocation2] sm:$0xff] %vm294, -inf
        %296 = vst.msk [vmem:[#allocation2 + $0x8] sm:$0xff] %vm294, -inf
        %297 = vst.msk [vmem:[#allocation2 + $0x10] sm:$0xff] %vm294, -inf
        %298 = vst.msk [vmem:[#allocation2 + $0x18] sm:$0xff] %vm294, -inf
        %299 = vst.msk [vmem:[#allocation3] sm:$0xff] %vm294, 0.0
        %300 = vst.msk [vmem:[#allocation3 + $0x8] sm:$0xff] %vm294, 0.0
        %301 = vst.msk [vmem:[#allocation3 + $0x10] sm:$0xff] %vm294, 0.0
        %302 = vst.msk [vmem:[#allocation3 + $0x18] sm:$0xff] %vm294, 0.0
        %vm303 = vcmask 523264
        %304 = vst.msk [vmem:[#allocation4] sm:$0xff] %vm303, 0.0
        %305 = vst.msk [vmem:[#allocation4 + $0x8] sm:$0xff] %vm303, 0.0
        %306 = vst.msk [vmem:[#allocation4 + $0x10] sm:$0xff] %vm303, 0.0
        %307 = vst.msk [vmem:[#allocation4 + $0x18] sm:$0xff] %vm303, 0.0
      $region36: #{visual_decoder_forward.14} parent=31 // pred_fallthru
        _
      %v308 = vld [vmem:[%s257] sm:$0xf]
      %v309 = vld [vmem:[%s257 + $0x4] sm:$0xf]
      %v310 = vld [vmem:[%s257 + $0x8] sm:$0xf]
      %v311 = vld [vmem:[%s257 + $0xc] sm:$0xf]
      %v312 = vunpack.c.l.bf16 %v308
      %v313 = vunpack.c.l.bf16 %v309
      %v314 = vunpack.c.l.bf16 %v310
      %v315 = vunpack.c.l.bf16 %v311
      %v316 = vmul.f32 %v312, 0.125
      %v317 = vmul.f32 %v313, 0.125
      %v318 = vmul.f32 %v314, 0.125
      %v319 = vmul.f32 %v315, 0.125
      %v320 = vpack.c.bf16 %v317, %v316
      %v321 = vpack.c.bf16 %v319, %v318
      %v322 = vld [vmem:[%s267] sm:$0xf]
      %v323 = vld [vmem:[%s267 + $0x4] sm:$0xf]
      %v324 = vld [vmem:[%s267 + $0x8] sm:$0xf]
      %v325 = vld [vmem:[%s267 + $0xc] sm:$0xf]
      %v326 = vld [vmem:[%s277] sm:$0xf]
      %v327 = vld [vmem:[%s277 + $0x4] sm:$0xf]
      %v328 = vld [vmem:[%s277 + $0x8] sm:$0xf]
      %v329 = vld [vmem:[%s277 + $0xc] sm:$0xf]
      %v334 = vunpack.c.l.b16 %v322
      %v335 = vunpack.c.l.b16 %v323
      %v336 = vunpack.c.l.b16 %v324
      %v337 = vunpack.c.l.b16 %v325
      %v338 = vpack.c.b16 %v335, %v334
      %v339 = vpack.c.b16 %v337, %v336
      %vm340 = vcmask 523264
      %v342 = vsel %vm340, %v320, 0
      %v345 = vsel %vm340, %v321, 0
      %v348 = vsel %vm340, %v338, 0
      %v351 = vsel %vm340, %v339, 0
      %353 = vmatprep.subr.bf16.mxu0 0
      %354 = vmatpush1.bf16.xpose.msra.mxu0 %v348
      %355 = vmatprep.subr.bf16.mxu0 0
      %356 = vmatpush1.bf16.xpose.msra.mxu0 %v351
      %357 = vmatprep.subr.bf16.mxu0 0
      %358 = vmatpush1.bf16.xpose.msra.mxu0 0
      %359 = vmatprep.subr.bf16.mxu0 0
      %360 = vmatpush1.bf16.xpose.msra.mxu0 0
      %361 = vmatprep.subr.bf16.mxu0 0
      %362 = vmatpush1.bf16.xpose.msra.mxu0 0
      %363 = vmatprep.subr.bf16.mxu0 0
      %364 = vmatpush1.bf16.xpose.msra.mxu0 0
      %365 = vmatprep.subr.bf16.mxu0 0
      %366 = vmatpush1.bf16.xpose.msra.mxu0 0
      %367 = vmatprep.subr.bf16.mxu0 0
      %368 = vmatpush1.bf16.xpose.msra.mxu0 0
      %369 = vmatprep.subr.bf16.mxu0 0
      %370 = vmatpush1.bf16.xpose.msra.mxu0 0
      %371 = vmatprep.subr.bf16.mxu0 0
      %372 = vmatpush1.bf16.xpose.msra.mxu0 0
      %373 = vmatprep.subr.bf16.mxu0 0
      %374 = vmatpush1.bf16.xpose.msra.mxu0 0
      %375 = vmatprep.subr.bf16.mxu0 0
      %376 = vmatpush1.bf16.xpose.msra.mxu0 0
      %377 = vmatprep.subr.bf16.mxu0 0
      %378 = vmatpush1.bf16.xpose.msra.mxu0 0
      %379 = vmatprep.subr.bf16.mxu0 0
      %380 = vmatpush1.bf16.xpose.msra.mxu0 0
      %381 = vmatprep.subr.bf16.mxu0 0
      %382 = vmatpush1.bf16.xpose.msra.mxu0 0
      %383 = vmatprep.subr.bf16.mxu0 0
      %384 = vmatpush1.bf16.xpose.msra.mxu0 0
      %385 = vmatprep.mubr.bf16.mxu0 0
      %386 = vmatmul.mubr.bf16.gmra.mrb[0].mxu0 %v342
      %v387 = vpop.f32.mrb[0].mxu0
      %v388 = vadd.f32 0.0, %v387
      %v389 = vpop.f32.mrb[0].mxu0
      %v390 = vpop.f32.mrb[0].mxu0
      %v391 = vadd.f32 0.0, %v390
      %v392 = vpop.f32.mrb[0].mxu0
      %393 = vmatprep.mubr.bf16.mxu0 0
      %394 = vmatmul.mubr.bf16.gmra.mrb[0].mxu0 %v345
      %v395 = vpop.f32.mrb[0].mxu0
      %v396 = vadd.f32 0.0, %v395
      %v397 = vpop.f32.mrb[0].mxu0
      %v398 = vpop.f32.mrb[0].mxu0
      %v399 = vadd.f32 0.0, %v398
      %v400 = vpop.f32.mrb[0].mxu0
      %401 = vdwg.mxu0
      %v402 = vld [vmem:[#allocation2] sm:$0xff]
      %v403 = vld [vmem:[#allocation2 + $0x8] sm:$0xff]
      %v404 = vld [vmem:[#allocation2 + $0x10] sm:$0xff]
      %v405 = vld [vmem:[#allocation2 + $0x18] sm:$0xff]
      %vm406 = vcmask 261120
      %v407 = vsel %vm406, %v388, -inf
      %408 = vmax.xlane.f32.xlu0 %v407
      %v409 = vpop.xlane.xlu0 %408
      %v410 = vsel %vm406, %v391, -inf
      %411 = vmax.xlane.f32.xlu0 %v410
      %v412 = vpop.xlane.xlu0 %411
      %v413 = vsel %vm406, %v396, -inf
      %414 = vmax.xlane.f32.xlu0 %v413
      %v415 = vpop.xlane.xlu0 %414
      %v416 = vsel %vm406, %v399, -inf
      %417 = vmax.xlane.f32.xlu0 %v416
      %v418 = vpop.xlane.xlu0 %417
      %v419 = vmax.f32 %v402, %v409
      %v420 = vmax.f32 %v403, %v412
      %v421 = vmax.f32 %v404, %v415
      %v422 = vmax.f32 %v405, %v418
      %v423 = vsub.f32 %v402, %v419
      %v424 = vsub.f32 %v403, %v420
      %v425 = vsub.f32 %v404, %v421
      %v426 = vsub.f32 %v405, %v422
      %v427 = vmul.f32 %v423, 1.442695
      %v428 = vpow.pop %v427
      %v429 = vmul.f32 %v424, 1.442695
      %v430 = vpow.pop %v429
      %v431 = vmul.f32 %v425, 1.442695
      %v432 = vpow.pop %v431
      %v433 = vmul.f32 %v426, 1.442695
      %v434 = vpow.pop %v433
      %436 = vset.pattern.permute.xlu0 0
      %437 = vperm.xlu0 %436, %v419
      %v438 = vpop.permute.xlu0 %437
      %441 = vset.pattern.permute.xlu0 0
      %442 = vperm.xlu0 %441, %v420
      %v443 = vpop.permute.xlu0 %442
      %446 = vset.pattern.permute.xlu0 0
      %447 = vperm.xlu0 %446, %v421
      %v448 = vpop.permute.xlu0 %447
      %451 = vset.pattern.permute.xlu0 0
      %452 = vperm.xlu0 %451, %v422
      %v453 = vpop.permute.xlu0 %452
      %v455 = vsub.f32 %v388, %v438
      %v456 = vsub.f32 %v391, %v443
      %v457 = vsub.f32 %v396, %v448
      %v458 = vsub.f32 %v399, %v453
      %v459 = vmul.f32 %v455, 1.442695
      %v460 = vpow.pop %v459
      %v461 = vmul.f32 %v456, 1.442695
      %v462 = vpow.pop %v461
      %v463 = vmul.f32 %v457, 1.442695
      %v464 = vpow.pop %v463
      %v465 = vmul.f32 %v458, 1.442695
      %v466 = vpow.pop %v465
      %v467 = vld [vmem:[#allocation3] sm:$0xff]
      %v468 = vld [vmem:[#allocation3 + $0x8] sm:$0xff]
      %v469 = vld [vmem:[#allocation3 + $0x10] sm:$0xff]
      %v470 = vld [vmem:[#allocation3 + $0x18] sm:$0xff]
      %v471 = vmul.f32 %v428, %v467
      %v472 = vmul.f32 %v430, %v468
      %v473 = vmul.f32 %v432, %v469
      %v474 = vmul.f32 %v434, %v470
      %v475 = vsel %vm406, %v460, 0.0
      %476 = vadd.xlane.f32.xlu0 %v475
      %v477 = vpop.xlane.xlu0 %476
      %v478 = vsel %vm406, %v462, 0.0
      %479 = vadd.xlane.f32.xlu0 %v478
      %v480 = vpop.xlane.xlu0 %479
      %v481 = vsel %vm406, %v464, 0.0
      %482 = vadd.xlane.f32.xlu0 %v481
      %v483 = vpop.xlane.xlu0 %482
      %v484 = vsel %vm406, %v466, 0.0
      %485 = vadd.xlane.f32.xlu0 %v484
      %v486 = vpop.xlane.xlu0 %485
      %v487 = vadd.f32 %v471, %v477
      %v488 = vadd.f32 %v472, %v480
      %v489 = vadd.f32 %v473, %v483
      %v490 = vadd.f32 %v474, %v486
      %vm491 = vcmask 7168
      %492 = vst.msk [vmem:[#allocation3] sm:$0xff] %vm491, %v487
      %493 = vst.msk [vmem:[#allocation3 + $0x8] sm:$0xff] %vm491, %v488
      %494 = vst.msk [vmem:[#allocation3 + $0x10] sm:$0xff] %vm491, %v489
      %495 = vst.msk [vmem:[#allocation3 + $0x18] sm:$0xff] %vm491, %v490
      %v496 = vld [vmem:[#allocation4] sm:$0xff]
      %v497 = vld [vmem:[#allocation4 + $0x8] sm:$0xff]
      %v498 = vld [vmem:[#allocation4 + $0x10] sm:$0xff]
      %v499 = vld [vmem:[#allocation4 + $0x18] sm:$0xff]
      %501 = vset.pattern.permute.xlu0 0
      %502 = vperm.xlu0 %501, %v428
      %v503 = vpop.permute.xlu0 %502
      %506 = vset.pattern.permute.xlu0 0
      %507 = vperm.xlu0 %506, %v430
      %v508 = vpop.permute.xlu0 %507
      %511 = vset.pattern.permute.xlu0 0
      %512 = vperm.xlu0 %511, %v432
      %v513 = vpop.permute.xlu0 %512
      %516 = vset.pattern.permute.xlu0 0
      %517 = vperm.xlu0 %516, %v434
      %v518 = vpop.permute.xlu0 %517
      %v520 = vmul.f32 %v503, %v496
      %v521 = vmul.f32 %v508, %v497
      %v522 = vmul.f32 %v513, %v498
      %v523 = vmul.f32 %v518, %v499
      %v524 = vpack.c.bf16 %v462, %v460
      %v525 = vpack.c.bf16 %v466, %v464
      %v530 = vunpack.c.l.b16 %v326
      %v531 = vunpack.c.l.b16 %v327
      %v532 = vunpack.c.l.b16 %v328
      %v533 = vunpack.c.l.b16 %v329
      %v534 = vpack.c.b16 %v531, %v530
      %v535 = vpack.c.b16 %v533, %v532
      %v539 = vsel %vm406, %v524, 0
      %v542 = vsel %vm406, %v525, 0
      %544 = vmatprep.subr.bf16.mxu0 0
      %545 = vmatpush1.bf16.msra.mxu0 %v534
      %546 = vmatprep.subr.bf16.mxu0 0
      %547 = vmatpush1.bf16.msra.mxu0 %v535
      %548 = vmatprep.subr.bf16.mxu0 0
      %549 = vmatpush1.bf16.msra.mxu0 0
      %550 = vmatprep.subr.bf16.mxu0 0
      %551 = vmatpush1.bf16.msra.mxu0 0
      %552 = vmatprep.subr.bf16.mxu0 0
      %553 = vmatpush1.bf16.msra.mxu0 0
      %554 = vmatprep.subr.bf16.mxu0 0
      %555 = vmatpush1.bf16.msra.mxu0 0
      %556 = vmatprep.subr.bf16.mxu0 0
      %557 = vmatpush1.bf16.msra.mxu0 0
      %558 = vmatprep.subr.bf16.mxu0 0
      %559 = vmatpush1.bf16.msra.mxu0 0
      %560 = vmatprep.subr.bf16.mxu0 0
      %561 = vmatpush1.bf16.msra.mxu0 0
      %562 = vmatprep.subr.bf16.mxu0 0
      %563 = vmatpush1.bf16.msra.mxu0 0
      %564 = vmatprep.subr.bf16.mxu0 0
      %565 = vmatpush1.bf16.msra.mxu0 0
      %566 = vmatprep.subr.bf16.mxu0 0
      %567 = vmatpush1.bf16.msra.mxu0 0
      %568 = vmatprep.subr.bf16.mxu0 0
      %569 = vmatpush1.bf16.msra.mxu0 0
      %570 = vmatprep.subr.bf16.mxu0 0
      %571 = vmatpush1.bf16.msra.mxu0 0
      %572 = vmatprep.subr.bf16.mxu0 0
      %573 = vmatpush1.bf16.msra.mxu0 0
      %574 = vmatprep.subr.bf16.mxu0 0
      %575 = vmatpush1.bf16.msra.mxu0 0
      %576 = vmatprep.mubr.bf16.mxu0 0
      %577 = vmatmul.mubr.bf16.gmra.mrb[0].mxu0 %v539
      %v578 = vpop.f32.mrb[0].mxu0
      %v579 = vadd.f32 0.0, %v578
      %v580 = vpop.f32.mrb[0].mxu0
      %v581 = vpop.f32.mrb[0].mxu0
      %v582 = vadd.f32 0.0, %v581
      %v583 = vpop.f32.mrb[0].mxu0
      %584 = vmatprep.mubr.bf16.mxu0 0
      %585 = vmatmul.mubr.bf16.gmra.mrb[0].mxu0 %v542
      %v586 = vpop.f32.mrb[0].mxu0
      %v587 = vadd.f32 0.0, %v586
      %v588 = vpop.f32.mrb[0].mxu0
      %v589 = vpop.f32.mrb[0].mxu0
      %v590 = vadd.f32 0.0, %v589
      %v591 = vpop.f32.mrb[0].mxu0
      %592 = vdwg.mxu0
      %v593 = vadd.f32 %v520, %v579
      %v594 = vadd.f32 %v521, %v582
      %v595 = vadd.f32 %v522, %v587
      %v596 = vadd.f32 %v523, %v590
      %597 = vst.msk [vmem:[#allocation4] sm:$0xff] %vm340, %v593
      %598 = vst.msk [vmem:[#allocation4 + $0x8] sm:$0xff] %vm340, %v594
      %599 = vst.msk [vmem:[#allocation4 + $0x10] sm:$0xff] %vm340, %v595
      %600 = vst.msk [vmem:[#allocation4 + $0x18] sm:$0xff] %vm340, %v596
      %601 = vst.msk [vmem:[#allocation2] sm:$0xff] %vm491, %v419
      %602 = vst.msk [vmem:[#allocation2 + $0x8] sm:$0xff] %vm491, %v420
      %603 = vst.msk [vmem:[#allocation2 + $0x10] sm:$0xff] %vm491, %v421
      %604 = vst.msk [vmem:[#allocation2 + $0x18] sm:$0xff] %vm491, %v422
      // Predicated region
      $region37: #{visual_decoder_forward.14} parent=31 // pred_check
        %p605 = pneg %p290
      $region38: #{visual_decoder_forward.14} parent=31 // pred_check_branch
        %607 = sbr.rel (%p605) target = $region40
      $region39: #{visual_decoder_forward.14} parent=31 // pred_region
        %v608 = vld [vmem:[#allocation3] sm:$0xff]
        %v609 = vld [vmem:[#allocation3 + $0x8] sm:$0xff]
        %v610 = vld [vmem:[#allocation3 + $0x10] sm:$0xff]
        %v611 = vld [vmem:[#allocation3 + $0x18] sm:$0xff]
        %v612 = vrcp.pop %v608
        %v613 = vrcp.pop %v609
        %v614 = vrcp.pop %v610
        %v615 = vrcp.pop %v611
        %v616 = vld [vmem:[#allocation4] sm:$0xff]
        %v617 = vld [vmem:[#allocation4 + $0x8] sm:$0xff]
        %v618 = vld [vmem:[#allocation4 + $0x10] sm:$0xff]
        %v619 = vld [vmem:[#allocation4 + $0x18] sm:$0xff]
        %621 = vset.pattern.permute.xlu0 0
        %622 = vperm.xlu0 %621, %v612
        %v623 = vpop.permute.xlu0 %622
        %626 = vset.pattern.permute.xlu0 0
        %627 = vperm.xlu0 %626, %v613
        %v628 = vpop.permute.xlu0 %627
        %631 = vset.pattern.permute.xlu0 0
        %632 = vperm.xlu0 %631, %v614
        %v633 = vpop.permute.xlu0 %632
        %636 = vset.pattern.permute.xlu0 0
        %637 = vperm.xlu0 %636, %v615
        %v638 = vpop.permute.xlu0 %637
        %v640 = vmul.f32 %v616, %v623
        %v641 = vmul.f32 %v617, %v628
        %v642 = vmul.f32 %v618, %v633
        %v643 = vmul.f32 %v619, %v638
        %v644 = vpack.c.bf16 %v641, %v640
        %v645 = vpack.c.bf16 %v643, %v642
        %v648 = vunpack.c.l.b16 %v644
        %v649 = vunpack.c.h.b16 %v644
        %v650 = vunpack.c.l.b16 %v645
        %v651 = vunpack.c.h.b16 %v645
        %v652 = vpack.c.b16 %v648, %v648
        %v653 = vpack.c.b16 %v649, %v649
        %v654 = vpack.c.b16 %v650, %v650
        %v655 = vpack.c.b16 %v651, %v651
        %vm660 = vcmask 519168
        %661 = vst.msk [vmem:[%s287] sm:$0xf] %vm660, %v652
        %662 = vst.msk [vmem:[%s287 + $0x4] sm:$0xf] %vm660, %v653
        %663 = vst.msk [vmem:[%s287 + $0x8] sm:$0xf] %vm660, %v654
        %664 = vst.msk [vmem:[%s287 + $0xc] sm:$0xf] %vm660, %v655
      $region40: #{visual_decoder_forward.14} parent=31 // pred_fallthru
        _
      %s665 = smul.u32 4, %s20
      %p666 = scmp.lt.s32.totalorder %s19, 3
      %s667 = scalar_select %p666, %s19, 3
      %p668 = scmp.lt.s32.totalorder %s665, 3
      %s669 = scalar_select %p668, %s665, 3
      %s670 = smul.addr %s667, 4
      %s671 = sadd.s32 %s669, %s670
      %s672 = smul.addr %s671, 4
      %s673 = scalar_lea.vmem %s3, %s672
      // Predicated region
      $region41: #{visual_decoder_forward.14} parent=31 // pred_check
        %p674 = pneg %p137
      $region42: #{visual_decoder_forward.14} parent=31 // pred_check_branch
        %676 = sbr.rel (%p674) target = $region44
      $region43: #{visual_decoder_forward.14} parent=31 // pred_region
        %s677 = smul.u32 4, %s20
      $region44: #{visual_decoder_forward.14} parent=31 // pred_fallthru
        _
    $region32: #{visual_decoder_forward.14} parent=5 // pred_fallthru
      _
    %p678 = scmp.le.s32.totalorder 2, %s9
    // Predicated region
    $region45: #{visual_decoder_forward.14} parent=5 // pred_check
      %p679 = pneg %p678
    $region46: #{visual_decoder_forward.14} parent=5 // pred_check_branch
      %681 = sbr.rel (%p679) target = $region48
    $region47: #{visual_decoder_forward.14} parent=5 // pred_region
      %s682 = ssub.s32 %s9, 2
      // Predicated region
      $region49: #{visual_decoder_forward.14} parent=47 // pred_check
        %p683 = pneg %p143
      $region50: #{visual_decoder_forward.14} parent=47 // pred_check_branch
        %685 = sbr.rel (%p683) target = $region52
      $region51: #{visual_decoder_forward.14} parent=47 // pred_region
        %s686 = smul.u32 4, %s23
        %p687 = scmp.lt.s32.totalorder %s22, 3
        %s688 = scalar_select %p687, %s22, 3
        %p689 = scmp.lt.s32.totalorder %s686, 3
        %s690 = scalar_select %p689, %s686, 3
        %s691 = smul.addr %s688, 4
        %s692 = sadd.s32 %s690, %s691
        %s693 = smul.addr %s692, 4
        %s694 = scalar_lea.vmem %s3, %s693
      $region52: #{visual_decoder_forward.14} parent=47 // pred_fallthru
        _
    $region48: #{visual_decoder_forward.14} parent=5 // pred_fallthru
      _
  $region6: #{visual_decoder_forward.14} parent=0 // loop_footer
    %s13 = sadd.s32 1, %s9
  $region7: #{visual_decoder_forward.14} parent=0 // loop_footer_branch
    %8 = sbr.rel target = $region3
  $region8: #{visual_decoder_forward.14} parent=0 // loop_exit
    _

// kernel: visual_decoder_forward.15
$region0: #{visual_decoder_forward.15}
  #allocation0 [shape = 'u32[]', space=smem, size = 0x4, offset = 0x4, fixed_abs, tag = 'smem constant byte address 0x4 - core index']
  #allocation1 [shape = 'u32[144,128]{1,0:T(1,128)}', space=vmem, size = 0x12000, scoped, tag = 'internal scratch']
  #allocation2 [shape = 'f32[32,128]{1,0:T(8,128)}', space=vmem, size = 0x4000, scoped, tag = 'scratch operand']
  %s0 = inlined_call_operand.vmem [shape: bf16[64,128], index: 0, kind: input, shape index: {}]
  %s1 = inlined_call_operand.vmem [shape: bf16[128,128], index: 1, kind: input, shape index: {}]
  %s2 = inlined_call_operand.vmem [shape: bf16[1,128], index: 2, kind: input, shape index: {}]
  %s3 = inlined_call_operand.vmem [shape: bf16[1,128], index: 3, kind: input, shape index: {}]
  %s4 = inlined_call_operand.vmem [shape: bf16[64,128], index: 4, kind: input, shape index: {}, may-alias: {4,5}]
  %s5 = inlined_call_operand.vmem [shape: bf16[64,128], index: 5, kind: output, shape index: {}, may-alias: {4,5}]
  %s6 = sld [smem:[#allocation0]]
  $region61: #{visual_decoder_forward.15} parent=0
    _
  %s8 = ssub.s32 1, %s6
  %s9 = scalar_select 0, %s8, %s6
  loop: start=0, step=1, limit=4
  $region2: #{visual_decoder_forward.15} parent=0 // loop_pre_header
    _
  $region3: #{visual_decoder_forward.15} parent=0 // loop_header
    %s11 = sphi 0, %s15
    %p12 = scmp.ge.s32.totalorder %s11, 4
    %s18 = sphi 0, %s30
    %s19 = sphi 0, %s26
    %s20 = sphi 0, %s18
    %s21 = sphi 0, %s19
    %s22 = sphi 0, %s20
    %s23 = sphi 0, %s21
    %s35 = sphi 0, %s37
    %s38 = sphi 0, %s35
    %s39 = sphi 0, %s38
    %s55 = sphi 0, %s39
    %s61 = sphi 0, %s63
    %s64 = sphi 0, %s61
    %s65 = sphi 0, %s64
    %s81 = sphi 0, %s65
    %s85 = sphi 0, %s85
    %s87 = sphi 0, %s85
    %s88 = sphi 0, %s87
    %s102 = sphi 0, %s88
    %s106 = sphi 0, %s106
    %s108 = sphi 0, %s106
    %s109 = sphi 0, %s108
    %s123 = sphi 0, %s109
    %s129 = sphi 0, %s131
    %s132 = sphi 0, %s129
    %s133 = sphi 0, %s132
    %s149 = sphi 0, %s133
    %s155 = sphi 0, %s157
    %s158 = sphi 0, %s155
    %s159 = sphi 0, %s158
    %s175 = sphi 0, %s159
  $region4: #{visual_decoder_forward.15} parent=0 // loop_header_branch
    %14 = sbr.rel (%p12) target = $region8
  $region5: #{visual_decoder_forward.15} parent=0 // loop_body
    %s16 = ssub.s32 %s11, 1
    %s17 = ssub.s32 %s11, 2
    %s24 = sadd.s32 1, %s19
    %p25 = scmp.ge.s32.totalorder %s24, 1
    %s26 = scalar_select %p25, 0, %s24
    %s27 = sadd.s32 1, %s18
    %s28 = scalar_select %p25, %s27, %s18
    %p29 = scmp.ge.s32.totalorder %s28, 2
    %s30 = scalar_select %p29, 0, %s28
    %s31 = ssub.s32 %s18, %s30
    %s32 = ssub.s32 %s19, %s26
    %s33 = sor.u32 %s31, %s32
    %p34 = scmp.eq.s32.totalorder %s33, 0
    %s36 = sadd.s32 %s35, 1
    %s37 = scalar_select %p34, %s35, %s36
    %p40 = pneg %p34
    %p41 = scmp.eq.s32.totalorder %s11, 1
    %p42 = por %p40, %p41
    %p43 = scmp.ne.s32.totalorder %s35, %s38
    %p44 = scmp.eq.s32.totalorder %s11, 0
    %p45 = por %p43, %p44
    %p46 = scmp.ne.s32.totalorder %s35, %s38
    %p47 = scmp.eq.s32.totalorder %s16, 1
    %p48 = por %p46, %p47
    %p49 = scmp.ne.s32.totalorder %s38, %s39
    %p50 = scmp.eq.s32.totalorder %s16, 0
    %p51 = por %p49, %p50
    %p52 = scmp.ne.s32.totalorder %s38, %s39
    %p53 = scmp.eq.s32.totalorder %s17, 1
    %p54 = por %p52, %p53
    %p56 = scmp.ne.s32.totalorder %s39, %s55
    %p57 = scmp.eq.s32.totalorder %s17, 0
    %p58 = por %p56, %p57
    %s59 = ssub.s32 %s19, %s26
    %p60 = scmp.eq.s32.totalorder %s59, 0
    %s62 = sadd.s32 %s61, 1
    %s63 = scalar_select %p60, %s61, %s62
    %p66 = pneg %p60
    %p67 = scmp.eq.s32.totalorder %s11, 1
    %p68 = por %p66, %p67
    %p69 = scmp.ne.s32.totalorder %s61, %s64
    %p70 = scmp.eq.s32.totalorder %s11, 0
    %p71 = por %p69, %p70
    %p72 = scmp.ne.s32.totalorder %s61, %s64
    %p73 = scmp.eq.s32.totalorder %s16, 1
    %p74 = por %p72, %p73
    %p75 = scmp.ne.s32.totalorder %s64, %s65
    %p76 = scmp.eq.s32.totalorder %s16, 0
    %p77 = por %p75, %p76
    %p78 = scmp.ne.s32.totalorder %s64, %s65
    %p79 = scmp.eq.s32.totalorder %s17, 1
    %p80 = por %p78, %p79
    %p82 = scmp.ne.s32.totalorder %s65, %s81
    %p83 = scmp.eq.s32.totalorder %s17, 0
    %p84 = por %p82, %p83
    %s86 = sadd.s32 %s85, 1
    %p89 = scmp.eq.s32.totalorder %s11, 1
    %p90 = scmp.ne.s32.totalorder %s85, %s87
    %p91 = scmp.eq.s32.totalorder %s11, 0
    %p92 = por %p90, %p91
    %p93 = scmp.ne.s32.totalorder %s85, %s87
    %p94 = scmp.eq.s32.totalorder %s16, 1
    %p95 = por %p93, %p94
    %p96 = scmp.ne.s32.totalorder %s87, %s88
    %p97 = scmp.eq.s32.totalorder %s16, 0
    %p98 = por %p96, %p97
    %p99 = scmp.ne.s32.totalorder %s87, %s88
    %p100 = scmp.eq.s32.totalorder %s17, 1
    %p101 = por %p99, %p100
    %p103 = scmp.ne.s32.totalorder %s88, %s102
    %p104 = scmp.eq.s32.totalorder %s17, 0
    %p105 = por %p103, %p104
    %s107 = sadd.s32 %s106, 1
    %p110 = scmp.eq.s32.totalorder %s11, 1
    %p111 = scmp.ne.s32.totalorder %s106, %s108
    %p112 = scmp.eq.s32.totalorder %s11, 0
    %p113 = por %p111, %p112
    %p114 = scmp.ne.s32.totalorder %s106, %s108
    %p115 = scmp.eq.s32.totalorder %s16, 1
    %p116 = por %p114, %p115
    %p117 = scmp.ne.s32.totalorder %s108, %s109
    %p118 = scmp.eq.s32.totalorder %s16, 0
    %p119 = por %p117, %p118
    %p120 = scmp.ne.s32.totalorder %s108, %s109
    %p121 = scmp.eq.s32.totalorder %s17, 1
    %p122 = por %p120, %p121
    %p124 = scmp.ne.s32.totalorder %s109, %s123
    %p125 = scmp.eq.s32.totalorder %s17, 0
    %p126 = por %p124, %p125
    %s127 = ssub.s32 %s18, %s30
    %p128 = scmp.eq.s32.totalorder %s127, 0
    %s130 = sadd.s32 %s129, 1
    %s131 = scalar_select %p128, %s129, %s130
    %p134 = pneg %p128
    %p135 = scmp.eq.s32.totalorder %s11, 1
    %p136 = por %p134, %p135
    %p137 = scmp.ne.s32.totalorder %s129, %s132
    %p138 = scmp.eq.s32.totalorder %s11, 0
    %p139 = por %p137, %p138
    %p140 = scmp.ne.s32.totalorder %s129, %s132
    %p141 = scmp.eq.s32.totalorder %s16, 1
    %p142 = por %p140, %p141
    %p143 = scmp.ne.s32.totalorder %s132, %s133
    %p144 = scmp.eq.s32.totalorder %s16, 0
    %p145 = por %p143, %p144
    %p146 = scmp.ne.s32.totalorder %s132, %s133
    %p147 = scmp.eq.s32.totalorder %s17, 1
    %p148 = por %p146, %p147
    %p150 = scmp.ne.s32.totalorder %s133, %s149
    %p151 = scmp.eq.s32.totalorder %s17, 0
    %p152 = por %p150, %p151
    %s153 = ssub.s32 %s18, %s30
    %p154 = scmp.eq.s32.totalorder %s153, 0
    %s156 = sadd.s32 %s155, 1
    %s157 = scalar_select %p154, %s155, %s156
    %p160 = pneg %p154
    %p161 = scmp.eq.s32.totalorder %s11, 1
    %p162 = por %p160, %p161
    %p163 = scmp.ne.s32.totalorder %s155, %s158
    %p164 = scmp.eq.s32.totalorder %s11, 0
    %p165 = por %p163, %p164
    %p166 = scmp.ne.s32.totalorder %s155, %s158
    %p167 = scmp.eq.s32.totalorder %s16, 1
    %p168 = por %p166, %p167
    %p169 = scmp.ne.s32.totalorder %s158, %s159
    %p170 = scmp.eq.s32.totalorder %s16, 0
    %p171 = por %p169, %p170
    %p172 = scmp.ne.s32.totalorder %s158, %s159
    %p173 = scmp.eq.s32.totalorder %s17, 1
    %p174 = por %p172, %p173
    %p176 = scmp.ne.s32.totalorder %s159, %s175
    %p177 = scmp.eq.s32.totalorder %s17, 0
    %p178 = por %p176, %p177
    %p179 = scmp.le.s32.totalorder 1, %s11
    %p180 = scmp.lt.s32.totalorder %s11, 3
    %p181 = pnand %p179, %p180
    %p182 = pneg %p181
    // Predicated region
    $region9: #{visual_decoder_forward.15} parent=5 // pred_check
      _
    $region10: #{visual_decoder_forward.15} parent=5 // pred_check_branch
      %184 = sbr.rel (%p181) target = $region12
    $region11: #{visual_decoder_forward.15} parent=5 // pred_region
      %s185 = ssub.s32 %s11, 1
      // Predicated region
      $region13: #{visual_decoder_forward.15} parent=11 // pred_check
        %p186 = pneg %p77
      $region14: #{visual_decoder_forward.15} parent=11 // pred_check_branch
        %188 = sbr.rel (%p186) target = $region16
      $region15: #{visual_decoder_forward.15} parent=11 // pred_region
        %s189 = smul.u32 16, %s21
        %p190 = scmp.lt.s32.totalorder %s189, 15
        %s191 = scalar_select %p190, %s189, 15
        %s192 = smul.addr %s191, 4
        %s193 = scalar_lea.vmem %s1, %s192
        %s194 = smul.u32 16, %s21
      $region16: #{visual_decoder_forward.15} parent=11 // pred_fallthru
        _
      // Predicated region
      $region17: #{visual_decoder_forward.15} parent=11 // pred_check
        %p195 = pneg %p98
      $region18: #{visual_decoder_forward.15} parent=11 // pred_check_branch
        %197 = sbr.rel (%p195) target = $region20
      $region19: #{visual_decoder_forward.15} parent=11 // pred_region
        _
      $region20: #{visual_decoder_forward.15} parent=11 // pred_fallthru
        _
      // Predicated region
      $region21: #{visual_decoder_forward.15} parent=11 // pred_check
        %p198 = pneg %p119
      $region22: #{visual_decoder_forward.15} parent=11 // pred_check_branch
        %200 = sbr.rel (%p198) target = $region24
      $region23: #{visual_decoder_forward.15} parent=11 // pred_region
        _
      $region24: #{visual_decoder_forward.15} parent=11 // pred_fallthru
        _
    $region12: #{visual_decoder_forward.15} parent=5 // pred_fallthru
      _
    %p201 = scmp.lt.s32.totalorder %s11, 2
    // Predicated region
    $region25: #{visual_decoder_forward.15} parent=5 // pred_check
      %p202 = pneg %p201
    $region26: #{visual_decoder_forward.15} parent=5 // pred_check_branch
      %204 = sbr.rel (%p202) target = $region28
    $region27: #{visual_decoder_forward.15} parent=5 // pred_region
      // Predicated region
      $region29: #{visual_decoder_forward.15} parent=27 // pred_check
        %p205 = pneg %p45
      $region30: #{visual_decoder_forward.15} parent=27 // pred_check_branch
        %207 = sbr.rel (%p205) target = $region32
      $region31: #{visual_decoder_forward.15} parent=27 // pred_region
        %s208 = smul.u32 4, %s18
        %p209 = scmp.lt.s32.totalorder %s208, 7
        %s210 = scalar_select %p209, %s208, 7
        %p211 = scmp.lt.s32.totalorder %s19, 0
        %s212 = scalar_select %p211, %s19, 0
        %s213 = sadd.s32 %s212, %s210
        %s214 = smul.addr %s213, 4
        %s215 = scalar_lea.vmem %s0, %s214
        %s216 = smul.u32 4, %s18
      $region32: #{visual_decoder_forward.15} parent=27 // pred_fallthru
        _
      // Predicated region
      $region33: #{visual_decoder_forward.15} parent=27 // pred_check
        %p217 = pneg %p139
      $region34: #{visual_decoder_forward.15} parent=27 // pred_check_branch
        %219 = sbr.rel (%p217) target = $region36
      $region35: #{visual_decoder_forward.15} parent=27 // pred_region
        %s220 = smul.u32 4, %s18
        %p221 = scmp.lt.s32.totalorder %s220, 7
        %s222 = scalar_select %p221, %s220, 7
        %s223 = smul.addr %s222, 4
        %s224 = scalar_lea.vmem %s4, %s223
        %s225 = smul.u32 4, %s18
      $region36: #{visual_decoder_forward.15} parent=27 // pred_fallthru
        _
    $region28: #{visual_decoder_forward.15} parent=5 // pred_fallthru
      _
    %p226 = scmp.le.s32.totalorder 1, %s11
    %p227 = scmp.lt.s32.totalorder %s11, 3
    %p228 = pnand %p226, %p227
    %p229 = pneg %p228
    // Predicated region
    $region37: #{visual_decoder_forward.15} parent=5 // pred_check
      _
    $region38: #{visual_decoder_forward.15} parent=5 // pred_check_branch
      %231 = sbr.rel (%p228) target = $region40
    $region39: #{visual_decoder_forward.15} parent=5 // pred_region
      %s232 = ssub.s32 %s11, 1
      %s233 = smul.u32 4, %s20
      %p234 = scmp.lt.s32.totalorder %s233, 7
      %s235 = scalar_select %p234, %s233, 7
      %p236 = scmp.lt.s32.totalorder %s21, 0
      %s237 = scalar_select %p236, %s21, 0
      %s238 = sadd.s32 %s237, %s235
      %s239 = smul.addr %s238, 4
      %s240 = scalar_lea.vmem %s0, %s239
      %p241 = pneg %p51
      %p242 = pneg %p48
      %s243 = smul.u32 16, %s21
      %p244 = scmp.lt.s32.totalorder %s243, 15
      %s245 = scalar_select %p244, %s243, 15
      %s246 = smul.addr %s245, 4
      %s247 = scalar_lea.vmem %s1, %s246
      %p248 = pneg %p77
      %p249 = pneg %p74
      %p250 = pneg %p98
      %p251 = pneg %p95
      %p252 = pneg %p119
      %p253 = pneg %p116
      %s254 = smul.u32 4, %s20
      %p255 = scmp.lt.s32.totalorder %s254, 7
      %s256 = scalar_select %p255, %s254, 7
      %s257 = smul.addr %s256, 4
      %s258 = scalar_lea.vmem %s4, %s257
      %p259 = pneg %p145
      %p260 = pneg %p142
      %p261 = pneg %p171
      %p262 = pneg %p168
      %s263 = smul.u32 4, %s20
      %p264 = scmp.lt.s32.totalorder %s263, 7
      %s265 = scalar_select %p264, %s263, 7
      %s266 = smul.addr %s265, 4
      %s267 = scalar_lea.vmem %s5, %s266
      %s268 = smul.u32 4, %s20
      %p269 = scmp.lt.s32.totalorder %s268, 7
      %s270 = scalar_select %p269, %s268, 7
      %p271 = scmp.lt.s32.totalorder %s21, 0
      %s272 = scalar_select %p271, %s21, 0
      %s273 = sadd.s32 %s272, %s270
      %s274 = smul.addr %s273, 4
      %s275 = scalar_lea.vmem %s0, %s274
      %s276 = smul.u32 4, %s20
      %s277 = smul.u32 16, %s21
      %p278 = scmp.lt.s32.totalorder %s277, 15
      %s279 = scalar_select %p278, %s277, 15
      %s280 = smul.addr %s279, 4
      %s281 = scalar_lea.vmem %s1, %s280
      %s282 = smul.u32 16, %s21
      %s283 = smul.u32 4, %s20
      %p284 = scmp.lt.s32.totalorder %s283, 7
      %s285 = scalar_select %p284, %s283, 7
      %s286 = smul.addr %s285, 4
      %s287 = scalar_lea.vmem %s4, %s286
      %s288 = smul.u32 4, %s20
      %s289 = smul.u32 4, %s20
      %p290 = scmp.lt.s32.totalorder %s289, 7
      %s291 = scalar_select %p290, %s289, 7
      %s292 = smul.addr %s291, 4
      %s293 = scalar_lea.vmem %s5, %s292
      %s294 = smul.u32 4, %s20
      %p296 = scmp.eq.s32.totalorder %s21, 0
      // Predicated region
      $region41: #{visual_decoder_forward.15} parent=39 // pred_check
        %p297 = pneg %p296
      $region42: #{visual_decoder_forward.15} parent=39 // pred_check_branch
        %299 = sbr.rel (%p297) target = $region44
      $region43: #{visual_decoder_forward.15} parent=39 // pred_region
        %300 = vst [vmem:[#allocation2] sm:$0xff] 0.0
        %301 = vst [vmem:[#allocation2 + $0x8] sm:$0xff] 0.0
        %302 = vst [vmem:[#allocation2 + $0x10] sm:$0xff] 0.0
        %303 = vst [vmem:[#allocation2 + $0x18] sm:$0xff] 0.0
      $region44: #{visual_decoder_forward.15} parent=39 // pred_fallthru
        _
      %v304 = vld [vmem:[#allocation2] sm:$0xff]
      %v305 = vld [vmem:[#allocation2 + $0x8] sm:$0xff]
      %v306 = vld [vmem:[#allocation2 + $0x10] sm:$0xff]
      %v307 = vld [vmem:[#allocation2 + $0x18] sm:$0xff]
      %v308 = vld [vmem:[%s275] sm:$0xf]
      %v309 = vld [vmem:[%s275 + $0x4] sm:$0xf]
      %v310 = vld [vmem:[%s275 + $0x8] sm:$0xf]
      %v311 = vld [vmem:[%s275 + $0xc] sm:$0xf]
      %v312 = vld [vmem:[%s281] sm:$0xf]
      %v313 = vld [vmem:[%s281 + $0x4] sm:$0xf]
      %v314 = vld [vmem:[%s281 + $0x8] sm:$0xf]
      %v315 = vld [vmem:[%s281 + $0xc] sm:$0xf]
      %v316 = vld [vmem:[%s281 + $0x10] sm:$0xf]
      %v317 = vld [vmem:[%s281 + $0x14] sm:$0xf]
      %v318 = vld [vmem:[%s281 + $0x18] sm:$0xf]
      %v319 = vld [vmem:[%s281 + $0x1c] sm:$0xf]
      %v320 = vld [vmem:[%s281 + $0x20] sm:$0xf]
      %v321 = vld [vmem:[%s281 + $0x24] sm:$0xf]
      %v322 = vld [vmem:[%s281 + $0x28] sm:$0xf]
      %v323 = vld [vmem:[%s281 + $0x2c] sm:$0xf]
      %v324 = vld [vmem:[%s281 + $0x30] sm:$0xf]
      %v325 = vld [vmem:[%s281 + $0x34] sm:$0xf]
      %v326 = vld [vmem:[%s281 + $0x38] sm:$0xf]
      %v327 = vld [vmem:[%s281 + $0x3c] sm:$0xf]
      %v332 = vunpack.c.l.b16 %v308
      %v333 = vunpack.c.l.b16 %v309
      %v334 = vunpack.c.l.b16 %v310
      %v335 = vunpack.c.l.b16 %v311
      %v336 = vpack.c.b16 %v333, %v332
      %v337 = vpack.c.b16 %v335, %v334
      %v356 = vunpack.c.l.b16 %v312
      %v357 = vunpack.c.l.b16 %v313
      %v358 = vunpack.c.l.b16 %v314
      %v359 = vunpack.c.l.b16 %v315
      %v360 = vunpack.c.l.b16 %v316
      %v361 = vunpack.c.l.b16 %v317
      %v362 = vunpack.c.l.b16 %v318
      %v363 = vunpack.c.l.b16 %v319
      %v364 = vunpack.c.l.b16 %v320
      %v365 = vunpack.c.l.b16 %v321
      %v366 = vunpack.c.l.b16 %v322
      %v367 = vunpack.c.l.b16 %v323
      %v368 = vunpack.c.l.b16 %v324
      %v369 = vunpack.c.l.b16 %v325
      %v370 = vunpack.c.l.b16 %v326
      %v371 = vunpack.c.l.b16 %v327
      %v372 = vpack.c.b16 %v357, %v356
      %v373 = vpack.c.b16 %v359, %v358
      %v374 = vpack.c.b16 %v361, %v360
      %v375 = vpack.c.b16 %v363, %v362
      %v376 = vpack.c.b16 %v365, %v364
      %v377 = vpack.c.b16 %v367, %v366
      %v378 = vpack.c.b16 %v369, %v368
      %v379 = vpack.c.b16 %v371, %v370
      %388 = vmatprep.subr.bf16.mxu0 0
      %389 = vmatpush1.bf16.msra.mxu0 %v372
      %390 = vmatprep.subr.bf16.mxu0 0
      %391 = vmatpush1.bf16.msra.mxu0 %v373
      %392 = vmatprep.subr.bf16.mxu0 0
      %393 = vmatpush1.bf16.msra.mxu0 %v374
      %394 = vmatprep.subr.bf16.mxu0 0
      %395 = vmatpush1.bf16.msra.mxu0 %v375
      %396 = vmatprep.subr.bf16.mxu0 0
      %397 = vmatpush1.bf16.msra.mxu0 %v376
      %398 = vmatprep.subr.bf16.mxu0 0
      %399 = vmatpush1.bf16.msra.mxu0 %v377
      %400 = vmatprep.subr.bf16.mxu0 0
      %401 = vmatpush1.bf16.msra.mxu0 %v378
      %402 = vmatprep.subr.bf16.mxu0 0
      %403 = vmatpush1.bf16.msra.mxu0 %v379
      %404 = vmatprep.subr.bf16.mxu0 0
      %405 = vmatpush1.bf16.msra.mxu0 0
      %406 = vmatprep.subr.bf16.mxu0 0
      %407 = vmatpush1.bf16.msra.mxu0 0
      %408 = vmatprep.subr.bf16.mxu0 0
      %409 = vmatpush1.bf16.msra.mxu0 0
      %410 = vmatprep.subr.bf16.mxu0 0
      %411 = vmatpush1.bf16.msra.mxu0 0
      %412 = vmatprep.subr.bf16.mxu0 0
      %413 = vmatpush1.bf16.msra.mxu0 0
      %414 = vmatprep.subr.bf16.mxu0 0
      %415 = vmatpush1.bf16.msra.mxu0 0
      %416 = vmatprep.subr.bf16.mxu0 0
      %417 = vmatpush1.bf16.msra.mxu0 0
      %418 = vmatprep.subr.bf16.mxu0 0
      %419 = vmatpush1.bf16.msra.mxu0 0
      %420 = vmatprep.mubr.bf16.mxu0 0
      %421 = vmatmul.mubr.bf16.gmra.mrb[0].mxu0 %v336
      %v422 = vpop.f32.mrb[0].mxu0
      %v423 = vadd.f32 0.0, %v422
      %v424 = vpop.f32.mrb[0].mxu0
      %v425 = vpop.f32.mrb[0].mxu0
      %v426 = vadd.f32 0.0, %v425
      %v427 = vpop.f32.mrb[0].mxu0
      %428 = vmatprep.mubr.bf16.mxu0 0
      %429 = vmatmul.mubr.bf16.gmra.mrb[0].mxu0 %v337
      %v430 = vpop.f32.mrb[0].mxu0
      %v431 = vadd.f32 0.0, %v430
      %v432 = vpop.f32.mrb[0].mxu0
      %v433 = vpop.f32.mrb[0].mxu0
      %v434 = vadd.f32 0.0, %v433
      %v435 = vpop.f32.mrb[0].mxu0
      %436 = vdwg.mxu0
      %v437 = vadd.f32 %v304, %v423
      %v438 = vadd.f32 %v305, %v426
      %v439 = vadd.f32 %v306, %v431
      %v440 = vadd.f32 %v307, %v434
      %441 = vst [vmem:[#allocation2] sm:$0xff] %v437
      %442 = vst [vmem:[#allocation2 + $0x8] sm:$0xff] %v438
      %443 = vst [vmem:[#allocation2 + $0x10] sm:$0xff] %v439
      %444 = vst [vmem:[#allocation2 + $0x18] sm:$0xff] %v440
      // Predicated region
      $region45: #{visual_decoder_forward.15} parent=39 // pred_check
        %p445 = pneg %p296
      $region46: #{visual_decoder_forward.15} parent=39 // pred_check_branch
        %447 = sbr.rel (%p445) target = $region48
      $region47: #{visual_decoder_forward.15} parent=39 // pred_region
        %v448 = vld [vmem:[#allocation2] sm:$0xff]
        %v449 = vld [vmem:[#allocation2 + $0x8] sm:$0xff]
        %v450 = vld [vmem:[#allocation2 + $0x10] sm:$0xff]
        %v451 = vld [vmem:[#allocation2 + $0x18] sm:$0xff]
        %v452 = vld [vmem:[%s2] sm:$0x1]
        %v453 = vunpack.c.l.bf16 %v452
        %v454 = vlaneseq
        %v455 = vshrl.u32 %v454, 7
        %v456 = vsub.s32 0, %v455
        %v457 = vrot.slane %v453, %v456
        %v458 = vadd.f32 %v448, %v457
        %v459 = vadd.f32 %v449, %v457
        %v460 = vadd.f32 %v450, %v457
        %v461 = vadd.f32 %v451, %v457
        %v462 = vld [vmem:[%s287] sm:$0xf]
        %v463 = vld [vmem:[%s287 + $0x4] sm:$0xf]
        %v464 = vld [vmem:[%s287 + $0x8] sm:$0xf]
        %v465 = vld [vmem:[%s287 + $0xc] sm:$0xf]
        %v466 = vunpack.c.l.bf16 %v462
        %v467 = vunpack.c.l.bf16 %v463
        %v468 = vunpack.c.l.bf16 %v464
        %v469 = vunpack.c.l.bf16 %v465
        %v470 = vld [vmem:[%s3] sm:$0x1]
        %v471 = vunpack.c.l.bf16 %v470
        %v472 = vlaneseq
        %v473 = vshrl.u32 %v472, 7
        %v474 = vsub.s32 0, %v473
        %v475 = vrot.slane %v471, %v474
        %v476 = vmul.f32 %v475, %v458
        %v477 = vmul.f32 %v475, %v459
        %v478 = vmul.f32 %v475, %v460
        %v479 = vmul.f32 %v475, %v461
        %v480 = vadd.f32 %v466, %v476
        %v481 = vadd.f32 %v467, %v477
        %v482 = vadd.f32 %v468, %v478
        %v483 = vadd.f32 %v469, %v479
        %v484 = vpack.c.bf16 %v481, %v480
        %v485 = vpack.c.bf16 %v483, %v482
        %v488 = vunpack.c.l.b16 %v484
        %v489 = vunpack.c.h.b16 %v484
        %v490 = vunpack.c.l.b16 %v485
        %v491 = vunpack.c.h.b16 %v485
        %v492 = vpack.c.b16 %v488, %v488
        %v493 = vpack.c.b16 %v489, %v489
        %v494 = vpack.c.b16 %v490, %v490
        %v495 = vpack.c.b16 %v491, %v491
        %500 = vst [vmem:[%s293] sm:$0xf] %v492
        %501 = vst [vmem:[%s293 + $0x4] sm:$0xf] %v493
        %502 = vst [vmem:[%s293 + $0x8] sm:$0xf] %v494
        %503 = vst [vmem:[%s293 + $0xc] sm:$0xf] %v495
      $region48: #{visual_decoder_forward.15} parent=39 // pred_fallthru
        _
      %s504 = smul.u32 4, %s20
      %p505 = scmp.lt.s32.totalorder %s504, 7
      %s506 = scalar_select %p505, %s504, 7
      %s507 = smul.addr %s506, 4
      %s508 = scalar_lea.vmem %s5, %s507
      // Predicated region
      $region49: #{visual_decoder_forward.15} parent=39 // pred_check
        %p509 = pneg %p168
      $region50: #{visual_decoder_forward.15} parent=39 // pred_check_branch
        %511 = sbr.rel (%p509) target = $region52
      $region51: #{visual_decoder_forward.15} parent=39 // pred_region
        %s512 = smul.u32 4, %s20
      $region52: #{visual_decoder_forward.15} parent=39 // pred_fallthru
        _
    $region40: #{visual_decoder_forward.15} parent=5 // pred_fallthru
      _
    %p513 = scmp.le.s32.totalorder 2, %s11
    // Predicated region
    $region53: #{visual_decoder_forward.15} parent=5 // pred_check
      %p514 = pneg %p513
    $region54: #{visual_decoder_forward.15} parent=5 // pred_check_branch
      %516 = sbr.rel (%p514) target = $region56
    $region55: #{visual_decoder_forward.15} parent=5 // pred_region
      %s517 = ssub.s32 %s11, 2
      // Predicated region
      $region57: #{visual_decoder_forward.15} parent=55 // pred_check
        %p518 = pneg %p174
      $region58: #{visual_decoder_forward.15} parent=55 // pred_check_branch
        %520 = sbr.rel (%p518) target = $region60
      $region59: #{visual_decoder_forward.15} parent=55 // pred_region
        %s521 = smul.u32 4, %s22
        %p522 = scmp.lt.s32.totalorder %s521, 7
        %s523 = scalar_select %p522, %s521, 7
        %s524 = smul.addr %s523, 4
        %s525 = scalar_lea.vmem %s5, %s524
      $region60: #{visual_decoder_forward.15} parent=55 // pred_fallthru
        _
    $region56: #{visual_decoder_forward.15} parent=5 // pred_fallthru
      _
  $region6: #{visual_decoder_forward.15} parent=0 // loop_footer
    %s15 = sadd.s32 1, %s11
  $region7: #{visual_decoder_forward.15} parent=0 // loop_footer_branch
    %10 = sbr.rel target = $region3
  $region8: #{visual_decoder_forward.15} parent=0 // loop_exit
    _

// kernel: visual_decoder_forward.17
$region0: #{visual_decoder_forward.17}
  #allocation0 [shape = 'u32[]', space=smem, size = 0x4, offset = 0x4, fixed_abs, tag = 'smem constant byte address 0x4 - core index']
  #allocation1 [shape = 'u32[144,128]{1,0:T(1,128)}', space=vmem, size = 0x12000, scoped, tag = 'internal scratch']
  #allocation2 [shape = 'f32[32,128]{1,0:T(8,128)}', space=vmem, size = 0x4000, scoped, tag = 'scratch operand']
  %s0 = inlined_call_operand.vmem [shape: bf16[64,512], index: 0, kind: input, shape index: {}]
  %s1 = inlined_call_operand.vmem [shape: bf16[512,128], index: 1, kind: input, shape index: {}]
  %s2 = inlined_call_operand.vmem [shape: bf16[1,128], index: 2, kind: input, shape index: {}]
  %s3 = inlined_call_operand.vmem [shape: bf16[1,128], index: 3, kind: input, shape index: {}]
  %s4 = inlined_call_operand.vmem [shape: bf16[64,128], index: 4, kind: input, shape index: {}, may-alias: {4,5}]
  %s5 = inlined_call_operand.vmem [shape: bf16[64,128], index: 5, kind: output, shape index: {}, may-alias: {4,5}]
  %s6 = sld [smem:[#allocation0]]
  $region61: #{visual_decoder_forward.17} parent=0
    _
  %s8 = ssub.s32 1, %s6
  %s9 = scalar_select 0, %s8, %s6
  loop: start=0, step=1, limit=4
  $region2: #{visual_decoder_forward.17} parent=0 // loop_pre_header
    _
  $region3: #{visual_decoder_forward.17} parent=0 // loop_header
    %s11 = sphi 0, %s15
    %p12 = scmp.ge.s32.totalorder %s11, 4
    %s18 = sphi 0, %s30
    %s19 = sphi 0, %s26
    %s20 = sphi 0, %s18
    %s21 = sphi 0, %s19
    %s22 = sphi 0, %s20
    %s23 = sphi 0, %s21
    %s35 = sphi 0, %s37
    %s38 = sphi 0, %s35
    %s39 = sphi 0, %s38
    %s55 = sphi 0, %s39
    %s61 = sphi 0, %s63
    %s64 = sphi 0, %s61
    %s65 = sphi 0, %s64
    %s81 = sphi 0, %s65
    %s85 = sphi 0, %s85
    %s87 = sphi 0, %s85
    %s88 = sphi 0, %s87
    %s102 = sphi 0, %s88
    %s106 = sphi 0, %s106
    %s108 = sphi 0, %s106
    %s109 = sphi 0, %s108
    %s123 = sphi 0, %s109
    %s129 = sphi 0, %s131
    %s132 = sphi 0, %s129
    %s133 = sphi 0, %s132
    %s149 = sphi 0, %s133
    %s155 = sphi 0, %s157
    %s158 = sphi 0, %s155
    %s159 = sphi 0, %s158
    %s175 = sphi 0, %s159
  $region4: #{visual_decoder_forward.17} parent=0 // loop_header_branch
    %14 = sbr.rel (%p12) target = $region8
  $region5: #{visual_decoder_forward.17} parent=0 // loop_body
    %s16 = ssub.s32 %s11, 1
    %s17 = ssub.s32 %s11, 2
    %s24 = sadd.s32 1, %s19
    %p25 = scmp.ge.s32.totalorder %s24, 1
    %s26 = scalar_select %p25, 0, %s24
    %s27 = sadd.s32 1, %s18
    %s28 = scalar_select %p25, %s27, %s18
    %p29 = scmp.ge.s32.totalorder %s28, 2
    %s30 = scalar_select %p29, 0, %s28
    %s31 = ssub.s32 %s18, %s30
    %s32 = ssub.s32 %s19, %s26
    %s33 = sor.u32 %s31, %s32
    %p34 = scmp.eq.s32.totalorder %s33, 0
    %s36 = sadd.s32 %s35, 1
    %s37 = scalar_select %p34, %s35, %s36
    %p40 = pneg %p34
    %p41 = scmp.eq.s32.totalorder %s11, 1
    %p42 = por %p40, %p41
    %p43 = scmp.ne.s32.totalorder %s35, %s38
    %p44 = scmp.eq.s32.totalorder %s11, 0
    %p45 = por %p43, %p44
    %p46 = scmp.ne.s32.totalorder %s35, %s38
    %p47 = scmp.eq.s32.totalorder %s16, 1
    %p48 = por %p46, %p47
    %p49 = scmp.ne.s32.totalorder %s38, %s39
    %p50 = scmp.eq.s32.totalorder %s16, 0
    %p51 = por %p49, %p50
    %p52 = scmp.ne.s32.totalorder %s38, %s39
    %p53 = scmp.eq.s32.totalorder %s17, 1
    %p54 = por %p52, %p53
    %p56 = scmp.ne.s32.totalorder %s39, %s55
    %p57 = scmp.eq.s32.totalorder %s17, 0
    %p58 = por %p56, %p57
    %s59 = ssub.s32 %s19, %s26
    %p60 = scmp.eq.s32.totalorder %s59, 0
    %s62 = sadd.s32 %s61, 1
    %s63 = scalar_select %p60, %s61, %s62
    %p66 = pneg %p60
    %p67 = scmp.eq.s32.totalorder %s11, 1
    %p68 = por %p66, %p67
    %p69 = scmp.ne.s32.totalorder %s61, %s64
    %p70 = scmp.eq.s32.totalorder %s11, 0
    %p71 = por %p69, %p70
    %p72 = scmp.ne.s32.totalorder %s61, %s64
    %p73 = scmp.eq.s32.totalorder %s16, 1
    %p74 = por %p72, %p73
    %p75 = scmp.ne.s32.totalorder %s64, %s65
    %p76 = scmp.eq.s32.totalorder %s16, 0
    %p77 = por %p75, %p76
    %p78 = scmp.ne.s32.totalorder %s64, %s65
    %p79 = scmp.eq.s32.totalorder %s17, 1
    %p80 = por %p78, %p79
    %p82 = scmp.ne.s32.totalorder %s65, %s81
    %p83 = scmp.eq.s32.totalorder %s17, 0
    %p84 = por %p82, %p83
    %s86 = sadd.s32 %s85, 1
    %p89 = scmp.eq.s32.totalorder %s11, 1
    %p90 = scmp.ne.s32.totalorder %s85, %s87
    %p91 = scmp.eq.s32.totalorder %s11, 0
    %p92 = por %p90, %p91
    %p93 = scmp.ne.s32.totalorder %s85, %s87
    %p94 = scmp.eq.s32.totalorder %s16, 1
    %p95 = por %p93, %p94
    %p96 = scmp.ne.s32.totalorder %s87, %s88
    %p97 = scmp.eq.s32.totalorder %s16, 0
    %p98 = por %p96, %p97
    %p99 = scmp.ne.s32.totalorder %s87, %s88
    %p100 = scmp.eq.s32.totalorder %s17, 1
    %p101 = por %p99, %p100
    %p103 = scmp.ne.s32.totalorder %s88, %s102
    %p104 = scmp.eq.s32.totalorder %s17, 0
    %p105 = por %p103, %p104
    %s107 = sadd.s32 %s106, 1
    %p110 = scmp.eq.s32.totalorder %s11, 1
    %p111 = scmp.ne.s32.totalorder %s106, %s108
    %p112 = scmp.eq.s32.totalorder %s11, 0
    %p113 = por %p111, %p112
    %p114 = scmp.ne.s32.totalorder %s106, %s108
    %p115 = scmp.eq.s32.totalorder %s16, 1
    %p116 = por %p114, %p115
    %p117 = scmp.ne.s32.totalorder %s108, %s109
    %p118 = scmp.eq.s32.totalorder %s16, 0
    %p119 = por %p117, %p118
    %p120 = scmp.ne.s32.totalorder %s108, %s109
    %p121 = scmp.eq.s32.totalorder %s17, 1
    %p122 = por %p120, %p121
    %p124 = scmp.ne.s32.totalorder %s109, %s123
    %p125 = scmp.eq.s32.totalorder %s17, 0
    %p126 = por %p124, %p125
    %s127 = ssub.s32 %s18, %s30
    %p128 = scmp.eq.s32.totalorder %s127, 0
    %s130 = sadd.s32 %s129, 1
    %s131 = scalar_select %p128, %s129, %s130
    %p134 = pneg %p128
    %p135 = scmp.eq.s32.totalorder %s11, 1
    %p136 = por %p134, %p135
    %p137 = scmp.ne.s32.totalorder %s129, %s132
    %p138 = scmp.eq.s32.totalorder %s11, 0
    %p139 = por %p137, %p138
    %p140 = scmp.ne.s32.totalorder %s129, %s132
    %p141 = scmp.eq.s32.totalorder %s16, 1
    %p142 = por %p140, %p141
    %p143 = scmp.ne.s32.totalorder %s132, %s133
    %p144 = scmp.eq.s32.totalorder %s16, 0
    %p145 = por %p143, %p144
    %p146 = scmp.ne.s32.totalorder %s132, %s133
    %p147 = scmp.eq.s32.totalorder %s17, 1
    %p148 = por %p146, %p147
    %p150 = scmp.ne.s32.totalorder %s133, %s149
    %p151 = scmp.eq.s32.totalorder %s17, 0
    %p152 = por %p150, %p151
    %s153 = ssub.s32 %s18, %s30
    %p154 = scmp.eq.s32.totalorder %s153, 0
    %s156 = sadd.s32 %s155, 1
    %s157 = scalar_select %p154, %s155, %s156
    %p160 = pneg %p154
    %p161 = scmp.eq.s32.totalorder %s11, 1
    %p162 = por %p160, %p161
    %p163 = scmp.ne.s32.totalorder %s155, %s158
    %p164 = scmp.eq.s32.totalorder %s11, 0
    %p165 = por %p163, %p164
    %p166 = scmp.ne.s32.totalorder %s155, %s158
    %p167 = scmp.eq.s32.totalorder %s16, 1
    %p168 = por %p166, %p167
    %p169 = scmp.ne.s32.totalorder %s158, %s159
    %p170 = scmp.eq.s32.totalorder %s16, 0
    %p171 = por %p169, %p170
    %p172 = scmp.ne.s32.totalorder %s158, %s159
    %p173 = scmp.eq.s32.totalorder %s17, 1
    %p174 = por %p172, %p173
    %p176 = scmp.ne.s32.totalorder %s159, %s175
    %p177 = scmp.eq.s32.totalorder %s17, 0
    %p178 = por %p176, %p177
    %p179 = scmp.le.s32.totalorder 1, %s11
    %p180 = scmp.lt.s32.totalorder %s11, 3
    %p181 = pnand %p179, %p180
    %p182 = pneg %p181
    // Predicated region
    $region9: #{visual_decoder_forward.17} parent=5 // pred_check
      _
    $region10: #{visual_decoder_forward.17} parent=5 // pred_check_branch
      %184 = sbr.rel (%p181) target = $region12
    $region11: #{visual_decoder_forward.17} parent=5 // pred_region
      %s185 = ssub.s32 %s11, 1
      // Predicated region
      $region13: #{visual_decoder_forward.17} parent=11 // pred_check
        %p186 = pneg %p77
      $region14: #{visual_decoder_forward.17} parent=11 // pred_check_branch
        %188 = sbr.rel (%p186) target = $region16
      $region15: #{visual_decoder_forward.17} parent=11 // pred_region
        %s189 = smul.u32 64, %s21
        %p190 = scmp.lt.s32.totalorder %s189, 63
        %s191 = scalar_select %p190, %s189, 63
        %s192 = smul.addr %s191, 4
        %s193 = scalar_lea.vmem %s1, %s192
        %s194 = smul.u32 64, %s21
      $region16: #{visual_decoder_forward.17} parent=11 // pred_fallthru
        _
      // Predicated region
      $region17: #{visual_decoder_forward.17} parent=11 // pred_check
        %p195 = pneg %p98
      $region18: #{visual_decoder_forward.17} parent=11 // pred_check_branch
        %197 = sbr.rel (%p195) target = $region20
      $region19: #{visual_decoder_forward.17} parent=11 // pred_region
        _
      $region20: #{visual_decoder_forward.17} parent=11 // pred_fallthru
        _
      // Predicated region
      $region21: #{visual_decoder_forward.17} parent=11 // pred_check
        %p198 = pneg %p119
      $region22: #{visual_decoder_forward.17} parent=11 // pred_check_branch
        %200 = sbr.rel (%p198) target = $region24
      $region23: #{visual_decoder_forward.17} parent=11 // pred_region
        _
      $region24: #{visual_decoder_forward.17} parent=11 // pred_fallthru
        _
    $region12: #{visual_decoder_forward.17} parent=5 // pred_fallthru
      _
    %p201 = scmp.lt.s32.totalorder %s11, 2
    // Predicated region
    $region25: #{visual_decoder_forward.17} parent=5 // pred_check
      %p202 = pneg %p201
    $region26: #{visual_decoder_forward.17} parent=5 // pred_check_branch
      %204 = sbr.rel (%p202) target = $region28
    $region27: #{visual_decoder_forward.17} parent=5 // pred_region
      // Predicated region
      $region29: #{visual_decoder_forward.17} parent=27 // pred_check
        %p205 = pneg %p45
      $region30: #{visual_decoder_forward.17} parent=27 // pred_check_branch
        %207 = sbr.rel (%p205) target = $region32
      $region31: #{visual_decoder_forward.17} parent=27 // pred_region
        %s208 = smul.u32 4, %s18
        %s209 = smul.u32 4, %s19
        %p210 = scmp.lt.s32.totalorder %s208, 7
        %s211 = scalar_select %p210, %s208, 7
        %p212 = scmp.lt.s32.totalorder %s209, 3
        %s213 = scalar_select %p212, %s209, 3
        %s214 = smul.addr %s211, 4
        %s215 = sadd.s32 %s213, %s214
        %s216 = smul.addr %s215, 4
        %s217 = scalar_lea.vmem %s0, %s216
        %s218 = smul.u32 4, %s18
        %s219 = smul.u32 4, %s19
      $region32: #{visual_decoder_forward.17} parent=27 // pred_fallthru
        _
      // Predicated region
      $region33: #{visual_decoder_forward.17} parent=27 // pred_check
        %p220 = pneg %p139
      $region34: #{visual_decoder_forward.17} parent=27 // pred_check_branch
        %222 = sbr.rel (%p220) target = $region36
      $region35: #{visual_decoder_forward.17} parent=27 // pred_region
        %s223 = smul.u32 4, %s18
        %p224 = scmp.lt.s32.totalorder %s223, 7
        %s225 = scalar_select %p224, %s223, 7
        %s226 = smul.addr %s225, 4
        %s227 = scalar_lea.vmem %s4, %s226
        %s228 = smul.u32 4, %s18
      $region36: #{visual_decoder_forward.17} parent=27 // pred_fallthru
        _
    $region28: #{visual_decoder_forward.17} parent=5 // pred_fallthru
      _
    %p229 = scmp.le.s32.totalorder 1, %s11
    %p230 = scmp.lt.s32.totalorder %s11, 3
    %p231 = pnand %p229, %p230
    %p232 = pneg %p231
    // Predicated region
    $region37: #{visual_decoder_forward.17} parent=5 // pred_check
      _
    $region38: #{visual_decoder_forward.17} parent=5 // pred_check_branch
      %234 = sbr.rel (%p231) target = $region40
    $region39: #{visual_decoder_forward.17} parent=5 // pred_region
      %s235 = ssub.s32 %s11, 1
      %s236 = smul.u32 4, %s20
      %s237 = smul.u32 4, %s21
      %p238 = scmp.lt.s32.totalorder %s236, 7
      %s239 = scalar_select %p238, %s236, 7
      %p240 = scmp.lt.s32.totalorder %s237, 3
      %s241 = scalar_select %p240, %s237, 3
      %s242 = smul.addr %s239, 4
      %s243 = sadd.s32 %s241, %s242
      %s244 = smul.addr %s243, 4
      %s245 = scalar_lea.vmem %s0, %s244
      %p246 = pneg %p51
      %p247 = pneg %p48
      %s248 = smul.u32 64, %s21
      %p249 = scmp.lt.s32.totalorder %s248, 63
      %s250 = scalar_select %p249, %s248, 63
      %s251 = smul.addr %s250, 4
      %s252 = scalar_lea.vmem %s1, %s251
      %p253 = pneg %p77
      %p254 = pneg %p74
      %p255 = pneg %p98
      %p256 = pneg %p95
      %p257 = pneg %p119
      %p258 = pneg %p116
      %s259 = smul.u32 4, %s20
      %p260 = scmp.lt.s32.totalorder %s259, 7
      %s261 = scalar_select %p260, %s259, 7
      %s262 = smul.addr %s261, 4
      %s263 = scalar_lea.vmem %s4, %s262
      %p264 = pneg %p145
      %p265 = pneg %p142
      %p266 = pneg %p171
      %p267 = pneg %p168
      %s268 = smul.u32 4, %s20
      %p269 = scmp.lt.s32.totalorder %s268, 7
      %s270 = scalar_select %p269, %s268, 7
      %s271 = smul.addr %s270, 4
      %s272 = scalar_lea.vmem %s5, %s271
      %s273 = smul.u32 4, %s20
      %s274 = smul.u32 4, %s21
      %p275 = scmp.lt.s32.totalorder %s273, 7
      %s276 = scalar_select %p275, %s273, 7
      %p277 = scmp.lt.s32.totalorder %s274, 3
      %s278 = scalar_select %p277, %s274, 3
      %s279 = smul.addr %s276, 4
      %s280 = sadd.s32 %s278, %s279
      %s281 = smul.addr %s280, 4
      %s282 = scalar_lea.vmem %s0, %s281
      %s283 = smul.u32 4, %s20
      %s284 = smul.u32 4, %s21
      %s285 = smul.u32 64, %s21
      %p286 = scmp.lt.s32.totalorder %s285, 63
      %s287 = scalar_select %p286, %s285, 63
      %s288 = smul.addr %s287, 4
      %s289 = scalar_lea.vmem %s1, %s288
      %s290 = smul.u32 64, %s21
      %s291 = smul.u32 4, %s20
      %p292 = scmp.lt.s32.totalorder %s291, 7
      %s293 = scalar_select %p292, %s291, 7
      %s294 = smul.addr %s293, 4
      %s295 = scalar_lea.vmem %s4, %s294
      %s296 = smul.u32 4, %s20
      %s297 = smul.u32 4, %s20
      %p298 = scmp.lt.s32.totalorder %s297, 7
      %s299 = scalar_select %p298, %s297, 7
      %s300 = smul.addr %s299, 4
      %s301 = scalar_lea.vmem %s5, %s300
      %s302 = smul.u32 4, %s20
      %p304 = scmp.eq.s32.totalorder %s21, 0
      // Predicated region
      $region41: #{visual_decoder_forward.17} parent=39 // pred_check
        %p305 = pneg %p304
      $region42: #{visual_decoder_forward.17} parent=39 // pred_check_branch
        %307 = sbr.rel (%p305) target = $region44
      $region43: #{visual_decoder_forward.17} parent=39 // pred_region
        %308 = vst [vmem:[#allocation2] sm:$0xff] 0.0
        %309 = vst [vmem:[#allocation2 + $0x8] sm:$0xff] 0.0
        %310 = vst [vmem:[#allocation2 + $0x10] sm:$0xff] 0.0
        %311 = vst [vmem:[#allocation2 + $0x18] sm:$0xff] 0.0
      $region44: #{visual_decoder_forward.17} parent=39 // pred_fallthru
        _
      %v312 = vld [vmem:[#allocation2] sm:$0xff]
      %v313 = vld [vmem:[#allocation2 + $0x8] sm:$0xff]
      %v314 = vld [vmem:[#allocation2 + $0x10] sm:$0xff]
      %v315 = vld [vmem:[#allocation2 + $0x18] sm:$0xff]
      %v316 = vld [vmem:[%s282] sm:$0xff]
      %v317 = vld [vmem:[%s282 + $0x8] sm:$0xff]
      %v318 = vld [vmem:[%s282 + $0x10] sm:$0xff]
      %v319 = vld [vmem:[%s282 + $0x18] sm:$0xff]
      %v320 = vld [vmem:[%s282 + $0x20] sm:$0xff]
      %v321 = vld [vmem:[%s282 + $0x28] sm:$0xff]
      %v322 = vld [vmem:[%s282 + $0x30] sm:$0xff]
      %v323 = vld [vmem:[%s282 + $0x38] sm:$0xff]
      %v324 = vld [vmem:[%s289] sm:$0xf]
      %v325 = vld [vmem:[%s289 + $0x4] sm:$0xf]
      %v326 = vld [vmem:[%s289 + $0x8] sm:$0xf]
      %v327 = vld [vmem:[%s289 + $0xc] sm:$0xf]
      %v328 = vld [vmem:[%s289 + $0x10] sm:$0xf]
      %v329 = vld [vmem:[%s289 + $0x14] sm:$0xf]
      %v330 = vld [vmem:[%s289 + $0x18] sm:$0xf]
      %v331 = vld [vmem:[%s289 + $0x1c] sm:$0xf]
      %v332 = vld [vmem:[%s289 + $0x20] sm:$0xf]
      %v333 = vld [vmem:[%s289 + $0x24] sm:$0xf]
      %v334 = vld [vmem:[%s289 + $0x28] sm:$0xf]
      %v335 = vld [vmem:[%s289 + $0x2c] sm:$0xf]
      %v336 = vld [vmem:[%s289 + $0x30] sm:$0xf]
      %v337 = vld [vmem:[%s289 + $0x34] sm:$0xf]
      %v338 = vld [vmem:[%s289 + $0x38] sm:$0xf]
      %v339 = vld [vmem:[%s289 + $0x3c] sm:$0xf]
      %v340 = vld [vmem:[%s289 + $0x40] sm:$0xf]
      %v341 = vld [vmem:[%s289 + $0x44] sm:$0xf]
      %v342 = vld [vmem:[%s289 + $0x48] sm:$0xf]
      %v343 = vld [vmem:[%s289 + $0x4c] sm:$0xf]
      %v344 = vld [vmem:[%s289 + $0x50] sm:$0xf]
      %v345 = vld [vmem:[%s289 + $0x54] sm:$0xf]
      %v346 = vld [vmem:[%s289 + $0x58] sm:$0xf]
      %v347 = vld [vmem:[%s289 + $0x5c] sm:$0xf]
      %v348 = vld [vmem:[%s289 + $0x60] sm:$0xf]
      %v349 = vld [vmem:[%s289 + $0x64] sm:$0xf]
      %v350 = vld [vmem:[%s289 + $0x68] sm:$0xf]
      %v351 = vld [vmem:[%s289 + $0x6c] sm:$0xf]
      %v352 = vld [vmem:[%s289 + $0x70] sm:$0xf]
      %v353 = vld [vmem:[%s289 + $0x74] sm:$0xf]
      %v354 = vld [vmem:[%s289 + $0x78] sm:$0xf]
      %v355 = vld [vmem:[%s289 + $0x7c] sm:$0xf]
      %v356 = vld [vmem:[%s289 + $0x80] sm:$0xf]
      %v357 = vld [vmem:[%s289 + $0x84] sm:$0xf]
      %v358 = vld [vmem:[%s289 + $0x88] sm:$0xf]
      %v359 = vld [vmem:[%s289 + $0x8c] sm:$0xf]
      %v360 = vld [vmem:[%s289 + $0x90] sm:$0xf]
      %v361 = vld [vmem:[%s289 + $0x94] sm:$0xf]
      %v362 = vld [vmem:[%s289 + $0x98] sm:$0xf]
      %v363 = vld [vmem:[%s289 + $0x9c] sm:$0xf]
      %v364 = vld [vmem:[%s289 + $0xa0] sm:$0xf]
      %v365 = vld [vmem:[%s289 + $0xa4] sm:$0xf]
      %v366 = vld [vmem:[%s289 + $0xa8] sm:$0xf]
      %v367 = vld [vmem:[%s289 + $0xac] sm:$0xf]
      %v368 = vld [vmem:[%s289 + $0xb0] sm:$0xf]
      %v369 = vld [vmem:[%s289 + $0xb4] sm:$0xf]
      %v370 = vld [vmem:[%s289 + $0xb8] sm:$0xf]
      %v371 = vld [vmem:[%s289 + $0xbc] sm:$0xf]
      %v372 = vld [vmem:[%s289 + $0xc0] sm:$0xf]
      %v373 = vld [vmem:[%s289 + $0xc4] sm:$0xf]
      %v374 = vld [vmem:[%s289 + $0xc8] sm:$0xf]
      %v375 = vld [vmem:[%s289 + $0xcc] sm:$0xf]
      %v376 = vld [vmem:[%s289 + $0xd0] sm:$0xf]
      %v377 = vld [vmem:[%s289 + $0xd4] sm:$0xf]
      %v378 = vld [vmem:[%s289 + $0xd8] sm:$0xf]
      %v379 = vld [vmem:[%s289 + $0xdc] sm:$0xf]
      %v380 = vld [vmem:[%s289 + $0xe0] sm:$0xf]
      %v381 = vld [vmem:[%s289 + $0xe4] sm:$0xf]
      %v382 = vld [vmem:[%s289 + $0xe8] sm:$0xf]
      %v383 = vld [vmem:[%s289 + $0xec] sm:$0xf]
      %v384 = vld [vmem:[%s289 + $0xf0] sm:$0xf]
      %v385 = vld [vmem:[%s289 + $0xf4] sm:$0xf]
      %v386 = vld [vmem:[%s289 + $0xf8] sm:$0xf]
      %v387 = vld [vmem:[%s289 + $0xfc] sm:$0xf]
      %v396 = vunpack.c.l.b16 %v316
      %v397 = vunpack.c.h.b16 %v316
      %v398 = vunpack.c.l.b16 %v317
      %v399 = vunpack.c.h.b16 %v317
      %v400 = vunpack.c.l.b16 %v318
      %v401 = vunpack.c.h.b16 %v318
      %v402 = vunpack.c.l.b16 %v319
      %v403 = vunpack.c.h.b16 %v319
      %v404 = vunpack.c.l.b16 %v320
      %v405 = vunpack.c.h.b16 %v320
      %v406 = vunpack.c.l.b16 %v321
      %v407 = vunpack.c.h.b16 %v321
      %v408 = vunpack.c.l.b16 %v322
      %v409 = vunpack.c.h.b16 %v322
      %v410 = vunpack.c.l.b16 %v323
      %v411 = vunpack.c.h.b16 %v323
      %v412 = vpack.c.b16 %v400, %v396
      %v413 = vpack.c.b16 %v401, %v397
      %v414 = vpack.c.b16 %v402, %v398
      %v415 = vpack.c.b16 %v403, %v399
      %v416 = vpack.c.b16 %v408, %v404
      %v417 = vpack.c.b16 %v409, %v405
      %v418 = vpack.c.b16 %v410, %v406
      %v419 = vpack.c.b16 %v411, %v407
      %v492 = vunpack.c.l.b16 %v324
      %v493 = vunpack.c.l.b16 %v325
      %v494 = vunpack.c.l.b16 %v326
      %v495 = vunpack.c.l.b16 %v327
      %v496 = vunpack.c.l.b16 %v328
      %v497 = vunpack.c.l.b16 %v329
      %v498 = vunpack.c.l.b16 %v330
      %v499 = vunpack.c.l.b16 %v331
      %v500 = vunpack.c.l.b16 %v332
      %v501 = vunpack.c.l.b16 %v333
      %v502 = vunpack.c.l.b16 %v334
      %v503 = vunpack.c.l.b16 %v335
      %v504 = vunpack.c.l.b16 %v336
      %v505 = vunpack.c.l.b16 %v337
      %v506 = vunpack.c.l.b16 %v338
      %v507 = vunpack.c.l.b16 %v339
      %v508 = vunpack.c.l.b16 %v340
      %v509 = vunpack.c.l.b16 %v341
      %v510 = vunpack.c.l.b16 %v342
      %v511 = vunpack.c.l.b16 %v343
      %v512 = vunpack.c.l.b16 %v344
      %v513 = vunpack.c.l.b16 %v345
      %v514 = vunpack.c.l.b16 %v346
      %v515 = vunpack.c.l.b16 %v347
      %v516 = vunpack.c.l.b16 %v348
      %v517 = vunpack.c.l.b16 %v349
      %v518 = vunpack.c.l.b16 %v350
      %v519 = vunpack.c.l.b16 %v351
      %v520 = vunpack.c.l.b16 %v352
      %v521 = vunpack.c.l.b16 %v353
      %v522 = vunpack.c.l.b16 %v354
      %v523 = vunpack.c.l.b16 %v355
      %v524 = vunpack.c.l.b16 %v356
      %v525 = vunpack.c.l.b16 %v357
      %v526 = vunpack.c.l.b16 %v358
      %v527 = vunpack.c.l.b16 %v359
      %v528 = vunpack.c.l.b16 %v360
      %v529 = vunpack.c.l.b16 %v361
      %v530 = vunpack.c.l.b16 %v362
      %v531 = vunpack.c.l.b16 %v363
      %v532 = vunpack.c.l.b16 %v364
      %v533 = vunpack.c.l.b16 %v365
      %v534 = vunpack.c.l.b16 %v366
      %v535 = vunpack.c.l.b16 %v367
      %v536 = vunpack.c.l.b16 %v368
      %v537 = vunpack.c.l.b16 %v369
      %v538 = vunpack.c.l.b16 %v370
      %v539 = vunpack.c.l.b16 %v371
      %v540 = vunpack.c.l.b16 %v372
      %v541 = vunpack.c.l.b16 %v373
      %v542 = vunpack.c.l.b16 %v374
      %v543 = vunpack.c.l.b16 %v375
      %v544 = vunpack.c.l.b16 %v376
      %v545 = vunpack.c.l.b16 %v377
      %v546 = vunpack.c.l.b16 %v378
      %v547 = vunpack.c.l.b16 %v379
      %v548 = vunpack.c.l.b16 %v380
      %v549 = vunpack.c.l.b16 %v381
      %v550 = vunpack.c.l.b16 %v382
      %v551 = vunpack.c.l.b16 %v383
      %v552 = vunpack.c.l.b16 %v384
      %v553 = vunpack.c.l.b16 %v385
      %v554 = vunpack.c.l.b16 %v386
      %v555 = vunpack.c.l.b16 %v387
      %v556 = vpack.c.b16 %v493, %v492
      %v557 = vpack.c.b16 %v495, %v494
      %v558 = vpack.c.b16 %v497, %v496
      %v559 = vpack.c.b16 %v499, %v498
      %v560 = vpack.c.b16 %v501, %v500
      %v561 = vpack.c.b16 %v503, %v502
      %v562 = vpack.c.b16 %v505, %v504
      %v563 = vpack.c.b16 %v507, %v506
      %v564 = vpack.c.b16 %v509, %v508
      %v565 = vpack.c.b16 %v511, %v510
      %v566 = vpack.c.b16 %v513, %v512
      %v567 = vpack.c.b16 %v515, %v514
      %v568 = vpack.c.b16 %v517, %v516
      %v569 = vpack.c.b16 %v519, %v518
      %v570 = vpack.c.b16 %v521, %v520
      %v571 = vpack.c.b16 %v523, %v522
      %v572 = vpack.c.b16 %v525, %v524
      %v573 = vpack.c.b16 %v527, %v526
      %v574 = vpack.c.b16 %v529, %v528
      %v575 = vpack.c.b16 %v531, %v530
      %v576 = vpack.c.b16 %v533, %v532
      %v577 = vpack.c.b16 %v535, %v534
      %v578 = vpack.c.b16 %v537, %v536
      %v579 = vpack.c.b16 %v539, %v538
      %v580 = vpack.c.b16 %v541, %v540
      %v581 = vpack.c.b16 %v543, %v542
      %v582 = vpack.c.b16 %v545, %v544
      %v583 = vpack.c.b16 %v547, %v546
      %v584 = vpack.c.b16 %v549, %v548
      %v585 = vpack.c.b16 %v551, %v550
      %v586 = vpack.c.b16 %v553, %v552
      %v587 = vpack.c.b16 %v555, %v554
      %620 = vmatprep.subr.bf16.mxu0 0
      %621 = vmatpush1.bf16.msra.mxu0 %v556
      %622 = vmatprep.subr.bf16.mxu0 0
      %623 = vmatpush1.bf16.msra.mxu0 %v557
      %624 = vmatprep.subr.bf16.mxu0 0
      %625 = vmatpush1.bf16.msra.mxu0 %v558
      %626 = vmatprep.subr.bf16.mxu0 0
      %627 = vmatpush1.bf16.msra.mxu0 %v559
      %628 = vmatprep.subr.bf16.mxu0 0
      %629 = vmatpush1.bf16.msra.mxu0 %v560
      %630 = vmatprep.subr.bf16.mxu0 0
      %631 = vmatpush1.bf16.msra.mxu0 %v561
      %632 = vmatprep.subr.bf16.mxu0 0
      %633 = vmatpush1.bf16.msra.mxu0 %v562
      %634 = vmatprep.subr.bf16.mxu0 0
      %635 = vmatpush1.bf16.msra.mxu0 %v563
      %636 = vmatprep.subr.bf16.mxu0 0
      %637 = vmatpush1.bf16.msra.mxu0 %v564
      %638 = vmatprep.subr.bf16.mxu0 0
      %639 = vmatpush1.bf16.msra.mxu0 %v565
      %640 = vmatprep.subr.bf16.mxu0 0
      %641 = vmatpush1.bf16.msra.mxu0 %v566
      %642 = vmatprep.subr.bf16.mxu0 0
      %643 = vmatpush1.bf16.msra.mxu0 %v567
      %644 = vmatprep.subr.bf16.mxu0 0
      %645 = vmatpush1.bf16.msra.mxu0 %v568
      %646 = vmatprep.subr.bf16.mxu0 0
      %647 = vmatpush1.bf16.msra.mxu0 %v569
      %648 = vmatprep.subr.bf16.mxu0 0
      %649 = vmatpush1.bf16.msra.mxu0 %v570
      %650 = vmatprep.subr.bf16.mxu0 0
      %651 = vmatpush1.bf16.msra.mxu0 %v571
      %652 = vmatprep.mubr.bf16.mxu0 %v413
      %653 = vmatmul.mubr.bf16.gmra.mrb[0].mxu0 %v412
      %v654 = vpop.f32.mrb[0].mxu0
      %v655 = vadd.f32 0.0, %v654
      %v656 = vpop.f32.mrb[0].mxu0
      %v657 = vpop.f32.mrb[0].mxu0
      %v658 = vadd.f32 0.0, %v657
      %v659 = vpop.f32.mrb[0].mxu0
      %660 = vmatprep.mubr.bf16.mxu0 %v417
      %661 = vmatmul.mubr.bf16.gmra.mrb[0].mxu0 %v416
      %v662 = vpop.f32.mrb[0].mxu0
      %v663 = vadd.f32 0.0, %v662
      %v664 = vpop.f32.mrb[0].mxu0
      %v665 = vpop.f32.mrb[0].mxu0
      %v666 = vadd.f32 0.0, %v665
      %v667 = vpop.f32.mrb[0].mxu0
      %668 = vdwg.mxu0
      %669 = vmatprep.subr.bf16.mxu0 0
      %670 = vmatpush1.bf16.msra.mxu0 %v572
      %671 = vmatprep.subr.bf16.mxu0 0
      %672 = vmatpush1.bf16.msra.mxu0 %v573
      %673 = vmatprep.subr.bf16.mxu0 0
      %674 = vmatpush1.bf16.msra.mxu0 %v574
      %675 = vmatprep.subr.bf16.mxu0 0
      %676 = vmatpush1.bf16.msra.mxu0 %v575
      %677 = vmatprep.subr.bf16.mxu0 0
      %678 = vmatpush1.bf16.msra.mxu0 %v576
      %679 = vmatprep.subr.bf16.mxu0 0
      %680 = vmatpush1.bf16.msra.mxu0 %v577
      %681 = vmatprep.subr.bf16.mxu0 0
      %682 = vmatpush1.bf16.msra.mxu0 %v578
      %683 = vmatprep.subr.bf16.mxu0 0
      %684 = vmatpush1.bf16.msra.mxu0 %v579
      %685 = vmatprep.subr.bf16.mxu0 0
      %686 = vmatpush1.bf16.msra.mxu0 %v580
      %687 = vmatprep.subr.bf16.mxu0 0
      %688 = vmatpush1.bf16.msra.mxu0 %v581
      %689 = vmatprep.subr.bf16.mxu0 0
      %690 = vmatpush1.bf16.msra.mxu0 %v582
      %691 = vmatprep.subr.bf16.mxu0 0
      %692 = vmatpush1.bf16.msra.mxu0 %v583
      %693 = vmatprep.subr.bf16.mxu0 0
      %694 = vmatpush1.bf16.msra.mxu0 %v584
      %695 = vmatprep.subr.bf16.mxu0 0
      %696 = vmatpush1.bf16.msra.mxu0 %v585
      %697 = vmatprep.subr.bf16.mxu0 0
      %698 = vmatpush1.bf16.msra.mxu0 %v586
      %699 = vmatprep.subr.bf16.mxu0 0
      %700 = vmatpush1.bf16.msra.mxu0 %v587
      %701 = vmatprep.mubr.bf16.mxu0 %v415
      %702 = vmatmul.mubr.bf16.gmra.mrb[0].mxu0 %v414
      %v703 = vpop.f32.mrb[0].mxu0
      %v704 = vadd.f32 %v655, %v703
      %v705 = vpop.f32.mrb[0].mxu0
      %v706 = vpop.f32.mrb[0].mxu0
      %v707 = vadd.f32 %v658, %v706
      %v708 = vpop.f32.mrb[0].mxu0
      %709 = vmatprep.mubr.bf16.mxu0 %v419
      %710 = vmatmul.mubr.bf16.gmra.mrb[0].mxu0 %v418
      %v711 = vpop.f32.mrb[0].mxu0
      %v712 = vadd.f32 %v663, %v711
      %v713 = vpop.f32.mrb[0].mxu0
      %v714 = vpop.f32.mrb[0].mxu0
      %v715 = vadd.f32 %v666, %v714
      %v716 = vpop.f32.mrb[0].mxu0
      %717 = vdwg.mxu0
      %v718 = vadd.f32 %v312, %v704
      %v719 = vadd.f32 %v313, %v707
      %v720 = vadd.f32 %v314, %v712
      %v721 = vadd.f32 %v315, %v715
      %722 = vst [vmem:[#allocation2] sm:$0xff] %v718
      %723 = vst [vmem:[#allocation2 + $0x8] sm:$0xff] %v719
      %724 = vst [vmem:[#allocation2 + $0x10] sm:$0xff] %v720
      %725 = vst [vmem:[#allocation2 + $0x18] sm:$0xff] %v721
      // Predicated region
      $region45: #{visual_decoder_forward.17} parent=39 // pred_check
        %p726 = pneg %p304
      $region46: #{visual_decoder_forward.17} parent=39 // pred_check_branch
        %728 = sbr.rel (%p726) target = $region48
      $region47: #{visual_decoder_forward.17} parent=39 // pred_region
        %v729 = vld [vmem:[#allocation2] sm:$0xff]
        %v730 = vld [vmem:[#allocation2 + $0x8] sm:$0xff]
        %v731 = vld [vmem:[#allocation2 + $0x10] sm:$0xff]
        %v732 = vld [vmem:[#allocation2 + $0x18] sm:$0xff]
        %v733 = vld [vmem:[%s2] sm:$0x1]
        %v734 = vunpack.c.l.bf16 %v733
        %v735 = vlaneseq
        %v736 = vshrl.u32 %v735, 7
        %v737 = vsub.s32 0, %v736
        %v738 = vrot.slane %v734, %v737
        %v739 = vadd.f32 %v729, %v738
        %v740 = vadd.f32 %v730, %v738
        %v741 = vadd.f32 %v731, %v738
        %v742 = vadd.f32 %v732, %v738
        %v743 = vld [vmem:[%s295] sm:$0xf]
        %v744 = vld [vmem:[%s295 + $0x4] sm:$0xf]
        %v745 = vld [vmem:[%s295 + $0x8] sm:$0xf]
        %v746 = vld [vmem:[%s295 + $0xc] sm:$0xf]
        %v747 = vunpack.c.l.bf16 %v743
        %v748 = vunpack.c.l.bf16 %v744
        %v749 = vunpack.c.l.bf16 %v745
        %v750 = vunpack.c.l.bf16 %v746
        %v751 = vld [vmem:[%s3] sm:$0x1]
        %v752 = vunpack.c.l.bf16 %v751
        %v753 = vlaneseq
        %v754 = vshrl.u32 %v753, 7
        %v755 = vsub.s32 0, %v754
        %v756 = vrot.slane %v752, %v755
        %v757 = vmul.f32 %v756, %v739
        %v758 = vmul.f32 %v756, %v740
        %v759 = vmul.f32 %v756, %v741
        %v760 = vmul.f32 %v756, %v742
        %v761 = vadd.f32 %v747, %v757
        %v762 = vadd.f32 %v748, %v758
        %v763 = vadd.f32 %v749, %v759
        %v764 = vadd.f32 %v750, %v760
        %v765 = vpack.c.bf16 %v762, %v761
        %v766 = vpack.c.bf16 %v764, %v763
        %v769 = vunpack.c.l.b16 %v765
        %v770 = vunpack.c.h.b16 %v765
        %v771 = vunpack.c.l.b16 %v766
        %v772 = vunpack.c.h.b16 %v766
        %v773 = vpack.c.b16 %v769, %v769
        %v774 = vpack.c.b16 %v770, %v770
        %v775 = vpack.c.b16 %v771, %v771
        %v776 = vpack.c.b16 %v772, %v772
        %781 = vst [vmem:[%s301] sm:$0xf] %v773
        %782 = vst [vmem:[%s301 + $0x4] sm:$0xf] %v774
        %783 = vst [vmem:[%s301 + $0x8] sm:$0xf] %v775
        %784 = vst [vmem:[%s301 + $0xc] sm:$0xf] %v776
      $region48: #{visual_decoder_forward.17} parent=39 // pred_fallthru
        _
      %s785 = smul.u32 4, %s20
      %p786 = scmp.lt.s32.totalorder %s785, 7
      %s787 = scalar_select %p786, %s785, 7
      %s788 = smul.addr %s787, 4
      %s789 = scalar_lea.vmem %s5, %s788
      // Predicated region
      $region49: #{visual_decoder_forward.17} parent=39 // pred_check
        %p790 = pneg %p168
      $region50: #{visual_decoder_forward.17} parent=39 // pred_check_branch
        %792 = sbr.rel (%p790) target = $region52
      $region51: #{visual_decoder_forward.17} parent=39 // pred_region
        %s793 = smul.u32 4, %s20
      $region52: #{visual_decoder_forward.17} parent=39 // pred_fallthru
        _
    $region40: #{visual_decoder_forward.17} parent=5 // pred_fallthru
      _
    %p794 = scmp.le.s32.totalorder 2, %s11
    // Predicated region
    $region53: #{visual_decoder_forward.17} parent=5 // pred_check
      %p795 = pneg %p794
    $region54: #{visual_decoder_forward.17} parent=5 // pred_check_branch
      %797 = sbr.rel (%p795) target = $region56
    $region55: #{visual_decoder_forward.17} parent=5 // pred_region
      %s798 = ssub.s32 %s11, 2
      // Predicated region
      $region57: #{visual_decoder_forward.17} parent=55 // pred_check
        %p799 = pneg %p174
      $region58: #{visual_decoder_forward.17} parent=55 // pred_check_branch
        %801 = sbr.rel (%p799) target = $region60
      $region59: #{visual_decoder_forward.17} parent=55 // pred_region
        %s802 = smul.u32 4, %s22
        %p803 = scmp.lt.s32.totalorder %s802, 7
        %s804 = scalar_select %p803, %s802, 7
        %s805 = smul.addr %s804, 4
        %s806 = scalar_lea.vmem %s5, %s805
      $region60: #{visual_decoder_forward.17} parent=55 // pred_fallthru
        _
    $region56: #{visual_decoder_forward.17} parent=5 // pred_fallthru
      _
  $region6: #{visual_decoder_forward.17} parent=0 // loop_footer
    %s15 = sadd.s32 1, %s11
  $region7: #{visual_decoder_forward.17} parent=0 // loop_footer_branch
    %10 = sbr.rel target = $region3
  $region8: #{visual_decoder_forward.17} parent=0 // loop_exit
    _

// kernel: visual_decoder_forward.16
$region0: #{visual_decoder_forward.16}
  #allocation0 [shape = 'u32[]', space=smem, size = 0x4, offset = 0x4, fixed_abs, tag = 'smem constant byte address 0x4 - core index']
  #allocation1 [shape = 'u32[144,128]{1,0:T(1,128)}', space=vmem, size = 0x12000, scoped, tag = 'internal scratch']
  %s0 = inlined_call_operand.vmem [shape: bf16[64,128], index: 0, kind: input, shape index: {}]
  %s1 = inlined_call_operand.vmem [shape: bf16[1,128], index: 1, kind: input, shape index: {}]
  %s2 = inlined_call_operand.vmem [shape: bf16[1,128], index: 2, kind: input, shape index: {}]
  %s3 = inlined_call_operand.vmem [shape: bf16[128,512], index: 3, kind: input, shape index: {}]
  %s4 = inlined_call_operand.vmem [shape: bf16[1,512], index: 4, kind: input, shape index: {}]
  %s5 = inlined_call_operand.vmem [shape: bf16[64,512], index: 5, kind: output, shape index: {}]
  %s6 = sld [smem:[#allocation0]]
  $region53: #{visual_decoder_forward.16} parent=0
    _
  %s8 = ssub.s32 1, %s6
  %s9 = scalar_select 0, %s8, %s6
  loop: start=0, step=1, limit=4
  $region2: #{visual_decoder_forward.16} parent=0 // loop_pre_header
    _
  $region3: #{visual_decoder_forward.16} parent=0 // loop_header
    %s11 = sphi 0, %s15
    %p12 = scmp.ge.s32.totalorder %s11, 4
    %s21 = sphi 0, %s23
    %s24 = sphi 0, %s21
    %s25 = sphi 0, %s24
    %s41 = sphi 0, %s25
    %s45 = sphi 0, %s45
    %s47 = sphi 0, %s45
    %s48 = sphi 0, %s47
    %s62 = sphi 0, %s48
    %s66 = sphi 0, %s66
    %s68 = sphi 0, %s66
    %s69 = sphi 0, %s68
    %s83 = sphi 0, %s69
    %s87 = sphi 0, %s87
    %s89 = sphi 0, %s87
    %s90 = sphi 0, %s89
    %s104 = sphi 0, %s90
    %s108 = sphi 0, %s108
    %s110 = sphi 0, %s108
    %s111 = sphi 0, %s110
    %s125 = sphi 0, %s111
    %s131 = sphi 0, %s133
    %s134 = sphi 0, %s131
    %s135 = sphi 0, %s134
    %s151 = sphi 0, %s135
  $region4: #{visual_decoder_forward.16} parent=0 // loop_header_branch
    %14 = sbr.rel (%p12) target = $region8
  $region5: #{visual_decoder_forward.16} parent=0 // loop_body
    %s16 = ssub.s32 %s11, 1
    %s17 = ssub.s32 %s11, 2
    %s18 = sadd.s32 %s11, 1
    %s19 = ssub.s32 %s11, %s18
    %p20 = scmp.eq.s32.totalorder %s19, 0
    %s22 = sadd.s32 %s21, 1
    %s23 = scalar_select %p20, %s21, %s22
    %p26 = pneg %p20
    %p27 = scmp.eq.s32.totalorder %s11, 1
    %p28 = por %p26, %p27
    %p29 = scmp.ne.s32.totalorder %s21, %s24
    %p30 = scmp.eq.s32.totalorder %s11, 0
    %p31 = por %p29, %p30
    %p32 = scmp.ne.s32.totalorder %s21, %s24
    %p33 = scmp.eq.s32.totalorder %s16, 1
    %p34 = por %p32, %p33
    %p35 = scmp.ne.s32.totalorder %s24, %s25
    %p36 = scmp.eq.s32.totalorder %s16, 0
    %p37 = por %p35, %p36
    %p38 = scmp.ne.s32.totalorder %s24, %s25
    %p39 = scmp.eq.s32.totalorder %s17, 1
    %p40 = por %p38, %p39
    %p42 = scmp.ne.s32.totalorder %s25, %s41
    %p43 = scmp.eq.s32.totalorder %s17, 0
    %p44 = por %p42, %p43
    %s46 = sadd.s32 %s45, 1
    %p49 = scmp.eq.s32.totalorder %s11, 1
    %p50 = scmp.ne.s32.totalorder %s45, %s47
    %p51 = scmp.eq.s32.totalorder %s11, 0
    %p52 = por %p50, %p51
    %p53 = scmp.ne.s32.totalorder %s45, %s47
    %p54 = scmp.eq.s32.totalorder %s16, 1
    %p55 = por %p53, %p54
    %p56 = scmp.ne.s32.totalorder %s47, %s48
    %p57 = scmp.eq.s32.totalorder %s16, 0
    %p58 = por %p56, %p57
    %p59 = scmp.ne.s32.totalorder %s47, %s48
    %p60 = scmp.eq.s32.totalorder %s17, 1
    %p61 = por %p59, %p60
    %p63 = scmp.ne.s32.totalorder %s48, %s62
    %p64 = scmp.eq.s32.totalorder %s17, 0
    %p65 = por %p63, %p64
    %s67 = sadd.s32 %s66, 1
    %p70 = scmp.eq.s32.totalorder %s11, 1
    %p71 = scmp.ne.s32.totalorder %s66, %s68
    %p72 = scmp.eq.s32.totalorder %s11, 0
    %p73 = por %p71, %p72
    %p74 = scmp.ne.s32.totalorder %s66, %s68
    %p75 = scmp.eq.s32.totalorder %s16, 1
    %p76 = por %p74, %p75
    %p77 = scmp.ne.s32.totalorder %s68, %s69
    %p78 = scmp.eq.s32.totalorder %s16, 0
    %p79 = por %p77, %p78
    %p80 = scmp.ne.s32.totalorder %s68, %s69
    %p81 = scmp.eq.s32.totalorder %s17, 1
    %p82 = por %p80, %p81
    %p84 = scmp.ne.s32.totalorder %s69, %s83
    %p85 = scmp.eq.s32.totalorder %s17, 0
    %p86 = por %p84, %p85
    %s88 = sadd.s32 %s87, 1
    %p91 = scmp.eq.s32.totalorder %s11, 1
    %p92 = scmp.ne.s32.totalorder %s87, %s89
    %p93 = scmp.eq.s32.totalorder %s11, 0
    %p94 = por %p92, %p93
    %p95 = scmp.ne.s32.totalorder %s87, %s89
    %p96 = scmp.eq.s32.totalorder %s16, 1
    %p97 = por %p95, %p96
    %p98 = scmp.ne.s32.totalorder %s89, %s90
    %p99 = scmp.eq.s32.totalorder %s16, 0
    %p100 = por %p98, %p99
    %p101 = scmp.ne.s32.totalorder %s89, %s90
    %p102 = scmp.eq.s32.totalorder %s17, 1
    %p103 = por %p101, %p102
    %p105 = scmp.ne.s32.totalorder %s90, %s104
    %p106 = scmp.eq.s32.totalorder %s17, 0
    %p107 = por %p105, %p106
    %s109 = sadd.s32 %s108, 1
    %p112 = scmp.eq.s32.totalorder %s11, 1
    %p113 = scmp.ne.s32.totalorder %s108, %s110
    %p114 = scmp.eq.s32.totalorder %s11, 0
    %p115 = por %p113, %p114
    %p116 = scmp.ne.s32.totalorder %s108, %s110
    %p117 = scmp.eq.s32.totalorder %s16, 1
    %p118 = por %p116, %p117
    %p119 = scmp.ne.s32.totalorder %s110, %s111
    %p120 = scmp.eq.s32.totalorder %s16, 0
    %p121 = por %p119, %p120
    %p122 = scmp.ne.s32.totalorder %s110, %s111
    %p123 = scmp.eq.s32.totalorder %s17, 1
    %p124 = por %p122, %p123
    %p126 = scmp.ne.s32.totalorder %s111, %s125
    %p127 = scmp.eq.s32.totalorder %s17, 0
    %p128 = por %p126, %p127
    %s129 = ssub.s32 %s11, %s18
    %p130 = scmp.eq.s32.totalorder %s129, 0
    %s132 = sadd.s32 %s131, 1
    %s133 = scalar_select %p130, %s131, %s132
    %p136 = pneg %p130
    %p137 = scmp.eq.s32.totalorder %s11, 1
    %p138 = por %p136, %p137
    %p139 = scmp.ne.s32.totalorder %s131, %s134
    %p140 = scmp.eq.s32.totalorder %s11, 0
    %p141 = por %p139, %p140
    %p142 = scmp.ne.s32.totalorder %s131, %s134
    %p143 = scmp.eq.s32.totalorder %s16, 1
    %p144 = por %p142, %p143
    %p145 = scmp.ne.s32.totalorder %s134, %s135
    %p146 = scmp.eq.s32.totalorder %s16, 0
    %p147 = por %p145, %p146
    %p148 = scmp.ne.s32.totalorder %s134, %s135
    %p149 = scmp.eq.s32.totalorder %s17, 1
    %p150 = por %p148, %p149
    %p152 = scmp.ne.s32.totalorder %s135, %s151
    %p153 = scmp.eq.s32.totalorder %s17, 0
    %p154 = por %p152, %p153
    %p155 = scmp.le.s32.totalorder 1, %s11
    %p156 = scmp.lt.s32.totalorder %s11, 3
    %p157 = pnand %p155, %p156
    %p158 = pneg %p157
    // Predicated region
    $region9: #{visual_decoder_forward.16} parent=5 // pred_check
      _
    $region10: #{visual_decoder_forward.16} parent=5 // pred_check_branch
      %160 = sbr.rel (%p157) target = $region12
    $region11: #{visual_decoder_forward.16} parent=5 // pred_region
      %s161 = ssub.s32 %s11, 1
      // Predicated region
      $region13: #{visual_decoder_forward.16} parent=11 // pred_check
        %p162 = pneg %p58
      $region14: #{visual_decoder_forward.16} parent=11 // pred_check_branch
        %164 = sbr.rel (%p162) target = $region16
      $region15: #{visual_decoder_forward.16} parent=11 // pred_region
        _
      $region16: #{visual_decoder_forward.16} parent=11 // pred_fallthru
        _
      // Predicated region
      $region17: #{visual_decoder_forward.16} parent=11 // pred_check
        %p165 = pneg %p79
      $region18: #{visual_decoder_forward.16} parent=11 // pred_check_branch
        %167 = sbr.rel (%p165) target = $region20
      $region19: #{visual_decoder_forward.16} parent=11 // pred_region
        _
      $region20: #{visual_decoder_forward.16} parent=11 // pred_fallthru
        _
      // Predicated region
      $region21: #{visual_decoder_forward.16} parent=11 // pred_check
        %p168 = pneg %p100
      $region22: #{visual_decoder_forward.16} parent=11 // pred_check_branch
        %170 = sbr.rel (%p168) target = $region24
      $region23: #{visual_decoder_forward.16} parent=11 // pred_region
        _
      $region24: #{visual_decoder_forward.16} parent=11 // pred_fallthru
        _
      // Predicated region
      $region25: #{visual_decoder_forward.16} parent=11 // pred_check
        %p171 = pneg %p121
      $region26: #{visual_decoder_forward.16} parent=11 // pred_check_branch
        %173 = sbr.rel (%p171) target = $region28
      $region27: #{visual_decoder_forward.16} parent=11 // pred_region
        _
      $region28: #{visual_decoder_forward.16} parent=11 // pred_fallthru
        _
    $region12: #{visual_decoder_forward.16} parent=5 // pred_fallthru
      _
    %p174 = scmp.lt.s32.totalorder %s11, 2
    // Predicated region
    $region29: #{visual_decoder_forward.16} parent=5 // pred_check
      %p175 = pneg %p174
    $region30: #{visual_decoder_forward.16} parent=5 // pred_check_branch
      %177 = sbr.rel (%p175) target = $region32
    $region31: #{visual_decoder_forward.16} parent=5 // pred_region
      // Predicated region
      $region33: #{visual_decoder_forward.16} parent=31 // pred_check
        %p178 = pneg %p31
      $region34: #{visual_decoder_forward.16} parent=31 // pred_check_branch
        %180 = sbr.rel (%p178) target = $region36
      $region35: #{visual_decoder_forward.16} parent=31 // pred_region
        %s181 = smul.u32 4, %s11
        %p182 = scmp.lt.s32.totalorder %s181, 7
        %s183 = scalar_select %p182, %s181, 7
        %s184 = smul.addr %s183, 4
        %s185 = scalar_lea.vmem %s0, %s184
        %s186 = smul.u32 4, %s11
      $region36: #{visual_decoder_forward.16} parent=31 // pred_fallthru
        _
    $region32: #{visual_decoder_forward.16} parent=5 // pred_fallthru
      _
    %p187 = scmp.le.s32.totalorder 1, %s11
    %p188 = scmp.lt.s32.totalorder %s11, 3
    %p189 = pnand %p187, %p188
    %p190 = pneg %p189
    // Predicated region
    $region37: #{visual_decoder_forward.16} parent=5 // pred_check
      _
    $region38: #{visual_decoder_forward.16} parent=5 // pred_check_branch
      %192 = sbr.rel (%p189) target = $region40
    $region39: #{visual_decoder_forward.16} parent=5 // pred_region
      %s193 = ssub.s32 %s11, 1
      %s194 = smul.u32 4, %s16
      %p195 = scmp.lt.s32.totalorder %s194, 7
      %s196 = scalar_select %p195, %s194, 7
      %s197 = smul.addr %s196, 4
      %s198 = scalar_lea.vmem %s0, %s197
      %p199 = pneg %p37
      %p200 = pneg %p34
      %p201 = pneg %p58
      %p202 = pneg %p55
      %p203 = pneg %p79
      %p204 = pneg %p76
      %p205 = pneg %p100
      %p206 = pneg %p97
      %p207 = pneg %p121
      %p208 = pneg %p118
      %p209 = pneg %p147
      %p210 = pneg %p144
      %s211 = smul.u32 4, %s16
      %p212 = scmp.lt.s32.totalorder %s211, 7
      %s213 = scalar_select %p212, %s211, 7
      %s214 = smul.addr %s213, 4
      %s215 = smul.addr %s214, 4
      %s216 = scalar_lea.vmem %s5, %s215
      %s217 = smul.u32 4, %s16
      %p218 = scmp.lt.s32.totalorder %s217, 7
      %s219 = scalar_select %p218, %s217, 7
      %s220 = smul.addr %s219, 4
      %s221 = scalar_lea.vmem %s0, %s220
      %s222 = smul.u32 4, %s16
      %s223 = smul.u32 4, %s16
      %p224 = scmp.lt.s32.totalorder %s223, 7
      %s225 = scalar_select %p224, %s223, 7
      %s226 = smul.addr %s225, 4
      %s227 = smul.addr %s226, 4
      %s228 = scalar_lea.vmem %s5, %s227
      %s229 = smul.u32 4, %s16
      %v231 = vld [vmem:[%s221] sm:$0xf]
      %v232 = vld [vmem:[%s221 + $0x4] sm:$0xf]
      %v233 = vld [vmem:[%s221 + $0x8] sm:$0xf]
      %v234 = vld [vmem:[%s221 + $0xc] sm:$0xf]
      %v235 = vunpack.c.l.bf16 %v231
      %v236 = vunpack.c.l.bf16 %v232
      %v237 = vunpack.c.l.bf16 %v233
      %v238 = vunpack.c.l.bf16 %v234
      %239 = vadd.xlane.f32.xlu0 %v235
      %v240 = vpop.xlane.xlu0 %239
      %241 = vadd.xlane.f32.xlu0 %v236
      %v242 = vpop.xlane.xlu0 %241
      %243 = vadd.xlane.f32.xlu0 %v237
      %v244 = vpop.xlane.xlu0 %243
      %245 = vadd.xlane.f32.xlu0 %v238
      %v246 = vpop.xlane.xlu0 %245
      %v247 = vrcp.pop 128.0
      %v248 = vmul.f32 %v240, %v247
      %v249 = vmul.f32 %v242, %v247
      %v250 = vmul.f32 %v244, %v247
      %v251 = vmul.f32 %v246, %v247
      %v252 = vsub.f32 %v235, %v248
      %v253 = vsub.f32 %v236, %v249
      %v254 = vsub.f32 %v237, %v250
      %v255 = vsub.f32 %v238, %v251
      %v256 = vmul.f32 %v252, %v252
      %v257 = vmul.f32 %v253, %v253
      %v258 = vmul.f32 %v254, %v254
      %v259 = vmul.f32 %v255, %v255
      %260 = vadd.xlane.f32.xlu0 %v256
      %v261 = vpop.xlane.xlu0 %260
      %262 = vadd.xlane.f32.xlu0 %v257
      %v263 = vpop.xlane.xlu0 %262
      %264 = vadd.xlane.f32.xlu0 %v258
      %v265 = vpop.xlane.xlu0 %264
      %266 = vadd.xlane.f32.xlu0 %v259
      %v267 = vpop.xlane.xlu0 %266
      %v268 = vmul.f32 %v261, %v247
      %v269 = vmul.f32 %v263, %v247
      %v270 = vmul.f32 %v265, %v247
      %v271 = vmul.f32 %v267, %v247
      %v272 = vadd.f32 %v268, 1e-05
      %v273 = vadd.f32 %v269, 1e-05
      %v274 = vadd.f32 %v270, 1e-05
      %v275 = vadd.f32 %v271, 1e-05
      %v276 = vrsqrt.pop %v272
      %v277 = vrsqrt.pop %v273
      %v278 = vrsqrt.pop %v274
      %v279 = vrsqrt.pop %v275
      %v280 = vmul.f32 %v252, %v276
      %v281 = vmul.f32 %v253, %v277
      %v282 = vmul.f32 %v254, %v278
      %v283 = vmul.f32 %v255, %v279
      %v284 = vld [vmem:[%s1] sm:$0x1]
      %v285 = vunpack.c.l.bf16 %v284
      %v286 = vlaneseq
      %v287 = vshrl.u32 %v286, 7
      %v288 = vsub.s32 0, %v287
      %v289 = vrot.slane %v285, %v288
      %v290 = vmul.f32 %v280, %v289
      %v291 = vmul.f32 %v281, %v289
      %v292 = vmul.f32 %v282, %v289
      %v293 = vmul.f32 %v283, %v289
      %v294 = vld [vmem:[%s2] sm:$0x1]
      %v295 = vunpack.c.l.bf16 %v294
      %v296 = vlaneseq
      %v297 = vshrl.u32 %v296, 7
      %v298 = vsub.s32 0, %v297
      %v299 = vrot.slane %v295, %v298
      %v300 = vadd.f32 %v290, %v299
      %v301 = vadd.f32 %v291, %v299
      %v302 = vadd.f32 %v292, %v299
      %v303 = vadd.f32 %v293, %v299
      %v304 = vpack.c.bf16 %v301, %v300
      %v305 = vpack.c.bf16 %v303, %v302
      %v306 = vld [vmem:[%s3] sm:$0xff]
      %v307 = vld [vmem:[%s3 + $0x8] sm:$0xff]
      %v308 = vld [vmem:[%s3 + $0x10] sm:$0xff]
      %v309 = vld [vmem:[%s3 + $0x18] sm:$0xff]
      %v310 = vld [vmem:[%s3 + $0x20] sm:$0xff]
      %v311 = vld [vmem:[%s3 + $0x28] sm:$0xff]
      %v312 = vld [vmem:[%s3 + $0x30] sm:$0xff]
      %v313 = vld [vmem:[%s3 + $0x38] sm:$0xff]
      %v314 = vld [vmem:[%s3 + $0x40] sm:$0xff]
      %v315 = vld [vmem:[%s3 + $0x48] sm:$0xff]
      %v316 = vld [vmem:[%s3 + $0x50] sm:$0xff]
      %v317 = vld [vmem:[%s3 + $0x58] sm:$0xff]
      %v318 = vld [vmem:[%s3 + $0x60] sm:$0xff]
      %v319 = vld [vmem:[%s3 + $0x68] sm:$0xff]
      %v320 = vld [vmem:[%s3 + $0x70] sm:$0xff]
      %v321 = vld [vmem:[%s3 + $0x78] sm:$0xff]
      %v322 = vld [vmem:[%s3 + $0x80] sm:$0xff]
      %v323 = vld [vmem:[%s3 + $0x88] sm:$0xff]
      %v324 = vld [vmem:[%s3 + $0x90] sm:$0xff]
      %v325 = vld [vmem:[%s3 + $0x98] sm:$0xff]
      %v326 = vld [vmem:[%s3 + $0xa0] sm:$0xff]
      %v327 = vld [vmem:[%s3 + $0xa8] sm:$0xff]
      %v328 = vld [vmem:[%s3 + $0xb0] sm:$0xff]
      %v329 = vld [vmem:[%s3 + $0xb8] sm:$0xff]
      %v330 = vld [vmem:[%s3 + $0xc0] sm:$0xff]
      %v331 = vld [vmem:[%s3 + $0xc8] sm:$0xff]
      %v332 = vld [vmem:[%s3 + $0xd0] sm:$0xff]
      %v333 = vld [vmem:[%s3 + $0xd8] sm:$0xff]
      %v334 = vld [vmem:[%s3 + $0xe0] sm:$0xff]
      %v335 = vld [vmem:[%s3 + $0xe8] sm:$0xff]
      %v336 = vld [vmem:[%s3 + $0xf0] sm:$0xff]
      %v337 = vld [vmem:[%s3 + $0xf8] sm:$0xff]
      %v338 = vld [vmem:[%s4] sm:$0xf]
      %v339 = vunpack.c.l.bf16 %v338
      %v341 = vlaneseq
      %v342 = vshrl.u32 %v341, 7
      %v343 = vsub.s32 0, %v342
      %v344 = vrot.slane %v339, %v343
      %v345 = vlaneseq
      %v346 = vshrl.u32 %v345, 7
      %v347 = vsub.s32 2, %v346
      %v348 = vrot.slane %v339, %v347
      %v349 = vlaneseq
      %v350 = vshrl.u32 %v349, 7
      %v351 = vsub.s32 4, %v350
      %v352 = vrot.slane %v339, %v351
      %v353 = vlaneseq
      %v354 = vshrl.u32 %v353, 7
      %v355 = vsub.s32 6, %v354
      %v356 = vrot.slane %v339, %v355
      %v361 = vlaneseq
      %v362 = vshrl.u32 %v361, 7
      %v363 = vsub.s32 0, %v362
      %v364 = vrot.slane %v344, %v363
      %v365 = vlaneseq
      %v366 = vshrl.u32 %v365, 7
      %v367 = vsub.s32 0, %v366
      %v368 = vrot.slane %v348, %v367
      %v369 = vlaneseq
      %v370 = vshrl.u32 %v369, 7
      %v371 = vsub.s32 0, %v370
      %v372 = vrot.slane %v352, %v371
      %v373 = vlaneseq
      %v374 = vshrl.u32 %v373, 7
      %v375 = vsub.s32 0, %v374
      %v376 = vrot.slane %v356, %v375
      %v409 = vunpack.c.l.b16 %v306
      %v410 = vunpack.c.h.b16 %v306
      %v411 = vunpack.c.l.b16 %v307
      %v412 = vunpack.c.h.b16 %v307
      %v413 = vunpack.c.l.b16 %v308
      %v414 = vunpack.c.h.b16 %v308
      %v415 = vunpack.c.l.b16 %v309
      %v416 = vunpack.c.h.b16 %v309
      %v417 = vunpack.c.l.b16 %v310
      %v418 = vunpack.c.h.b16 %v310
      %v419 = vunpack.c.l.b16 %v311
      %v420 = vunpack.c.h.b16 %v311
      %v421 = vunpack.c.l.b16 %v312
      %v422 = vunpack.c.h.b16 %v312
      %v423 = vunpack.c.l.b16 %v313
      %v424 = vunpack.c.h.b16 %v313
      %v425 = vunpack.c.l.b16 %v314
      %v426 = vunpack.c.h.b16 %v314
      %v427 = vunpack.c.l.b16 %v315
      %v428 = vunpack.c.h.b16 %v315
      %v429 = vunpack.c.l.b16 %v316
      %v430 = vunpack.c.h.b16 %v316
      %v431 = vunpack.c.l.b16 %v317
      %v432 = vunpack.c.h.b16 %v317
      %v433 = vunpack.c.l.b16 %v318
      %v434 = vunpack.c.h.b16 %v318
      %v435 = vunpack.c.l.b16 %v319
      %v436 = vunpack.c.h.b16 %v319
      %v437 = vunpack.c.l.b16 %v320
      %v438 = vunpack.c.h.b16 %v320
      %v439 = vunpack.c.l.b16 %v321
      %v440 = vunpack.c.h.b16 %v321
      %v441 = vunpack.c.l.b16 %v322
      %v442 = vunpack.c.h.b16 %v322
      %v443 = vunpack.c.l.b16 %v323
      %v444 = vunpack.c.h.b16 %v323
      %v445 = vunpack.c.l.b16 %v324
      %v446 = vunpack.c.h.b16 %v324
      %v447 = vunpack.c.l.b16 %v325
      %v448 = vunpack.c.h.b16 %v325
      %v449 = vunpack.c.l.b16 %v326
      %v450 = vunpack.c.h.b16 %v326
      %v451 = vunpack.c.l.b16 %v327
      %v452 = vunpack.c.h.b16 %v327
      %v453 = vunpack.c.l.b16 %v328
      %v454 = vunpack.c.h.b16 %v328
      %v455 = vunpack.c.l.b16 %v329
      %v456 = vunpack.c.h.b16 %v329
      %v457 = vunpack.c.l.b16 %v330
      %v458 = vunpack.c.h.b16 %v330
      %v459 = vunpack.c.l.b16 %v331
      %v460 = vunpack.c.h.b16 %v331
      %v461 = vunpack.c.l.b16 %v332
      %v462 = vunpack.c.h.b16 %v332
      %v463 = vunpack.c.l.b16 %v333
      %v464 = vunpack.c.h.b16 %v333
      %v465 = vunpack.c.l.b16 %v334
      %v466 = vunpack.c.h.b16 %v334
      %v467 = vunpack.c.l.b16 %v335
      %v468 = vunpack.c.h.b16 %v335
      %v469 = vunpack.c.l.b16 %v336
      %v470 = vunpack.c.h.b16 %v336
      %v471 = vunpack.c.l.b16 %v337
      %v472 = vunpack.c.h.b16 %v337
      %v473 = vpack.c.b16 %v413, %v409
      %v474 = vpack.c.b16 %v414, %v410
      %v475 = vpack.c.b16 %v415, %v411
      %v476 = vpack.c.b16 %v416, %v412
      %v477 = vpack.c.b16 %v421, %v417
      %v478 = vpack.c.b16 %v422, %v418
      %v479 = vpack.c.b16 %v423, %v419
      %v480 = vpack.c.b16 %v424, %v420
      %v481 = vpack.c.b16 %v429, %v425
      %v482 = vpack.c.b16 %v430, %v426
      %v483 = vpack.c.b16 %v431, %v427
      %v484 = vpack.c.b16 %v432, %v428
      %v485 = vpack.c.b16 %v437, %v433
      %v486 = vpack.c.b16 %v438, %v434
      %v487 = vpack.c.b16 %v439, %v435
      %v488 = vpack.c.b16 %v440, %v436
      %v489 = vpack.c.b16 %v445, %v441
      %v490 = vpack.c.b16 %v446, %v442
      %v491 = vpack.c.b16 %v447, %v443
      %v492 = vpack.c.b16 %v448, %v444
      %v493 = vpack.c.b16 %v453, %v449
      %v494 = vpack.c.b16 %v454, %v450
      %v495 = vpack.c.b16 %v455, %v451
      %v496 = vpack.c.b16 %v456, %v452
      %v497 = vpack.c.b16 %v461, %v457
      %v498 = vpack.c.b16 %v462, %v458
      %v499 = vpack.c.b16 %v463, %v459
      %v500 = vpack.c.b16 %v464, %v460
      %v501 = vpack.c.b16 %v469, %v465
      %v502 = vpack.c.b16 %v470, %v466
      %v503 = vpack.c.b16 %v471, %v467
      %v504 = vpack.c.b16 %v472, %v468
      %537 = vmatprep.subr.bf16.mxu0 %v474
      %538 = vmatpush1.bf16.msra.mxu0 %v473
      %539 = vmatprep.subr.bf16.mxu0 %v478
      %540 = vmatpush1.bf16.msra.mxu0 %v477
      %541 = vmatprep.subr.bf16.mxu0 %v482
      %542 = vmatpush1.bf16.msra.mxu0 %v481
      %543 = vmatprep.subr.bf16.mxu0 %v486
      %544 = vmatpush1.bf16.msra.mxu0 %v485
      %545 = vmatprep.subr.bf16.mxu0 %v490
      %546 = vmatpush1.bf16.msra.mxu0 %v489
      %547 = vmatprep.subr.bf16.mxu0 %v494
      %548 = vmatpush1.bf16.msra.mxu0 %v493
      %549 = vmatprep.subr.bf16.mxu0 %v498
      %550 = vmatpush1.bf16.msra.mxu0 %v497
      %551 = vmatprep.subr.bf16.mxu0 %v502
      %552 = vmatpush1.bf16.msra.mxu0 %v501
      %553 = vmatprep.subr.bf16.mxu0 0
      %554 = vmatpush1.bf16.msra.mxu0 0
      %555 = vmatprep.subr.bf16.mxu0 0
      %556 = vmatpush1.bf16.msra.mxu0 0
      %557 = vmatprep.subr.bf16.mxu0 0
      %558 = vmatpush1.bf16.msra.mxu0 0
      %559 = vmatprep.subr.bf16.mxu0 0
      %560 = vmatpush1.bf16.msra.mxu0 0
      %561 = vmatprep.subr.bf16.mxu0 0
      %562 = vmatpush1.bf16.msra.mxu0 0
      %563 = vmatprep.subr.bf16.mxu0 0
      %564 = vmatpush1.bf16.msra.mxu0 0
      %565 = vmatprep.subr.bf16.mxu0 0
      %566 = vmatpush1.bf16.msra.mxu0 0
      %567 = vmatprep.subr.bf16.mxu0 0
      %568 = vmatpush1.bf16.msra.mxu0 0
      %569 = vmatprep.mubr.bf16.mxu0 0
      %570 = vmatmul.mubr.bf16.gmra.mrb[0].mxu0 %v304
      %v571 = vpop.f32.mrb[0].mxu0
      %v572 = vadd.f32 %v364, %v571
      %v573 = vpop.f32.mrb[0].mxu0
      %v574 = vadd.f32 %v368, %v573
      %v575 = vpop.f32.mrb[0].mxu0
      %v576 = vadd.f32 %v364, %v575
      %v577 = vpop.f32.mrb[0].mxu0
      %v578 = vadd.f32 %v368, %v577
      %579 = vmatprep.mubr.bf16.mxu0 0
      %580 = vmatmul.mubr.bf16.gmra.mrb[0].mxu0 %v305
      %v581 = vpop.f32.mrb[0].mxu0
      %v582 = vadd.f32 %v364, %v581
      %v583 = vpop.f32.mrb[0].mxu0
      %v584 = vadd.f32 %v368, %v583
      %v585 = vpop.f32.mrb[0].mxu0
      %v586 = vadd.f32 %v364, %v585
      %v587 = vpop.f32.mrb[0].mxu0
      %v588 = vadd.f32 %v368, %v587
      %589 = vdwg.mxu0
      %590 = vmatprep.subr.bf16.mxu0 %v476
      %591 = vmatpush1.bf16.msra.mxu0 %v475
      %592 = vmatprep.subr.bf16.mxu0 %v480
      %593 = vmatpush1.bf16.msra.mxu0 %v479
      %594 = vmatprep.subr.bf16.mxu0 %v484
      %595 = vmatpush1.bf16.msra.mxu0 %v483
      %596 = vmatprep.subr.bf16.mxu0 %v488
      %597 = vmatpush1.bf16.msra.mxu0 %v487
      %598 = vmatprep.subr.bf16.mxu0 %v492
      %599 = vmatpush1.bf16.msra.mxu0 %v491
      %600 = vmatprep.subr.bf16.mxu0 %v496
      %601 = vmatpush1.bf16.msra.mxu0 %v495
      %602 = vmatprep.subr.bf16.mxu0 %v500
      %603 = vmatpush1.bf16.msra.mxu0 %v499
      %604 = vmatprep.subr.bf16.mxu0 %v504
      %605 = vmatpush1.bf16.msra.mxu0 %v503
      %606 = vmatprep.subr.bf16.mxu0 0
      %607 = vmatpush1.bf16.msra.mxu0 0
      %608 = vmatprep.subr.bf16.mxu0 0
      %609 = vmatpush1.bf16.msra.mxu0 0
      %610 = vmatprep.subr.bf16.mxu0 0
      %611 = vmatpush1.bf16.msra.mxu0 0
      %612 = vmatprep.subr.bf16.mxu0 0
      %613 = vmatpush1.bf16.msra.mxu0 0
      %614 = vmatprep.subr.bf16.mxu0 0
      %615 = vmatpush1.bf16.msra.mxu0 0
      %616 = vmatprep.subr.bf16.mxu0 0
      %617 = vmatpush1.bf16.msra.mxu0 0
      %618 = vmatprep.subr.bf16.mxu0 0
      %619 = vmatpush1.bf16.msra.mxu0 0
      %620 = vmatprep.subr.bf16.mxu0 0
      %621 = vmatpush1.bf16.msra.mxu0 0
      %622 = vmatprep.mubr.bf16.mxu0 0
      %623 = vmatmul.mubr.bf16.gmra.mrb[0].mxu0 %v304
      %v624 = vpop.f32.mrb[0].mxu0
      %v625 = vadd.f32 %v372, %v624
      %v626 = vpop.f32.mrb[0].mxu0
      %v627 = vadd.f32 %v376, %v626
      %v628 = vpop.f32.mrb[0].mxu0
      %v629 = vadd.f32 %v372, %v628
      %v630 = vpop.f32.mrb[0].mxu0
      %v631 = vadd.f32 %v376, %v630
      %632 = vmatprep.mubr.bf16.mxu0 0
      %633 = vmatmul.mubr.bf16.gmra.mrb[0].mxu0 %v305
      %v634 = vpop.f32.mrb[0].mxu0
      %v635 = vadd.f32 %v372, %v634
      %v636 = vpop.f32.mrb[0].mxu0
      %v637 = vadd.f32 %v376, %v636
      %v638 = vpop.f32.mrb[0].mxu0
      %v639 = vadd.f32 %v372, %v638
      %v640 = vpop.f32.mrb[0].mxu0
      %v641 = vadd.f32 %v376, %v640
      %642 = vdwg.mxu0
      %v643 = vmul.f32 %v572, 0.5
      %v644 = vmul.f32 %v574, 0.5
      %v645 = vmul.f32 %v625, 0.5
      %v646 = vmul.f32 %v627, 0.5
      %v647 = vmul.f32 %v576, 0.5
      %v648 = vmul.f32 %v578, 0.5
      %v649 = vmul.f32 %v629, 0.5
      %v650 = vmul.f32 %v631, 0.5
      %v651 = vmul.f32 %v582, 0.5
      %v652 = vmul.f32 %v584, 0.5
      %v653 = vmul.f32 %v635, 0.5
      %v654 = vmul.f32 %v637, 0.5
      %v655 = vmul.f32 %v586, 0.5
      %v656 = vmul.f32 %v588, 0.5
      %v657 = vmul.f32 %v639, 0.5
      %v658 = vmul.f32 %v641, 0.5
      %v659 = vmul.f32 %v572, 0.044715
      %v660 = vmul.f32 %v574, 0.044715
      %v661 = vmul.f32 %v625, 0.044715
      %v662 = vmul.f32 %v627, 0.044715
      %v663 = vmul.f32 %v576, 0.044715
      %v664 = vmul.f32 %v578, 0.044715
      %v665 = vmul.f32 %v629, 0.044715
      %v666 = vmul.f32 %v631, 0.044715
      %v667 = vmul.f32 %v582, 0.044715
      %v668 = vmul.f32 %v584, 0.044715
      %v669 = vmul.f32 %v635, 0.044715
      %v670 = vmul.f32 %v637, 0.044715
      %v671 = vmul.f32 %v586, 0.044715
      %v672 = vmul.f32 %v588, 0.044715
      %v673 = vmul.f32 %v639, 0.044715
      %v674 = vmul.f32 %v641, 0.044715
      %v675 = vmul.f32 %v659, %v572
      %v676 = vmul.f32 %v660, %v574
      %v677 = vmul.f32 %v661, %v625
      %v678 = vmul.f32 %v662, %v627
      %v679 = vmul.f32 %v663, %v576
      %v680 = vmul.f32 %v664, %v578
      %v681 = vmul.f32 %v665, %v629
      %v682 = vmul.f32 %v666, %v631
      %v683 = vmul.f32 %v667, %v582
      %v684 = vmul.f32 %v668, %v584
      %v685 = vmul.f32 %v669, %v635
      %v686 = vmul.f32 %v670, %v637
      %v687 = vmul.f32 %v671, %v586
      %v688 = vmul.f32 %v672, %v588
      %v689 = vmul.f32 %v673, %v639
      %v690 = vmul.f32 %v674, %v641
      %v691 = vmul.f32 %v675, %v572
      %v692 = vmul.f32 %v676, %v574
      %v693 = vmul.f32 %v677, %v625
      %v694 = vmul.f32 %v678, %v627
      %v695 = vmul.f32 %v679, %v576
      %v696 = vmul.f32 %v680, %v578
      %v697 = vmul.f32 %v681, %v629
      %v698 = vmul.f32 %v682, %v631
      %v699 = vmul.f32 %v683, %v582
      %v700 = vmul.f32 %v684, %v584
      %v701 = vmul.f32 %v685, %v635
      %v702 = vmul.f32 %v686, %v637
      %v703 = vmul.f32 %v687, %v586
      %v704 = vmul.f32 %v688, %v588
      %v705 = vmul.f32 %v689, %v639
      %v706 = vmul.f32 %v690, %v641
      %v707 = vadd.f32 %v572, %v691
      %v708 = vadd.f32 %v574, %v692
      %v709 = vadd.f32 %v625, %v693
      %v710 = vadd.f32 %v627, %v694
      %v711 = vadd.f32 %v576, %v695
      %v712 = vadd.f32 %v578, %v696
      %v713 = vadd.f32 %v629, %v697
      %v714 = vadd.f32 %v631, %v698
      %v715 = vadd.f32 %v582, %v699
      %v716 = vadd.f32 %v584, %v700
      %v717 = vadd.f32 %v635, %v701
      %v718 = vadd.f32 %v637, %v702
      %v719 = vadd.f32 %v586, %v703
      %v720 = vadd.f32 %v588, %v704
      %v721 = vadd.f32 %v639, %v705
      %v722 = vadd.f32 %v641, %v706
      %v723 = vmul.f32 %v707, 0.7978846
      %v724 = vmul.f32 %v708, 0.7978846
      %v725 = vmul.f32 %v709, 0.7978846
      %v726 = vmul.f32 %v710, 0.7978846
      %v727 = vmul.f32 %v711, 0.7978846
      %v728 = vmul.f32 %v712, 0.7978846
      %v729 = vmul.f32 %v713, 0.7978846
      %v730 = vmul.f32 %v714, 0.7978846
      %v731 = vmul.f32 %v715, 0.7978846
      %v732 = vmul.f32 %v716, 0.7978846
      %v733 = vmul.f32 %v717, 0.7978846
      %v734 = vmul.f32 %v718, 0.7978846
      %v735 = vmul.f32 %v719, 0.7978846
      %v736 = vmul.f32 %v720, 0.7978846
      %v737 = vmul.f32 %v721, 0.7978846
      %v738 = vmul.f32 %v722, 0.7978846
      %v739 = vtanh.pop %v723
      %v740 = vtanh.pop %v724
      %v741 = vtanh.pop %v725
      %v742 = vtanh.pop %v726
      %v743 = vtanh.pop %v727
      %v744 = vtanh.pop %v728
      %v745 = vtanh.pop %v729
      %v746 = vtanh.pop %v730
      %v747 = vtanh.pop %v731
      %v748 = vtanh.pop %v732
      %v749 = vtanh.pop %v733
      %v750 = vtanh.pop %v734
      %v751 = vtanh.pop %v735
      %v752 = vtanh.pop %v736
      %v753 = vtanh.pop %v737
      %v754 = vtanh.pop %v738
      %v755 = vadd.f32 %v739, 1.0
      %v756 = vadd.f32 %v740, 1.0
      %v757 = vadd.f32 %v741, 1.0
      %v758 = vadd.f32 %v742, 1.0
      %v759 = vadd.f32 %v743, 1.0
      %v760 = vadd.f32 %v744, 1.0
      %v761 = vadd.f32 %v745, 1.0
      %v762 = vadd.f32 %v746, 1.0
      %v763 = vadd.f32 %v747, 1.0
      %v764 = vadd.f32 %v748, 1.0
      %v765 = vadd.f32 %v749, 1.0
      %v766 = vadd.f32 %v750, 1.0
      %v767 = vadd.f32 %v751, 1.0
      %v768 = vadd.f32 %v752, 1.0
      %v769 = vadd.f32 %v753, 1.0
      %v770 = vadd.f32 %v754, 1.0
      %v771 = vmul.f32 %v643, %v755
      %v772 = vmul.f32 %v644, %v756
      %v773 = vmul.f32 %v645, %v757
      %v774 = vmul.f32 %v646, %v758
      %v775 = vmul.f32 %v647, %v759
      %v776 = vmul.f32 %v648, %v760
      %v777 = vmul.f32 %v649, %v761
      %v778 = vmul.f32 %v650, %v762
      %v779 = vmul.f32 %v651, %v763
      %v780 = vmul.f32 %v652, %v764
      %v781 = vmul.f32 %v653, %v765
      %v782 = vmul.f32 %v654, %v766
      %v783 = vmul.f32 %v655, %v767
      %v784 = vmul.f32 %v656, %v768
      %v785 = vmul.f32 %v657, %v769
      %v786 = vmul.f32 %v658, %v770
      %v787 = vpack.c.bf16 %v775, %v771
      %v788 = vpack.c.bf16 %v776, %v772
      %v789 = vpack.c.bf16 %v777, %v773
      %v790 = vpack.c.bf16 %v778, %v774
      %v791 = vpack.c.bf16 %v783, %v779
      %v792 = vpack.c.bf16 %v784, %v780
      %v793 = vpack.c.bf16 %v785, %v781
      %v794 = vpack.c.bf16 %v786, %v782
      %v803 = vunpack.c.l.b16 %v787
      %v804 = vunpack.c.l.b16 %v788
      %v805 = vunpack.c.l.b16 %v789
      %v806 = vunpack.c.l.b16 %v790
      %v807 = vunpack.c.h.b16 %v787
      %v808 = vunpack.c.h.b16 %v788
      %v809 = vunpack.c.h.b16 %v789
      %v810 = vunpack.c.h.b16 %v790
      %v811 = vunpack.c.l.b16 %v791
      %v812 = vunpack.c.l.b16 %v792
      %v813 = vunpack.c.l.b16 %v793
      %v814 = vunpack.c.l.b16 %v794
      %v815 = vunpack.c.h.b16 %v791
      %v816 = vunpack.c.h.b16 %v792
      %v817 = vunpack.c.h.b16 %v793
      %v818 = vunpack.c.h.b16 %v794
      %v819 = vpack.c.b16 %v804, %v803
      %v820 = vpack.c.b16 %v806, %v805
      %v821 = vpack.c.b16 %v808, %v807
      %v822 = vpack.c.b16 %v810, %v809
      %v823 = vpack.c.b16 %v812, %v811
      %v824 = vpack.c.b16 %v814, %v813
      %v825 = vpack.c.b16 %v816, %v815
      %v826 = vpack.c.b16 %v818, %v817
      %835 = vst [vmem:[%s228] sm:$0xff] %v819
      %836 = vst [vmem:[%s228 + $0x8] sm:$0xff] %v820
      %837 = vst [vmem:[%s228 + $0x10] sm:$0xff] %v821
      %838 = vst [vmem:[%s228 + $0x18] sm:$0xff] %v822
      %839 = vst [vmem:[%s228 + $0x20] sm:$0xff] %v823
      %840 = vst [vmem:[%s228 + $0x28] sm:$0xff] %v824
      %841 = vst [vmem:[%s228 + $0x30] sm:$0xff] %v825
      %842 = vst [vmem:[%s228 + $0x38] sm:$0xff] %v826
      %s843 = smul.u32 4, %s16
      %p844 = scmp.lt.s32.totalorder %s843, 7
      %s845 = scalar_select %p844, %s843, 7
      %s846 = smul.addr %s845, 4
      %s847 = smul.addr %s846, 4
      %s848 = scalar_lea.vmem %s5, %s847
      // Predicated region
      $region41: #{visual_decoder_forward.16} parent=39 // pred_check
        %p849 = pneg %p144
      $region42: #{visual_decoder_forward.16} parent=39 // pred_check_branch
        %851 = sbr.rel (%p849) target = $region44
      $region43: #{visual_decoder_forward.16} parent=39 // pred_region
        %s852 = smul.u32 4, %s16
      $region44: #{visual_decoder_forward.16} parent=39 // pred_fallthru
        _
    $region40: #{visual_decoder_forward.16} parent=5 // pred_fallthru
      _
    %p853 = scmp.le.s32.totalorder 2, %s11
    // Predicated region
    $region45: #{visual_decoder_forward.16} parent=5 // pred_check
      %p854 = pneg %p853
    $region46: #{visual_decoder_forward.16} parent=5 // pred_check_branch
      %856 = sbr.rel (%p854) target = $region48
    $region47: #{visual_decoder_forward.16} parent=5 // pred_region
      %s857 = ssub.s32 %s11, 2
      // Predicated region
      $region49: #{visual_decoder_forward.16} parent=47 // pred_check
        %p858 = pneg %p150
      $region50: #{visual_decoder_forward.16} parent=47 // pred_check_branch
        %860 = sbr.rel (%p858) target = $region52
      $region51: #{visual_decoder_forward.16} parent=47 // pred_region
        %s861 = smul.u32 4, %s17
        %p862 = scmp.lt.s32.totalorder %s861, 7
        %s863 = scalar_select %p862, %s861, 7
        %s864 = smul.addr %s863, 4
        %s865 = smul.addr %s864, 4
        %s866 = scalar_lea.vmem %s5, %s865
      $region52: #{visual_decoder_forward.16} parent=47 // pred_fallthru
        _
    $region48: #{visual_decoder_forward.16} parent=5 // pred_fallthru
      _
  $region6: #{visual_decoder_forward.16} parent=0 // loop_footer
    %s15 = sadd.s32 1, %s11
  $region7: #{visual_decoder_forward.16} parent=0 // loop_footer_branch
    %10 = sbr.rel target = $region3
  $region8: #{visual_decoder_forward.16} parent=0 // loop_exit
    _

// kernel: visual_decoder_forward.23
$region0: #{visual_decoder_forward.23}
  #allocation0 [shape = 'u32[]', space=smem, size = 0x4, offset = 0x4, fixed_abs, tag = 'smem constant byte address 0x4 - core index']
  #allocation1 [shape = 'u32[144,128]{1,0:T(1,128)}', space=vmem, size = 0x12000, scoped, tag = 'internal scratch']
  %s0 = inlined_call_operand.vmem [shape: bf16[64,128], index: 0, kind: input, shape index: {}]
  %s1 = inlined_call_operand.vmem [shape: bf16[1,128], index: 1, kind: input, shape index: {}]
  %s2 = inlined_call_operand.vmem [shape: bf16[1,128], index: 2, kind: input, shape index: {}]
  %s3 = inlined_call_operand.vmem [shape: bf16[128,128], index: 3, kind: input, shape index: {}]
  %s4 = inlined_call_operand.vmem [shape: bf16[1,128], index: 4, kind: input, shape index: {}]
  %s5 = inlined_call_operand.hbm [shape: bf16[64,128], index: 5, kind: output, shape index: {}]
  %s6 = sld [smem:[#allocation0]]
  $region53: #{visual_decoder_forward.23} parent=0
    _
  %s8 = ssub.s32 1, %s6
  %s9 = scalar_select 0, %s8, %s6
  $region1: #{visual_decoder_forward.23} parent=0
    #allocation2 [shape = 'u8[16384]{0}', space=vmem, size = 0x4000, scoped, tag = 'output window, operand 0']
    #allocation3 [shape = 's32[2]{0}', space=sflag, size = 0x8, scoped, tag = 'scoped memory for visual_decoder_forward.23']
    %10 = vsyncpa [#allocation3], 0
    %s11 = scalar_lea.sflag [#allocation3], 1
    %12 = vsyncpa %s11, 0
    loop: start=0, step=1, limit=4
    $region2: #{visual_decoder_forward.23} parent=1 // loop_pre_header
      _
    $region3: #{visual_decoder_forward.23} parent=1 // loop_header
      %s14 = sphi 0, %s18
      %p15 = scmp.ge.s32.totalorder %s14, 4
      %s24 = sphi 0, %s26
      %s27 = sphi 0, %s24
      %s28 = sphi 0, %s27
      %s44 = sphi 0, %s28
      %s48 = sphi 0, %s48
      %s50 = sphi 0, %s48
      %s51 = sphi 0, %s50
      %s65 = sphi 0, %s51
      %s69 = sphi 0, %s69
      %s71 = sphi 0, %s69
      %s72 = sphi 0, %s71
      %s86 = sphi 0, %s72
      %s90 = sphi 0, %s90
      %s92 = sphi 0, %s90
      %s93 = sphi 0, %s92
      %s107 = sphi 0, %s93
      %s111 = sphi 0, %s111
      %s113 = sphi 0, %s111
      %s114 = sphi 0, %s113
      %s128 = sphi 0, %s114
      %s134 = sphi 0, %s136
      %s137 = sphi 0, %s134
      %s138 = sphi 0, %s137
      %s154 = sphi 0, %s138
    $region4: #{visual_decoder_forward.23} parent=1 // loop_header_branch
      %17 = sbr.rel (%p15) target = $region8
    $region5: #{visual_decoder_forward.23} parent=1 // loop_body
      %s19 = ssub.s32 %s14, 1
      %s20 = ssub.s32 %s14, 2
      %s21 = sadd.s32 %s14, 1
      %s22 = ssub.s32 %s14, %s21
      %p23 = scmp.eq.s32.totalorder %s22, 0
      %s25 = sadd.s32 %s24, 1
      %s26 = scalar_select %p23, %s24, %s25
      %p29 = pneg %p23
      %p30 = scmp.eq.s32.totalorder %s14, 1
      %p31 = por %p29, %p30
      %p32 = scmp.ne.s32.totalorder %s24, %s27
      %p33 = scmp.eq.s32.totalorder %s14, 0
      %p34 = por %p32, %p33
      %p35 = scmp.ne.s32.totalorder %s24, %s27
      %p36 = scmp.eq.s32.totalorder %s19, 1
      %p37 = por %p35, %p36
      %p38 = scmp.ne.s32.totalorder %s27, %s28
      %p39 = scmp.eq.s32.totalorder %s19, 0
      %p40 = por %p38, %p39
      %p41 = scmp.ne.s32.totalorder %s27, %s28
      %p42 = scmp.eq.s32.totalorder %s20, 1
      %p43 = por %p41, %p42
      %p45 = scmp.ne.s32.totalorder %s28, %s44
      %p46 = scmp.eq.s32.totalorder %s20, 0
      %p47 = por %p45, %p46
      %s49 = sadd.s32 %s48, 1
      %p52 = scmp.eq.s32.totalorder %s14, 1
      %p53 = scmp.ne.s32.totalorder %s48, %s50
      %p54 = scmp.eq.s32.totalorder %s14, 0
      %p55 = por %p53, %p54
      %p56 = scmp.ne.s32.totalorder %s48, %s50
      %p57 = scmp.eq.s32.totalorder %s19, 1
      %p58 = por %p56, %p57
      %p59 = scmp.ne.s32.totalorder %s50, %s51
      %p60 = scmp.eq.s32.totalorder %s19, 0
      %p61 = por %p59, %p60
      %p62 = scmp.ne.s32.totalorder %s50, %s51
      %p63 = scmp.eq.s32.totalorder %s20, 1
      %p64 = por %p62, %p63
      %p66 = scmp.ne.s32.totalorder %s51, %s65
      %p67 = scmp.eq.s32.totalorder %s20, 0
      %p68 = por %p66, %p67
      %s70 = sadd.s32 %s69, 1
      %p73 = scmp.eq.s32.totalorder %s14, 1
      %p74 = scmp.ne.s32.totalorder %s69, %s71
      %p75 = scmp.eq.s32.totalorder %s14, 0
      %p76 = por %p74, %p75
      %p77 = scmp.ne.s32.totalorder %s69, %s71
      %p78 = scmp.eq.s32.totalorder %s19, 1
      %p79 = por %p77, %p78
      %p80 = scmp.ne.s32.totalorder %s71, %s72
      %p81 = scmp.eq.s32.totalorder %s19, 0
      %p82 = por %p80, %p81
      %p83 = scmp.ne.s32.totalorder %s71, %s72
      %p84 = scmp.eq.s32.totalorder %s20, 1
      %p85 = por %p83, %p84
      %p87 = scmp.ne.s32.totalorder %s72, %s86
      %p88 = scmp.eq.s32.totalorder %s20, 0
      %p89 = por %p87, %p88
      %s91 = sadd.s32 %s90, 1
      %p94 = scmp.eq.s32.totalorder %s14, 1
      %p95 = scmp.ne.s32.totalorder %s90, %s92
      %p96 = scmp.eq.s32.totalorder %s14, 0
      %p97 = por %p95, %p96
      %p98 = scmp.ne.s32.totalorder %s90, %s92
      %p99 = scmp.eq.s32.totalorder %s19, 1
      %p100 = por %p98, %p99
      %p101 = scmp.ne.s32.totalorder %s92, %s93
      %p102 = scmp.eq.s32.totalorder %s19, 0
      %p103 = por %p101, %p102
      %p104 = scmp.ne.s32.totalorder %s92, %s93
      %p105 = scmp.eq.s32.totalorder %s20, 1
      %p106 = por %p104, %p105
      %p108 = scmp.ne.s32.totalorder %s93, %s107
      %p109 = scmp.eq.s32.totalorder %s20, 0
      %p110 = por %p108, %p109
      %s112 = sadd.s32 %s111, 1
      %p115 = scmp.eq.s32.totalorder %s14, 1
      %p116 = scmp.ne.s32.totalorder %s111, %s113
      %p117 = scmp.eq.s32.totalorder %s14, 0
      %p118 = por %p116, %p117
      %p119 = scmp.ne.s32.totalorder %s111, %s113
      %p120 = scmp.eq.s32.totalorder %s19, 1
      %p121 = por %p119, %p120
      %p122 = scmp.ne.s32.totalorder %s113, %s114
      %p123 = scmp.eq.s32.totalorder %s19, 0
      %p124 = por %p122, %p123
      %p125 = scmp.ne.s32.totalorder %s113, %s114
      %p126 = scmp.eq.s32.totalorder %s20, 1
      %p127 = por %p125, %p126
      %p129 = scmp.ne.s32.totalorder %s114, %s128
      %p130 = scmp.eq.s32.totalorder %s20, 0
      %p131 = por %p129, %p130
      %s132 = ssub.s32 %s14, %s21
      %p133 = scmp.eq.s32.totalorder %s132, 0
      %s135 = sadd.s32 %s134, 1
      %s136 = scalar_select %p133, %s134, %s135
      %p139 = pneg %p133
      %p140 = scmp.eq.s32.totalorder %s14, 1
      %p141 = por %p139, %p140
      %p142 = scmp.ne.s32.totalorder %s134, %s137
      %p143 = scmp.eq.s32.totalorder %s14, 0
      %p144 = por %p142, %p143
      %p145 = scmp.ne.s32.totalorder %s134, %s137
      %p146 = scmp.eq.s32.totalorder %s19, 1
      %p147 = por %p145, %p146
      %p148 = scmp.ne.s32.totalorder %s137, %s138
      %p149 = scmp.eq.s32.totalorder %s19, 0
      %p150 = por %p148, %p149
      %p151 = scmp.ne.s32.totalorder %s137, %s138
      %p152 = scmp.eq.s32.totalorder %s20, 1
      %p153 = por %p151, %p152
      %p155 = scmp.ne.s32.totalorder %s138, %s154
      %p156 = scmp.eq.s32.totalorder %s20, 0
      %p157 = por %p155, %p156
      %p158 = scmp.le.s32.totalorder 1, %s14
      %p159 = scmp.lt.s32.totalorder %s14, 3
      %p160 = pnand %p158, %p159
      %p161 = pneg %p160
      // Predicated region
      $region9: #{visual_decoder_forward.23} parent=5 // pred_check
        _
      $region10: #{visual_decoder_forward.23} parent=5 // pred_check_branch
        %163 = sbr.rel (%p160) target = $region12
      $region11: #{visual_decoder_forward.23} parent=5 // pred_region
        %s164 = ssub.s32 %s14, 1
        // Predicated region
        $region13: #{visual_decoder_forward.23} parent=11 // pred_check
          %p165 = pneg %p61
        $region14: #{visual_decoder_forward.23} parent=11 // pred_check_branch
          %167 = sbr.rel (%p165) target = $region16
        $region15: #{visual_decoder_forward.23} parent=11 // pred_region
          _
        $region16: #{visual_decoder_forward.23} parent=11 // pred_fallthru
          _
        // Predicated region
        $region17: #{visual_decoder_forward.23} parent=11 // pred_check
          %p168 = pneg %p82
        $region18: #{visual_decoder_forward.23} parent=11 // pred_check_branch
          %170 = sbr.rel (%p168) target = $region20
        $region19: #{visual_decoder_forward.23} parent=11 // pred_region
          _
        $region20: #{visual_decoder_forward.23} parent=11 // pred_fallthru
          _
        // Predicated region
        $region21: #{visual_decoder_forward.23} parent=11 // pred_check
          %p171 = pneg %p103
        $region22: #{visual_decoder_forward.23} parent=11 // pred_check_branch
          %173 = sbr.rel (%p171) target = $region24
        $region23: #{visual_decoder_forward.23} parent=11 // pred_region
          _
        $region24: #{visual_decoder_forward.23} parent=11 // pred_fallthru
          _
        // Predicated region
        $region25: #{visual_decoder_forward.23} parent=11 // pred_check
          %p174 = pneg %p124
        $region26: #{visual_decoder_forward.23} parent=11 // pred_check_branch
          %176 = sbr.rel (%p174) target = $region28
        $region27: #{visual_decoder_forward.23} parent=11 // pred_region
          _
        $region28: #{visual_decoder_forward.23} parent=11 // pred_fallthru
          _
      $region12: #{visual_decoder_forward.23} parent=5 // pred_fallthru
        _
      %p177 = scmp.lt.s32.totalorder %s14, 2
      // Predicated region
      $region29: #{visual_decoder_forward.23} parent=5 // pred_check
        %p178 = pneg %p177
      $region30: #{visual_decoder_forward.23} parent=5 // pred_check_branch
        %180 = sbr.rel (%p178) target = $region32
      $region31: #{visual_decoder_forward.23} parent=5 // pred_region
        // Predicated region
        $region33: #{visual_decoder_forward.23} parent=31 // pred_check
          %p181 = pneg %p34
        $region34: #{visual_decoder_forward.23} parent=31 // pred_check_branch
          %183 = sbr.rel (%p181) target = $region36
        $region35: #{visual_decoder_forward.23} parent=31 // pred_region
          %s184 = smul.u32 4, %s14
          %p185 = scmp.lt.s32.totalorder %s184, 7
          %s186 = scalar_select %p185, %s184, 7
          %s187 = smul.addr %s186, 4
          %s188 = scalar_lea.vmem %s0, %s187
          %s189 = smul.u32 4, %s14
        $region36: #{visual_decoder_forward.23} parent=31 // pred_fallthru
          _
      $region32: #{visual_decoder_forward.23} parent=5 // pred_fallthru
        _
      %p190 = scmp.le.s32.totalorder 1, %s14
      %p191 = scmp.lt.s32.totalorder %s14, 3
      %p192 = pnand %p190, %p191
      %p193 = pneg %p192
      // Predicated region
      $region37: #{visual_decoder_forward.23} parent=5 // pred_check
        _
      $region38: #{visual_decoder_forward.23} parent=5 // pred_check_branch
        %195 = sbr.rel (%p192) target = $region40
      $region39: #{visual_decoder_forward.23} parent=5 // pred_region
        %s196 = ssub.s32 %s14, 1
        %s197 = smul.u32 4, %s19
        %p198 = scmp.lt.s32.totalorder %s197, 7
        %s199 = scalar_select %p198, %s197, 7
        %s200 = smul.addr %s199, 4
        %s201 = scalar_lea.vmem %s0, %s200
        %p202 = pneg %p40
        %p203 = pneg %p37
        %p204 = pneg %p61
        %p205 = pneg %p58
        %p206 = pneg %p82
        %p207 = pneg %p79
        %p208 = pneg %p103
        %p209 = pneg %p100
        %p210 = pneg %p124
        %p211 = pneg %p121
        %p212 = pneg %p150
        %p213 = pneg %p147
        %s214 = sand.u32 %s137, 1
        %s215 = scalar_lea.sflag [#allocation3], %s214
        %s216 = sand.u32 %s137, 1
        %s217 = smul.addr %s216, 16
        %s218 = scalar_lea.vmem [#allocation2], %s217
        %s219 = smul.u32 4, %s19
        %p220 = scmp.lt.s32.totalorder %s219, 7
        %s221 = scalar_select %p220, %s219, 7
        %s222 = smul.addr %s221, 4
        %s223 = scalar_lea.vmem %s0, %s222
        %s224 = smul.u32 4, %s19
        %s225 = smul.u32 4, %s19
        %v227 = vld [vmem:[%s223] sm:$0xf]
        %v228 = vld [vmem:[%s223 + $0x4] sm:$0xf]
        %v229 = vld [vmem:[%s223 + $0x8] sm:$0xf]
        %v230 = vld [vmem:[%s223 + $0xc] sm:$0xf]
        %v231 = vunpack.c.l.bf16 %v227
        %v232 = vunpack.c.l.bf16 %v228
        %v233 = vunpack.c.l.bf16 %v229
        %v234 = vunpack.c.l.bf16 %v230
        %235 = vadd.xlane.f32.xlu0 %v231
        %v236 = vpop.xlane.xlu0 %235
        %237 = vadd.xlane.f32.xlu0 %v232
        %v238 = vpop.xlane.xlu0 %237
        %239 = vadd.xlane.f32.xlu0 %v233
        %v240 = vpop.xlane.xlu0 %239
        %241 = vadd.xlane.f32.xlu0 %v234
        %v242 = vpop.xlane.xlu0 %241
        %v243 = vrcp.pop 128.0
        %v244 = vmul.f32 %v236, %v243
        %v245 = vmul.f32 %v238, %v243
        %v246 = vmul.f32 %v240, %v243
        %v247 = vmul.f32 %v242, %v243
        %v248 = vsub.f32 %v231, %v244
        %v249 = vsub.f32 %v232, %v245
        %v250 = vsub.f32 %v233, %v246
        %v251 = vsub.f32 %v234, %v247
        %v252 = vmul.f32 %v248, %v248
        %v253 = vmul.f32 %v249, %v249
        %v254 = vmul.f32 %v250, %v250
        %v255 = vmul.f32 %v251, %v251
        %256 = vadd.xlane.f32.xlu0 %v252
        %v257 = vpop.xlane.xlu0 %256
        %258 = vadd.xlane.f32.xlu0 %v253
        %v259 = vpop.xlane.xlu0 %258
        %260 = vadd.xlane.f32.xlu0 %v254
        %v261 = vpop.xlane.xlu0 %260
        %262 = vadd.xlane.f32.xlu0 %v255
        %v263 = vpop.xlane.xlu0 %262
        %v264 = vmul.f32 %v257, %v243
        %v265 = vmul.f32 %v259, %v243
        %v266 = vmul.f32 %v261, %v243
        %v267 = vmul.f32 %v263, %v243
        %v268 = vadd.f32 %v264, 1e-05
        %v269 = vadd.f32 %v265, 1e-05
        %v270 = vadd.f32 %v266, 1e-05
        %v271 = vadd.f32 %v267, 1e-05
        %v272 = vrsqrt.pop %v268
        %v273 = vrsqrt.pop %v269
        %v274 = vrsqrt.pop %v270
        %v275 = vrsqrt.pop %v271
        %v276 = vmul.f32 %v248, %v272
        %v277 = vmul.f32 %v249, %v273
        %v278 = vmul.f32 %v250, %v274
        %v279 = vmul.f32 %v251, %v275
        %v280 = vld [vmem:[%s1] sm:$0x1]
        %v281 = vunpack.c.l.bf16 %v280
        %v282 = vlaneseq
        %v283 = vshrl.u32 %v282, 7
        %v284 = vsub.s32 0, %v283
        %v285 = vrot.slane %v281, %v284
        %v286 = vmul.f32 %v276, %v285
        %v287 = vmul.f32 %v277, %v285
        %v288 = vmul.f32 %v278, %v285
        %v289 = vmul.f32 %v279, %v285
        %v290 = vld [vmem:[%s2] sm:$0x1]
        %v291 = vunpack.c.l.bf16 %v290
        %v292 = vlaneseq
        %v293 = vshrl.u32 %v292, 7
        %v294 = vsub.s32 0, %v293
        %v295 = vrot.slane %v291, %v294
        %v296 = vadd.f32 %v286, %v295
        %v297 = vadd.f32 %v287, %v295
        %v298 = vadd.f32 %v288, %v295
        %v299 = vadd.f32 %v289, %v295
        %v300 = vpack.c.bf16 %v297, %v296
        %v301 = vpack.c.bf16 %v299, %v298
        %v302 = vld [vmem:[%s3] sm:$0xf]
        %v303 = vld [vmem:[%s3 + $0x4] sm:$0xf]
        %v304 = vld [vmem:[%s3 + $0x8] sm:$0xf]
        %v305 = vld [vmem:[%s3 + $0xc] sm:$0xf]
        %v306 = vld [vmem:[%s3 + $0x10] sm:$0xf]
        %v307 = vld [vmem:[%s3 + $0x14] sm:$0xf]
        %v308 = vld [vmem:[%s3 + $0x18] sm:$0xf]
        %v309 = vld [vmem:[%s3 + $0x1c] sm:$0xf]
        %v310 = vld [vmem:[%s3 + $0x20] sm:$0xf]
        %v311 = vld [vmem:[%s3 + $0x24] sm:$0xf]
        %v312 = vld [vmem:[%s3 + $0x28] sm:$0xf]
        %v313 = vld [vmem:[%s3 + $0x2c] sm:$0xf]
        %v314 = vld [vmem:[%s3 + $0x30] sm:$0xf]
        %v315 = vld [vmem:[%s3 + $0x34] sm:$0xf]
        %v316 = vld [vmem:[%s3 + $0x38] sm:$0xf]
        %v317 = vld [vmem:[%s3 + $0x3c] sm:$0xf]
        %v318 = vld [vmem:[%s4] sm:$0x1]
        %v319 = vunpack.c.l.bf16 %v318
        %v320 = vlaneseq
        %v321 = vshrl.u32 %v320, 7
        %v322 = vsub.s32 0, %v321
        %v323 = vrot.slane %v319, %v322
        %v340 = vunpack.c.l.b16 %v302
        %v341 = vunpack.c.l.b16 %v303
        %v342 = vunpack.c.l.b16 %v304
        %v343 = vunpack.c.l.b16 %v305
        %v344 = vunpack.c.l.b16 %v306
        %v345 = vunpack.c.l.b16 %v307
        %v346 = vunpack.c.l.b16 %v308
        %v347 = vunpack.c.l.b16 %v309
        %v348 = vunpack.c.l.b16 %v310
        %v349 = vunpack.c.l.b16 %v311
        %v350 = vunpack.c.l.b16 %v312
        %v351 = vunpack.c.l.b16 %v313
        %v352 = vunpack.c.l.b16 %v314
        %v353 = vunpack.c.l.b16 %v315
        %v354 = vunpack.c.l.b16 %v316
        %v355 = vunpack.c.l.b16 %v317
        %v356 = vpack.c.b16 %v341, %v340
        %v357 = vpack.c.b16 %v343, %v342
        %v358 = vpack.c.b16 %v345, %v344
        %v359 = vpack.c.b16 %v347, %v346
        %v360 = vpack.c.b16 %v349, %v348
        %v361 = vpack.c.b16 %v351, %v350
        %v362 = vpack.c.b16 %v353, %v352
        %v363 = vpack.c.b16 %v355, %v354
        %372 = vmatprep.subr.bf16.mxu0 0
        %373 = vmatpush1.bf16.msra.mxu0 %v356
        %374 = vmatprep.subr.bf16.mxu0 0
        %375 = vmatpush1.bf16.msra.mxu0 %v357
        %376 = vmatprep.subr.bf16.mxu0 0
        %377 = vmatpush1.bf16.msra.mxu0 %v358
        %378 = vmatprep.subr.bf16.mxu0 0
        %379 = vmatpush1.bf16.msra.mxu0 %v359
        %380 = vmatprep.subr.bf16.mxu0 0
        %381 = vmatpush1.bf16.msra.mxu0 %v360
        %382 = vmatprep.subr.bf16.mxu0 0
        %383 = vmatpush1.bf16.msra.mxu0 %v361
        %384 = vmatprep.subr.bf16.mxu0 0
        %385 = vmatpush1.bf16.msra.mxu0 %v362
        %386 = vmatprep.subr.bf16.mxu0 0
        %387 = vmatpush1.bf16.msra.mxu0 %v363
        %388 = vmatprep.subr.bf16.mxu0 0
        %389 = vmatpush1.bf16.msra.mxu0 0
        %390 = vmatprep.subr.bf16.mxu0 0
        %391 = vmatpush1.bf16.msra.mxu0 0
        %392 = vmatprep.subr.bf16.mxu0 0
        %393 = vmatpush1.bf16.msra.mxu0 0
        %394 = vmatprep.subr.bf16.mxu0 0
        %395 = vmatpush1.bf16.msra.mxu0 0
        %396 = vmatprep.subr.bf16.mxu0 0
        %397 = vmatpush1.bf16.msra.mxu0 0
        %398 = vmatprep.subr.bf16.mxu0 0
        %399 = vmatpush1.bf16.msra.mxu0 0
        %400 = vmatprep.subr.bf16.mxu0 0
        %401 = vmatpush1.bf16.msra.mxu0 0
        %402 = vmatprep.subr.bf16.mxu0 0
        %403 = vmatpush1.bf16.msra.mxu0 0
        %404 = vmatprep.mubr.bf16.mxu0 0
        %405 = vmatmul.mubr.bf16.gmra.mrb[0].mxu0 %v300
        %v406 = vpop.f32.mrb[0].mxu0
        %v407 = vadd.f32 %v323, %v406
        %v408 = vpop.f32.mrb[0].mxu0
        %v409 = vpop.f32.mrb[0].mxu0
        %v410 = vadd.f32 %v323, %v409
        %v411 = vpop.f32.mrb[0].mxu0
        %412 = vmatprep.mubr.bf16.mxu0 0
        %413 = vmatmul.mubr.bf16.gmra.mrb[0].mxu0 %v301
        %v414 = vpop.f32.mrb[0].mxu0
        %v415 = vadd.f32 %v323, %v414
        %v416 = vpop.f32.mrb[0].mxu0
        %v417 = vpop.f32.mrb[0].mxu0
        %v418 = vadd.f32 %v323, %v417
        %v419 = vpop.f32.mrb[0].mxu0
        %420 = vdwg.mxu0
        %v421 = vpack.c.bf16 %v410, %v407
        %v422 = vpack.c.bf16 %v418, %v415
        %v425 = vunpack.c.l.b16 %v421
        %v426 = vunpack.c.h.b16 %v421
        %v427 = vunpack.c.l.b16 %v422
        %v428 = vunpack.c.h.b16 %v422
        %v429 = vpack.c.b16 %v425, %v425
        %v430 = vpack.c.b16 %v426, %v426
        %v431 = vpack.c.b16 %v427, %v427
        %v432 = vpack.c.b16 %v428, %v428
        %437 = vst [vmem:[%s218] sm:$0xf] %v429
        %438 = vst [vmem:[%s218 + $0x4] sm:$0xf] %v430
        %439 = vst [vmem:[%s218 + $0x8] sm:$0xf] %v431
        %440 = vst [vmem:[%s218 + $0xc] sm:$0xf] %v432
        %s441 = sand.u32 %s137, 1
        %s442 = scalar_lea.sflag [#allocation3], %s441
        %s443 = sand.u32 %s137, 1
        %s444 = smul.addr %s443, 16
        %s445 = scalar_lea.vmem [#allocation2], %s444
        // Predicated region
        $region41: #{visual_decoder_forward.23} parent=39 // pred_check
          %p446 = pneg %p147
        $region42: #{visual_decoder_forward.23} parent=39 // pred_check_branch
          %448 = sbr.rel (%p446) target = $region44
        $region43: #{visual_decoder_forward.23} parent=39 // pred_region
          %s449 = smul.u32 4, %s19
          %s451 = ssub.s32 256, 256
          %452 = vsyncadd %s442, %s451
          %s453 = smul.addr %s449, 64
          %s454 = scalar_lea.hbm %s5, %s453
          %s455 = sshll.u32 %s445, 4
          %s456 = int_to_ptr.vmem [resolvable:$true] %s455
          %461 = dma.vmem_to_hbm [thread:$0]  %s456, 256, %s454, %s442, 64, 64, 4
        $region44: #{visual_decoder_forward.23} parent=39 // pred_fallthru
          _
      $region40: #{visual_decoder_forward.23} parent=5 // pred_fallthru
        _
      %p462 = scmp.le.s32.totalorder 2, %s14
      // Predicated region
      $region45: #{visual_decoder_forward.23} parent=5 // pred_check
        %p463 = pneg %p462
      $region46: #{visual_decoder_forward.23} parent=5 // pred_check_branch
        %465 = sbr.rel (%p463) target = $region48
      $region47: #{visual_decoder_forward.23} parent=5 // pred_region
        %s466 = ssub.s32 %s14, 2
        // Predicated region
        $region49: #{visual_decoder_forward.23} parent=47 // pred_check
          %p467 = pneg %p153
        $region50: #{visual_decoder_forward.23} parent=47 // pred_check_branch
          %469 = sbr.rel (%p467) target = $region52
        $region51: #{visual_decoder_forward.23} parent=47 // pred_region
          %s470 = sand.u32 %s138, 1
          %s471 = scalar_lea.sflag [#allocation3], %s470
          %s472 = sand.u32 %s138, 1
          %s473 = smul.addr %s472, 16
          %s474 = scalar_lea.vmem [#allocation2], %s473
          %475 = dma.done %s471, 256
        $region52: #{visual_decoder_forward.23} parent=47 // pred_fallthru
          _
      $region48: #{visual_decoder_forward.23} parent=5 // pred_fallthru
        _
    $region6: #{visual_decoder_forward.23} parent=1 // loop_footer
      %s18 = sadd.s32 1, %s14
    $region7: #{visual_decoder_forward.23} parent=1 // loop_footer_branch
      %13 = sbr.rel target = $region3
    $region8: #{visual_decoder_forward.23} parent=1 // loop_exit
      _
    %476 = vsyncpa [#allocation3], 1
    %s477 = scalar_lea.sflag [#allocation3], 1
    %478 = vsyncpa %s477, 1

</llo_original>
